<compile_context>
chip_gen: v5e
topology: v5e:2x2
jax: 0.10.0
libtpu: 0.0.40
codegen_flags: <defaults>
</compile_context>

<pallas_src>
import functools

import jax
import jax.numpy as jnp
import numpy as np
from jax.experimental import pallas as pl
from jax.experimental.pallas import tpu as pltpu

_EPS = 1e-5


# ----------------------------------------------------------------------------
# Kernel: one batch element per grid step.  Whole DoubleConv is fused:
#   conv1 (im2col, 1 matmul) + folded BN + ReLU
#   -> conv2 (im2col, 1 matmul) + folded BN + ReLU
# ----------------------------------------------------------------------------
def _double_conv_kernel(H, W, Cin, Cmid, Cout,
                        x_ref, w1_ref, s1_ref, t1_ref, w2_ref, s2_ref, t2_ref,
                        o_ref, xpad_ref, hpad_ref):

    def zero_border(pad_ref, C):
        # Only the 1-pixel halo is zeroed; the interior is fully rewritten
        # below.  Done every step so it is correct under megacore sharding.
        zrow = jnp.zeros((1, W + 2, C), jnp.float32)
        zcol = jnp.zeros((H + 2, 1, C), jnp.float32)
        pad_ref[0:1, :, :] = zrow
        pad_ref[H + 1:H + 2, :, :] = zrow
        pad_ref[:, 0:1, :] = zcol
        pad_ref[:, W + 1:W + 2, :] = zcol

    zero_border(xpad_ref, Cin)
    zero_border(hpad_ref, Cmid)

    # --- Conv #1 input: place the image inside the zero halo ----------------
    xpad_ref[1:H + 1, 1:W + 1, :] = x_ref[0]                    # (H, W, Cin)

    def im2col(pad_ref, C):
        # (H*W, 9*C): column order is (ky, kx, c), matching the folded weight.
        cols = [pad_ref[ky:ky + H, kx:kx + W, :].reshape(H * W, C)
                for ky in range(3) for kx in range(3)]
        return jnp.concatenate(cols, axis=-1)

    # --- Conv #1: one MXU matmul (K = 9*Cin), folded BN + ReLU --------------
    acc1 = jnp.dot(im2col(xpad_ref, Cin), w1_ref[...],
                   preferred_element_type=jnp.float32)          # (H*W, Cmid)
    h1 = jnp.maximum(acc1 * s1_ref[...] + t1_ref[...], 0.0)

    hpad_ref[1:H + 1, 1:W + 1, :] = h1.reshape(H, W, Cmid)

    # --- Conv #2: one MXU matmul (K = 9*Cmid), folded BN + ReLU -------------
    acc2 = jnp.dot(im2col(hpad_ref, Cmid), w2_ref[...],
                   preferred_element_type=jnp.float32)          # (H*W, Cout)
    out = jnp.maximum(acc2 * s2_ref[...] + t2_ref[...], 0.0)

    # Lane-dense store: channel-planar (Cout, H*W); H*W is a multiple of 128,
    # so this is an unmasked full-lane writeback.  The transpose runs on the
    # XLU (separate issue slot from the VPU/MXU work above).
    o_ref[0] = out.T


# ----------------------------------------------------------------------------
# Parameter setup (deterministic, in-script) and BN folding
# ----------------------------------------------------------------------------
def init_params(key, in_ch, out_ch):
    mid_ch = out_ch  # DoubleConv default: mid_ch = out_ch
    ks = jax.random.split(key, 12)

    def conv_bn(k0, k1, k2, k3, k4, k5, ci, co):
        return dict(
            w=0.2 * jax.random.normal(k0, (co, ci, 3, 3), jnp.float32),  # OIHW
            b=0.1 * jax.random.normal(k1, (co,), jnp.float32),
            g=1.0 + 0.1 * jax.random.normal(k2, (co,), jnp.float32),
            beta=0.1 * jax.random.normal(k3, (co,), jnp.float32),
            m=0.1 * jax.random.normal(k4, (co,), jnp.float32),
            v=0.5 + jnp.abs(jax.random.normal(k5, (co,), jnp.float32)) * 0.5,
        )

    l1 = conv_bn(*ks[0:6], in_ch, mid_ch)
    l2 = conv_bn(*ks[6:12], mid_ch, out_ch)
    return {'w1': l1['w'], 'b1': l1['b'], 'g1': l1['g'], 'beta1': l1['beta'],
            'm1': l1['m'], 'v1': l1['v'],
            'w2': l2['w'], 'b2': l2['b'], 'g2': l2['g'], 'beta2': l2['beta'],
            'm2': l2['m'], 'v2': l2['v']}


def _fold(w_oihw, b, g, beta, mean, var):
    """Weight -> (9*Cin, Cout) im2col layout; fold conv bias + eval-BN into
    a per-channel scale/shift."""
    co, ci, kh, kw = w_oihw.shape
    # (ky, kx, cin, cout) row-major -> row index = (ky*3 + kx)*ci + cin,
    # matching the im2col column order built inside the kernel.
    w_kio = jnp.transpose(w_oihw, (2, 3, 1, 0)).reshape(kh * kw * ci, co)
    scale = g / jnp.sqrt(var + _EPS)                                # (Cout,)
    shift = beta + (b - mean) * scale                               # (Cout,)
    return w_kio, scale[None, :], shift[None, :]


# ----------------------------------------------------------------------------
# Wrapper
# ----------------------------------------------------------------------------
def double_conv_pallas(x_nchw, params):
    N, Cin, H, W = x_nchw.shape

    w1r, s1, t1 = _fold(params['w1'], params['b1'], params['g1'],
                        params['beta1'], params['m1'], params['v1'])
    w2r, s2, t2 = _fold(params['w2'], params['b2'], params['g2'],
                        params['beta2'], params['m2'], params['v2'])
    Cmid = w1r.shape[1]
    Cout = w2r.shape[1]

    # glue: NCHW -> NHWC (channels on the lane axis for the kernel matmuls)
    x = jnp.transpose(x_nchw, (0, 2, 3, 1))                        # (N, H, W, C)

    kernel = functools.partial(_double_conv_kernel, H, W, Cin, Cmid, Cout)

    out_planar = pl.pallas_call(
        kernel,
        # Channel-planar output (N, Cout, H*W): lane-dense stores in-kernel,
        # and it reshapes straight to NCHW in the wrapper (no transpose).
        out_shape=jax.ShapeDtypeStruct((N, Cout, H * W), jnp.float32),
        grid=(N,),
        in_specs=[
            pl.BlockSpec((1, H, W, Cin), lambda n: (n, 0, 0, 0)),
            pl.BlockSpec((9 * Cin, Cmid), lambda n: (0, 0)),
            pl.BlockSpec((1, Cmid), lambda n: (0, 0)),
            pl.BlockSpec((1, Cmid), lambda n: (0, 0)),
            pl.BlockSpec((9 * Cmid, Cout), lambda n: (0, 0)),
            pl.BlockSpec((1, Cout), lambda n: (0, 0)),
            pl.BlockSpec((1, Cout), lambda n: (0, 0)),
        ],
        out_specs=pl.BlockSpec((1, Cout, H * W), lambda n: (n, 0, 0)),
        scratch_shapes=[
            pltpu.VMEM((H + 2, W + 2, Cin), jnp.float32),    # zero-padded x
            pltpu.VMEM((H + 2, W + 2, Cmid), jnp.float32),   # zero-padded h1
        ],
        compiler_params=pltpu.CompilerParams(
            dimension_semantics=("parallel",),
            vmem_limit_bytes=32 * 1024 * 1024),
    )(x, w1r, s1, t1, w2r, s2, t2)

    # free reshape (no data movement): (N, Cout, H*W) -> (N, Cout, H, W)
    return out_planar.reshape(N, Cout, H, W)


# ----------------------------------------------------------------------------
# Pure-JAX reference (mirrors the PyTorch module, NCHW / OIHW, eval-mode BN)
# ----------------------------------------------------------------------------
def double_conv_reference(x, p):
    def conv_bn_relu(h, w, b, g, beta, mean, var):
        z = jax.lax.conv_general_dilated(
            h, w, window_strides=(1, 1), padding=((1, 1), (1, 1)),
            dimension_numbers=('NCHW', 'OIHW', 'NCHW'))
        z = z + b[None, :, None, None]
        z = (z - mean[None, :, None, None]) / jnp.sqrt(var[None, :, None, None] + _EPS)
        z = z * g[None, :, None, None] + beta[None, :, None, None]
        return jnp.maximum(z, 0.0)

    y = conv_bn_relu(x, p['w1'], p['b1'], p['g1'], p['beta1'], p['m1'], p['v1'])
    y = conv_bn_relu(y, p['w2'], p['b2'], p['g2'], p['beta2'], p['m2'], p['v2'])
    return y


if __name__ == "__main__":
    key = jax.random.PRNGKey(0)
    k_x, k_p = jax.random.split(key)

    N, in_ch, out_ch, H, W = 2, 4, 8, 16, 16
    x = jax.random.normal(k_x, (N, in_ch, H, W), jnp.float32)   # NCHW like PyTorch
    params = init_params(k_p, in_ch, out_ch)

    out = jax.block_until_ready(double_conv_pallas(x, params))
    ref = jax.block_until_ready(double_conv_reference(x, params))

    assert out.shape == (N, out_ch, H, W), out.shape
    np.testing.assert_allclose(np.asarray(out), np.asarray(ref),
                               rtol=1e-2, atol=1e-2)
    print("KERNEL_OK")
</pallas_src>

<mosaic_0001>
module attributes {stable_mosaic.version = 11 : i64} {
  func.func @_double_conv_kernel(%arg0: i32, %arg1: memref<1x16x16x4xf32, #tpu.memory_space<vmem>>, %arg2: memref<36x8xf32, #tpu.memory_space<vmem>>, %arg3: memref<1x8xf32, #tpu.memory_space<vmem>>, %arg4: memref<1x8xf32, #tpu.memory_space<vmem>>, %arg5: memref<72x8xf32, #tpu.memory_space<vmem>>, %arg6: memref<1x8xf32, #tpu.memory_space<vmem>>, %arg7: memref<1x8xf32, #tpu.memory_space<vmem>>, %arg8: memref<1x8x256xf32, #tpu.memory_space<vmem>>, %arg9: memref<18x18x4xf32, #tpu.memory_space<vmem>>, %arg10: memref<18x18x8xf32, #tpu.memory_space<vmem>>) attributes {dimension_semantics = [#tpu.dimension_semantics<parallel>], iteration_bounds = array<i64: 2>, scalar_prefetch = 0 : i64, scratch_operands = 2 : i64, tpu.core_type = #tpu.core_type<tc>, window_params = [{transform_indices = @transform_0, window_bounds = array<i64: 1, 16, 16, 4>}, {pipeline_mode = #tpu.pipeline_mode<synchronous>, transform_indices = @transform_1, window_bounds = array<i64: 36, 8>}, {pipeline_mode = #tpu.pipeline_mode<synchronous>, transform_indices = @transform_2, window_bounds = array<i64: 1, 8>}, {pipeline_mode = #tpu.pipeline_mode<synchronous>, transform_indices = @transform_3, window_bounds = array<i64: 1, 8>}, {pipeline_mode = #tpu.pipeline_mode<synchronous>, transform_indices = @transform_4, window_bounds = array<i64: 72, 8>}, {pipeline_mode = #tpu.pipeline_mode<synchronous>, transform_indices = @transform_5, window_bounds = array<i64: 1, 8>}, {pipeline_mode = #tpu.pipeline_mode<synchronous>, transform_indices = @transform_6, window_bounds = array<i64: 1, 8>}, {transform_indices = @transform_7, window_bounds = array<i64: 1, 8, 256>}]} {
    %cst = arith.constant 0.000000e+00 : f32
    %0 = vector.broadcast %cst : f32 to vector<1x18x4xf32>
    %cst_0 = arith.constant 0.000000e+00 : f32
    %1 = vector.broadcast %cst_0 : f32 to vector<18x1x4xf32>
    %c0 = arith.constant 0 : index
    %c0_1 = arith.constant 0 : index
    %c0_2 = arith.constant 0 : index
    %2 = vector.load %arg9[%c0, %c0_1, %c0_2] : memref<18x18x4xf32, #tpu.memory_space<vmem>>, vector<1x18x4xf32>
    tpu.vector_store %arg9[%c0, %c0_1, %c0_2], %0 {strides = array<i32>} : memref<18x18x4xf32, #tpu.memory_space<vmem>>, vector<1x18x4xf32>,
    %c17 = arith.constant 17 : index
    %c0_3 = arith.constant 0 : index
    %c0_4 = arith.constant 0 : index
    %3 = vector.load %arg9[%c17, %c0_3, %c0_4] : memref<18x18x4xf32, #tpu.memory_space<vmem>>, vector<1x18x4xf32>
    tpu.vector_store %arg9[%c17, %c0_3, %c0_4], %0 {strides = array<i32>} : memref<18x18x4xf32, #tpu.memory_space<vmem>>, vector<1x18x4xf32>,
    %c0_5 = arith.constant 0 : index
    %c0_6 = arith.constant 0 : index
    %c0_7 = arith.constant 0 : index
    %4 = vector.load %arg9[%c0_5, %c0_6, %c0_7] : memref<18x18x4xf32, #tpu.memory_space<vmem>>, vector<18x1x4xf32>
    tpu.vector_store %arg9[%c0_5, %c0_6, %c0_7], %1 {strides = array<i32>} : memref<18x18x4xf32, #tpu.memory_space<vmem>>, vector<18x1x4xf32>,
    %c0_8 = arith.constant 0 : index
    %c17_9 = arith.constant 17 : index
    %c0_10 = arith.constant 0 : index
    %5 = vector.load %arg9[%c0_8, %c17_9, %c0_10] : memref<18x18x4xf32, #tpu.memory_space<vmem>>, vector<18x1x4xf32>
    tpu.vector_store %arg9[%c0_8, %c17_9, %c0_10], %1 {strides = array<i32>} : memref<18x18x4xf32, #tpu.memory_space<vmem>>, vector<18x1x4xf32>,
    %cst_11 = arith.constant 0.000000e+00 : f32
    %6 = vector.broadcast %cst_11 : f32 to vector<1x18x8xf32>
    %cst_12 = arith.constant 0.000000e+00 : f32
    %7 = vector.broadcast %cst_12 : f32 to vector<18x1x8xf32>
    %c0_13 = arith.constant 0 : index
    %c0_14 = arith.constant 0 : index
    %c0_15 = arith.constant 0 : index
    %8 = vector.load %arg10[%c0_13, %c0_14, %c0_15] : memref<18x18x8xf32, #tpu.memory_space<vmem>>, vector<1x18x8xf32>
    tpu.vector_store %arg10[%c0_13, %c0_14, %c0_15], %6 {strides = array<i32>} : memref<18x18x8xf32, #tpu.memory_space<vmem>>, vector<1x18x8xf32>,
    %c17_16 = arith.constant 17 : index
    %c0_17 = arith.constant 0 : index
    %c0_18 = arith.constant 0 : index
    %9 = vector.load %arg10[%c17_16, %c0_17, %c0_18] : memref<18x18x8xf32, #tpu.memory_space<vmem>>, vector<1x18x8xf32>
    tpu.vector_store %arg10[%c17_16, %c0_17, %c0_18], %6 {strides = array<i32>} : memref<18x18x8xf32, #tpu.memory_space<vmem>>, vector<1x18x8xf32>,
    %c0_19 = arith.constant 0 : index
    %c0_20 = arith.constant 0 : index
    %c0_21 = arith.constant 0 : index
    %10 = vector.load %arg10[%c0_19, %c0_20, %c0_21] : memref<18x18x8xf32, #tpu.memory_space<vmem>>, vector<18x1x8xf32>
    tpu.vector_store %arg10[%c0_19, %c0_20, %c0_21], %7 {strides = array<i32>} : memref<18x18x8xf32, #tpu.memory_space<vmem>>, vector<18x1x8xf32>,
    %c0_22 = arith.constant 0 : index
    %c17_23 = arith.constant 17 : index
    %c0_24 = arith.constant 0 : index
    %11 = vector.load %arg10[%c0_22, %c17_23, %c0_24] : memref<18x18x8xf32, #tpu.memory_space<vmem>>, vector<18x1x8xf32>
    tpu.vector_store %arg10[%c0_22, %c17_23, %c0_24], %7 {strides = array<i32>} : memref<18x18x8xf32, #tpu.memory_space<vmem>>, vector<18x1x8xf32>,
    %c0_25 = arith.constant 0 : index
    %c0_26 = arith.constant 0 : index
    %c0_27 = arith.constant 0 : index
    %c0_28 = arith.constant 0 : index
    %12 = vector.load %arg1[%c0_25, %c0_26, %c0_27, %c0_28] : memref<1x16x16x4xf32, #tpu.memory_space<vmem>>, vector<1x16x16x4xf32>
    %13 = vector.shape_cast %12 : vector<1x16x16x4xf32> to vector<16x16x4xf32>
    %c1 = arith.constant 1 : index
    %c1_29 = arith.constant 1 : index
    %c0_30 = arith.constant 0 : index
    %14 = vector.load %arg9[%c1, %c1_29, %c0_30] : memref<18x18x4xf32, #tpu.memory_space<vmem>>, vector<16x16x4xf32>
    tpu.vector_store %arg9[%c1, %c1_29, %c0_30], %13 {strides = array<i32>} : memref<18x18x4xf32, #tpu.memory_space<vmem>>, vector<16x16x4xf32>,
    %c0_31 = arith.constant 0 : index
    %c0_32 = arith.constant 0 : index
    %c0_33 = arith.constant 0 : index
    %15 = vector.load %arg9[%c0_31, %c0_32, %c0_33] : memref<18x18x4xf32, #tpu.memory_space<vmem>>, vector<16x16x4xf32>
    %16 = vector.shape_cast %15 : vector<16x16x4xf32> to vector<256x4xf32>
    %c0_34 = arith.constant 0 : index
    %c1_35 = arith.constant 1 : index
    %c0_36 = arith.constant 0 : index
    %17 = vector.load %arg9[%c0_34, %c1_35, %c0_36] : memref<18x18x4xf32, #tpu.memory_space<vmem>>, vector<16x16x4xf32>
    %18 = vector.shape_cast %17 : vector<16x16x4xf32> to vector<256x4xf32>
    %c0_37 = arith.constant 0 : index
    %c2 = arith.constant 2 : index
    %c0_38 = arith.constant 0 : index
    %19 = vector.load %arg9[%c0_37, %c2, %c0_38] : memref<18x18x4xf32, #tpu.memory_space<vmem>>, vector<16x16x4xf32>
    %20 = vector.shape_cast %19 : vector<16x16x4xf32> to vector<256x4xf32>
    %c1_39 = arith.constant 1 : index
    %c0_40 = arith.constant 0 : index
    %c0_41 = arith.constant 0 : index
    %21 = vector.load %arg9[%c1_39, %c0_40, %c0_41] : memref<18x18x4xf32, #tpu.memory_space<vmem>>, vector<16x16x4xf32>
    %22 = vector.shape_cast %21 : vector<16x16x4xf32> to vector<256x4xf32>
    %c1_42 = arith.constant 1 : index
    %c1_43 = arith.constant 1 : index
    %c0_44 = arith.constant 0 : index
    %23 = vector.load %arg9[%c1_42, %c1_43, %c0_44] : memref<18x18x4xf32, #tpu.memory_space<vmem>>, vector<16x16x4xf32>
    %24 = vector.shape_cast %23 : vector<16x16x4xf32> to vector<256x4xf32>
    %c1_45 = arith.constant 1 : index
    %c2_46 = arith.constant 2 : index
    %c0_47 = arith.constant 0 : index
    %25 = vector.load %arg9[%c1_45, %c2_46, %c0_47] : memref<18x18x4xf32, #tpu.memory_space<vmem>>, vector<16x16x4xf32>
    %26 = vector.shape_cast %25 : vector<16x16x4xf32> to vector<256x4xf32>
    %c2_48 = arith.constant 2 : index
    %c0_49 = arith.constant 0 : index
    %c0_50 = arith.constant 0 : index
    %27 = vector.load %arg9[%c2_48, %c0_49, %c0_50] : memref<18x18x4xf32, #tpu.memory_space<vmem>>, vector<16x16x4xf32>
    %28 = vector.shape_cast %27 : vector<16x16x4xf32> to vector<256x4xf32>
    %c2_51 = arith.constant 2 : index
    %c1_52 = arith.constant 1 : index
    %c0_53 = arith.constant 0 : index
    %29 = vector.load %arg9[%c2_51, %c1_52, %c0_53] : memref<18x18x4xf32, #tpu.memory_space<vmem>>, vector<16x16x4xf32>
    %30 = vector.shape_cast %29 : vector<16x16x4xf32> to vector<256x4xf32>
    %c2_54 = arith.constant 2 : index
    %c2_55 = arith.constant 2 : index
    %c0_56 = arith.constant 0 : index
    %31 = vector.load %arg9[%c2_54, %c2_55, %c0_56] : memref<18x18x4xf32, #tpu.memory_space<vmem>>, vector<16x16x4xf32>
    %32 = vector.shape_cast %31 : vector<16x16x4xf32> to vector<256x4xf32>
    %33 = tpu.concatenate %16, %18, %20, %22, %24, %26, %28, %30, %32 in 1 : vector<256x4xf32>, vector<256x4xf32>, vector<256x4xf32>, vector<256x4xf32>, vector<256x4xf32>, vector<256x4xf32>, vector<256x4xf32>, vector<256x4xf32>, vector<256x4xf32> -> vector<256x36xf32>
    %c0_57 = arith.constant 0 : index
    %c0_58 = arith.constant 0 : index
    %34 = vector.load %arg2[%c0_57, %c0_58] : memref<36x8xf32, #tpu.memory_space<vmem>>, vector<36x8xf32>
    %cst_59 = arith.constant dense<0.000000e+00> : vector<256x8xf32>
    %35 = tpu.matmul %33, %34, %cst_59 {dimension_numbers = #tpu.dot_dimension_numbers<[1], [0], [0], [1], [0, 0, 1, 1], [], []>} : vector<256x36xf32>, vector<36x8xf32>, vector<256x8xf32> -> vector<256x8xf32>
    %c0_60 = arith.constant 0 : index
    %c0_61 = arith.constant 0 : index
    %36 = vector.load %arg3[%c0_60, %c0_61] : memref<1x8xf32, #tpu.memory_space<vmem>>, vector<1x8xf32>
    %37 = vector.broadcast %36 : vector<1x8xf32> to vector<256x8xf32>
    %38 = arith.mulf %35, %37 : vector<256x8xf32>
    %c0_62 = arith.constant 0 : index
    %c0_63 = arith.constant 0 : index
    %39 = vector.load %arg4[%c0_62, %c0_63] : memref<1x8xf32, #tpu.memory_space<vmem>>, vector<1x8xf32>
    %40 = vector.broadcast %39 : vector<1x8xf32> to vector<256x8xf32>
    %41 = arith.addf %38, %40 : vector<256x8xf32>
    %cst_64 = arith.constant 0.000000e+00 : f32
    %42 = vector.broadcast %cst_64 : f32 to vector<256x8xf32>
    %43 = arith.maximumf %41, %42 : vector<256x8xf32>
    %44 = vector.shape_cast %43 : vector<256x8xf32> to vector<16x16x8xf32>
    %c1_65 = arith.constant 1 : index
    %c1_66 = arith.constant 1 : index
    %c0_67 = arith.constant 0 : index
    %45 = vector.load %arg10[%c1_65, %c1_66, %c0_67] : memref<18x18x8xf32, #tpu.memory_space<vmem>>, vector<16x16x8xf32>
    tpu.vector_store %arg10[%c1_65, %c1_66, %c0_67], %44 {strides = array<i32>} : memref<18x18x8xf32, #tpu.memory_space<vmem>>, vector<16x16x8xf32>,
    %c0_68 = arith.constant 0 : index
    %c0_69 = arith.constant 0 : index
    %c0_70 = arith.constant 0 : index
    %46 = vector.load %arg10[%c0_68, %c0_69, %c0_70] : memref<18x18x8xf32, #tpu.memory_space<vmem>>, vector<16x16x8xf32>
    %47 = vector.shape_cast %46 : vector<16x16x8xf32> to vector<256x8xf32>
    %c0_71 = arith.constant 0 : index
    %c1_72 = arith.constant 1 : index
    %c0_73 = arith.constant 0 : index
    %48 = vector.load %arg10[%c0_71, %c1_72, %c0_73] : memref<18x18x8xf32, #tpu.memory_space<vmem>>, vector<16x16x8xf32>
    %49 = vector.shape_cast %48 : vector<16x16x8xf32> to vector<256x8xf32>
    %c0_74 = arith.constant 0 : index
    %c2_75 = arith.constant 2 : index
    %c0_76 = arith.constant 0 : index
    %50 = vector.load %arg10[%c0_74, %c2_75, %c0_76] : memref<18x18x8xf32, #tpu.memory_space<vmem>>, vector<16x16x8xf32>
    %51 = vector.shape_cast %50 : vector<16x16x8xf32> to vector<256x8xf32>
    %c1_77 = arith.constant 1 : index
    %c0_78 = arith.constant 0 : index
    %c0_79 = arith.constant 0 : index
    %52 = vector.load %arg10[%c1_77, %c0_78, %c0_79] : memref<18x18x8xf32, #tpu.memory_space<vmem>>, vector<16x16x8xf32>
    %53 = vector.shape_cast %52 : vector<16x16x8xf32> to vector<256x8xf32>
    %c1_80 = arith.constant 1 : index
    %c1_81 = arith.constant 1 : index
    %c0_82 = arith.constant 0 : index
    %54 = vector.load %arg10[%c1_80, %c1_81, %c0_82] : memref<18x18x8xf32, #tpu.memory_space<vmem>>, vector<16x16x8xf32>
    %55 = vector.shape_cast %54 : vector<16x16x8xf32> to vector<256x8xf32>
    %c1_83 = arith.constant 1 : index
    %c2_84 = arith.constant 2 : index
    %c0_85 = arith.constant 0 : index
    %56 = vector.load %arg10[%c1_83, %c2_84, %c0_85] : memref<18x18x8xf32, #tpu.memory_space<vmem>>, vector<16x16x8xf32>
    %57 = vector.shape_cast %56 : vector<16x16x8xf32> to vector<256x8xf32>
    %c2_86 = arith.constant 2 : index
    %c0_87 = arith.constant 0 : index
    %c0_88 = arith.constant 0 : index
    %58 = vector.load %arg10[%c2_86, %c0_87, %c0_88] : memref<18x18x8xf32, #tpu.memory_space<vmem>>, vector<16x16x8xf32>
    %59 = vector.shape_cast %58 : vector<16x16x8xf32> to vector<256x8xf32>
    %c2_89 = arith.constant 2 : index
    %c1_90 = arith.constant 1 : index
    %c0_91 = arith.constant 0 : index
    %60 = vector.load %arg10[%c2_89, %c1_90, %c0_91] : memref<18x18x8xf32, #tpu.memory_space<vmem>>, vector<16x16x8xf32>
    %61 = vector.shape_cast %60 : vector<16x16x8xf32> to vector<256x8xf32>
    %c2_92 = arith.constant 2 : index
    %c2_93 = arith.constant 2 : index
    %c0_94 = arith.constant 0 : index
    %62 = vector.load %arg10[%c2_92, %c2_93, %c0_94] : memref<18x18x8xf32, #tpu.memory_space<vmem>>, vector<16x16x8xf32>
    %63 = vector.shape_cast %62 : vector<16x16x8xf32> to vector<256x8xf32>
    %64 = tpu.concatenate %47, %49, %51, %53, %55, %57, %59, %61, %63 in 1 : vector<256x8xf32>, vector<256x8xf32>, vector<256x8xf32>, vector<256x8xf32>, vector<256x8xf32>, vector<256x8xf32>, vector<256x8xf32>, vector<256x8xf32>, vector<256x8xf32> -> vector<256x72xf32>
    %c0_95 = arith.constant 0 : index
    %c0_96 = arith.constant 0 : index
    %65 = vector.load %arg5[%c0_95, %c0_96] : memref<72x8xf32, #tpu.memory_space<vmem>>, vector<72x8xf32>
    %cst_97 = arith.constant dense<0.000000e+00> : vector<256x8xf32>
    %66 = tpu.matmul %64, %65, %cst_97 {dimension_numbers = #tpu.dot_dimension_numbers<[1], [0], [0], [1], [0, 0, 1, 1], [], []>} : vector<256x72xf32>, vector<72x8xf32>, vector<256x8xf32> -> vector<256x8xf32>
    %c0_98 = arith.constant 0 : index
    %c0_99 = arith.constant 0 : index
    %67 = vector.load %arg6[%c0_98, %c0_99] : memref<1x8xf32, #tpu.memory_space<vmem>>, vector<1x8xf32>
    %68 = vector.broadcast %67 : vector<1x8xf32> to vector<256x8xf32>
    %69 = arith.mulf %66, %68 : vector<256x8xf32>
    %c0_100 = arith.constant 0 : index
    %c0_101 = arith.constant 0 : index
    %70 = vector.load %arg7[%c0_100, %c0_101] : memref<1x8xf32, #tpu.memory_space<vmem>>, vector<1x8xf32>
    %71 = vector.broadcast %70 : vector<1x8xf32> to vector<256x8xf32>
    %72 = arith.addf %69, %71 : vector<256x8xf32>
    %cst_102 = arith.constant 0.000000e+00 : f32
    %73 = vector.broadcast %cst_102 : f32 to vector<256x8xf32>
    %74 = arith.maximumf %72, %73 : vector<256x8xf32>
    %75 = tpu.transpose %74, [1, 0] : vector<256x8xf32> -> vector<8x256xf32>
    %c0_103 = arith.constant 0 : index
    %c0_104 = arith.constant 0 : index
    %c0_105 = arith.constant 0 : index
    %76 = vector.load %arg8[%c0_103, %c0_104, %c0_105] : memref<1x8x256xf32, #tpu.memory_space<vmem>>, vector<1x8x256xf32>
    %77 = vector.shape_cast %76 : vector<1x8x256xf32> to vector<8x256xf32>
    %78 = vector.shape_cast %75 : vector<8x256xf32> to vector<1x8x256xf32>
    tpu.vector_store %arg8[%c0_103, %c0_104, %c0_105], %78 {strides = array<i32>} : memref<1x8x256xf32, #tpu.memory_space<vmem>>, vector<1x8x256xf32>,
    return
  }
  func.func @transform_0(%arg0: i32) -> (i32, i32, i32, i32) {
    %c0_i32 = arith.constant 0 : i32
    %c0_i32_0 = arith.constant 0 : i32
    %c0_i32_1 = arith.constant 0 : i32
    %c0_i32_2 = arith.constant 0 : i32
    return %arg0, %c0_i32, %c0_i32_0, %c0_i32_1 : i32, i32, i32, i32
  }
  func.func @transform_1(%arg0: i32) -> (i32, i32) {
    %c0_i32 = arith.constant 0 : i32
    %c0_i32_0 = arith.constant 0 : i32
    %c0_i32_1 = arith.constant 0 : i32
    return %c0_i32, %c0_i32_0 : i32, i32
  }
  func.func @transform_2(%arg0: i32) -> (i32, i32) {
    %c0_i32 = arith.constant 0 : i32
    %c0_i32_0 = arith.constant 0 : i32
    %c0_i32_1 = arith.constant 0 : i32
    return %c0_i32, %c0_i32_0 : i32, i32
  }
  func.func @transform_3(%arg0: i32) -> (i32, i32) {
    %c0_i32 = arith.constant 0 : i32
    %c0_i32_0 = arith.constant 0 : i32
    %c0_i32_1 = arith.constant 0 : i32
    return %c0_i32, %c0_i32_0 : i32, i32
  }
  func.func @transform_4(%arg0: i32) -> (i32, i32) {
    %c0_i32 = arith.constant 0 : i32
    %c0_i32_0 = arith.constant 0 : i32
    %c0_i32_1 = arith.constant 0 : i32
    return %c0_i32, %c0_i32_0 : i32, i32
  }
  func.func @transform_5(%arg0: i32) -> (i32, i32) {
    %c0_i32 = arith.constant 0 : i32
    %c0_i32_0 = arith.constant 0 : i32
    %c0_i32_1 = arith.constant 0 : i32
    return %c0_i32, %c0_i32_0 : i32, i32
  }
  func.func @transform_6(%arg0: i32) -> (i32, i32) {
    %c0_i32 = arith.constant 0 : i32
    %c0_i32_0 = arith.constant 0 : i32
    %c0_i32_1 = arith.constant 0 : i32
    return %c0_i32, %c0_i32_0 : i32, i32
  }
  func.func @transform_7(%arg0: i32) -> (i32, i32, i32) {
    %c0_i32 = arith.constant 0 : i32
    %c0_i32_0 = arith.constant 0 : i32
    %c0_i32_1 = arith.constant 0 : i32
    return %arg0, %c0_i32, %c0_i32_0 : i32, i32, i32
  }
}

</mosaic_0001>

<llo_original>
// kernel: tpu_custom_call.1
$region0: #{tpu_custom_call.1}
  #allocation0 [shape = 'u32[]', space=smem, size = 0x4, offset = 0x4, fixed_abs, tag = 'smem constant byte address 0x4 - core index']
  #allocation1 [shape = 'u32[72,128]{1,0:T(1,128)}', space=vmem, size = 0x9000, scoped, tag = 'internal scratch']
  #allocation2 [shape = 'f32[18,18,4]{2,1,0:T(8,128)}', space=vmem, size = 0x36000, scoped, tag = 'scratch operand']
  #allocation3 [shape = 'f32[18,18,8]{2,1,0:T(8,128)}', space=vmem, size = 0x36000, scoped, tag = 'scratch operand']
  %s0 = inlined_call_operand.vmem [shape: f32[2,16,16,4], index: 0, kind: input, shape index: {}]
  %s1 = inlined_call_operand.vmem [shape: f32[36,8], index: 1, kind: input, shape index: {}]
  %s2 = inlined_call_operand.vmem [shape: f32[1,8], index: 2, kind: input, shape index: {}]
  %s3 = inlined_call_operand.vmem [shape: f32[1,8], index: 3, kind: input, shape index: {}]
  %s4 = inlined_call_operand.vmem [shape: f32[72,8], index: 4, kind: input, shape index: {}]
  %s5 = inlined_call_operand.vmem [shape: f32[1,8], index: 5, kind: input, shape index: {}]
  %s6 = inlined_call_operand.vmem [shape: f32[1,8], index: 6, kind: input, shape index: {}]
  %s7 = inlined_call_operand.hbm [shape: f32[2,8,256], index: 7, kind: output, shape index: {}]
  %s8 = sld [smem:[#allocation0]]
  $region61: #{tpu_custom_call.1} parent=0
    _
  %s10 = ssub.s32 1, %s8
  %s11 = scalar_select 0, %s10, %s8
  $region1: #{tpu_custom_call.1} parent=0
    #allocation4 [shape = 'u8[16384]{0}', space=vmem, size = 0x4000, scoped, tag = 'output window, operand 0']
    #allocation5 [shape = 's32[2]{0}', space=sflag, size = 0x8, scoped, tag = 'scoped memory for tpu_custom_call.1']
    %12 = vsyncpa [#allocation5], 0
    %s13 = scalar_lea.sflag [#allocation5], 1
    %14 = vsyncpa %s13, 0
    loop: start=0, step=1, limit=4
    $region2: #{tpu_custom_call.1} parent=1 // loop_pre_header
      _
    $region3: #{tpu_custom_call.1} parent=1 // loop_header
      %s16 = sphi 0, %s20
      %p17 = scmp.ge.s32.totalorder %s16, 4
      %s26 = sphi 0, %s28
      %s29 = sphi 0, %s26
      %s30 = sphi 0, %s29
      %s46 = sphi 0, %s30
      %s50 = sphi 0, %s50
      %s52 = sphi 0, %s50
      %s53 = sphi 0, %s52
      %s67 = sphi 0, %s53
      %s71 = sphi 0, %s71
      %s73 = sphi 0, %s71
      %s74 = sphi 0, %s73
      %s88 = sphi 0, %s74
      %s92 = sphi 0, %s92
      %s94 = sphi 0, %s92
      %s95 = sphi 0, %s94
      %s109 = sphi 0, %s95
      %s113 = sphi 0, %s113
      %s115 = sphi 0, %s113
      %s116 = sphi 0, %s115
      %s130 = sphi 0, %s116
      %s134 = sphi 0, %s134
      %s136 = sphi 0, %s134
      %s137 = sphi 0, %s136
      %s151 = sphi 0, %s137
      %s155 = sphi 0, %s155
      %s157 = sphi 0, %s155
      %s158 = sphi 0, %s157
      %s172 = sphi 0, %s158
      %s178 = sphi 0, %s180
      %s181 = sphi 0, %s178
      %s182 = sphi 0, %s181
      %s198 = sphi 0, %s182
    $region4: #{tpu_custom_call.1} parent=1 // loop_header_branch
      %19 = sbr.rel (%p17) target = $region8
    $region5: #{tpu_custom_call.1} parent=1 // loop_body
      %s21 = ssub.s32 %s16, 1
      %s22 = ssub.s32 %s16, 2
      %s23 = sadd.s32 %s16, 1
      %s24 = ssub.s32 %s16, %s23
      %p25 = scmp.eq.s32.totalorder %s24, 0
      %s27 = sadd.s32 %s26, 1
      %s28 = scalar_select %p25, %s26, %s27
      %p31 = pneg %p25
      %p32 = scmp.eq.s32.totalorder %s16, 1
      %p33 = por %p31, %p32
      %p34 = scmp.ne.s32.totalorder %s26, %s29
      %p35 = scmp.eq.s32.totalorder %s16, 0
      %p36 = por %p34, %p35
      %p37 = scmp.ne.s32.totalorder %s26, %s29
      %p38 = scmp.eq.s32.totalorder %s21, 1
      %p39 = por %p37, %p38
      %p40 = scmp.ne.s32.totalorder %s29, %s30
      %p41 = scmp.eq.s32.totalorder %s21, 0
      %p42 = por %p40, %p41
      %p43 = scmp.ne.s32.totalorder %s29, %s30
      %p44 = scmp.eq.s32.totalorder %s22, 1
      %p45 = por %p43, %p44
      %p47 = scmp.ne.s32.totalorder %s30, %s46
      %p48 = scmp.eq.s32.totalorder %s22, 0
      %p49 = por %p47, %p48
      %s51 = sadd.s32 %s50, 1
      %p54 = scmp.eq.s32.totalorder %s16, 1
      %p55 = scmp.ne.s32.totalorder %s50, %s52
      %p56 = scmp.eq.s32.totalorder %s16, 0
      %p57 = por %p55, %p56
      %p58 = scmp.ne.s32.totalorder %s50, %s52
      %p59 = scmp.eq.s32.totalorder %s21, 1
      %p60 = por %p58, %p59
      %p61 = scmp.ne.s32.totalorder %s52, %s53
      %p62 = scmp.eq.s32.totalorder %s21, 0
      %p63 = por %p61, %p62
      %p64 = scmp.ne.s32.totalorder %s52, %s53
      %p65 = scmp.eq.s32.totalorder %s22, 1
      %p66 = por %p64, %p65
      %p68 = scmp.ne.s32.totalorder %s53, %s67
      %p69 = scmp.eq.s32.totalorder %s22, 0
      %p70 = por %p68, %p69
      %s72 = sadd.s32 %s71, 1
      %p75 = scmp.eq.s32.totalorder %s16, 1
      %p76 = scmp.ne.s32.totalorder %s71, %s73
      %p77 = scmp.eq.s32.totalorder %s16, 0
      %p78 = por %p76, %p77
      %p79 = scmp.ne.s32.totalorder %s71, %s73
      %p80 = scmp.eq.s32.totalorder %s21, 1
      %p81 = por %p79, %p80
      %p82 = scmp.ne.s32.totalorder %s73, %s74
      %p83 = scmp.eq.s32.totalorder %s21, 0
      %p84 = por %p82, %p83
      %p85 = scmp.ne.s32.totalorder %s73, %s74
      %p86 = scmp.eq.s32.totalorder %s22, 1
      %p87 = por %p85, %p86
      %p89 = scmp.ne.s32.totalorder %s74, %s88
      %p90 = scmp.eq.s32.totalorder %s22, 0
      %p91 = por %p89, %p90
      %s93 = sadd.s32 %s92, 1
      %p96 = scmp.eq.s32.totalorder %s16, 1
      %p97 = scmp.ne.s32.totalorder %s92, %s94
      %p98 = scmp.eq.s32.totalorder %s16, 0
      %p99 = por %p97, %p98
      %p100 = scmp.ne.s32.totalorder %s92, %s94
      %p101 = scmp.eq.s32.totalorder %s21, 1
      %p102 = por %p100, %p101
      %p103 = scmp.ne.s32.totalorder %s94, %s95
      %p104 = scmp.eq.s32.totalorder %s21, 0
      %p105 = por %p103, %p104
      %p106 = scmp.ne.s32.totalorder %s94, %s95
      %p107 = scmp.eq.s32.totalorder %s22, 1
      %p108 = por %p106, %p107
      %p110 = scmp.ne.s32.totalorder %s95, %s109
      %p111 = scmp.eq.s32.totalorder %s22, 0
      %p112 = por %p110, %p111
      %s114 = sadd.s32 %s113, 1
      %p117 = scmp.eq.s32.totalorder %s16, 1
      %p118 = scmp.ne.s32.totalorder %s113, %s115
      %p119 = scmp.eq.s32.totalorder %s16, 0
      %p120 = por %p118, %p119
      %p121 = scmp.ne.s32.totalorder %s113, %s115
      %p122 = scmp.eq.s32.totalorder %s21, 1
      %p123 = por %p121, %p122
      %p124 = scmp.ne.s32.totalorder %s115, %s116
      %p125 = scmp.eq.s32.totalorder %s21, 0
      %p126 = por %p124, %p125
      %p127 = scmp.ne.s32.totalorder %s115, %s116
      %p128 = scmp.eq.s32.totalorder %s22, 1
      %p129 = por %p127, %p128
      %p131 = scmp.ne.s32.totalorder %s116, %s130
      %p132 = scmp.eq.s32.totalorder %s22, 0
      %p133 = por %p131, %p132
      %s135 = sadd.s32 %s134, 1
      %p138 = scmp.eq.s32.totalorder %s16, 1
      %p139 = scmp.ne.s32.totalorder %s134, %s136
      %p140 = scmp.eq.s32.totalorder %s16, 0
      %p141 = por %p139, %p140
      %p142 = scmp.ne.s32.totalorder %s134, %s136
      %p143 = scmp.eq.s32.totalorder %s21, 1
      %p144 = por %p142, %p143
      %p145 = scmp.ne.s32.totalorder %s136, %s137
      %p146 = scmp.eq.s32.totalorder %s21, 0
      %p147 = por %p145, %p146
      %p148 = scmp.ne.s32.totalorder %s136, %s137
      %p149 = scmp.eq.s32.totalorder %s22, 1
      %p150 = por %p148, %p149
      %p152 = scmp.ne.s32.totalorder %s137, %s151
      %p153 = scmp.eq.s32.totalorder %s22, 0
      %p154 = por %p152, %p153
      %s156 = sadd.s32 %s155, 1
      %p159 = scmp.eq.s32.totalorder %s16, 1
      %p160 = scmp.ne.s32.totalorder %s155, %s157
      %p161 = scmp.eq.s32.totalorder %s16, 0
      %p162 = por %p160, %p161
      %p163 = scmp.ne.s32.totalorder %s155, %s157
      %p164 = scmp.eq.s32.totalorder %s21, 1
      %p165 = por %p163, %p164
      %p166 = scmp.ne.s32.totalorder %s157, %s158
      %p167 = scmp.eq.s32.totalorder %s21, 0
      %p168 = por %p166, %p167
      %p169 = scmp.ne.s32.totalorder %s157, %s158
      %p170 = scmp.eq.s32.totalorder %s22, 1
      %p171 = por %p169, %p170
      %p173 = scmp.ne.s32.totalorder %s158, %s172
      %p174 = scmp.eq.s32.totalorder %s22, 0
      %p175 = por %p173, %p174
      %s176 = ssub.s32 %s16, %s23
      %p177 = scmp.eq.s32.totalorder %s176, 0
      %s179 = sadd.s32 %s178, 1
      %s180 = scalar_select %p177, %s178, %s179
      %p183 = pneg %p177
      %p184 = scmp.eq.s32.totalorder %s16, 1
      %p185 = por %p183, %p184
      %p186 = scmp.ne.s32.totalorder %s178, %s181
      %p187 = scmp.eq.s32.totalorder %s16, 0
      %p188 = por %p186, %p187
      %p189 = scmp.ne.s32.totalorder %s178, %s181
      %p190 = scmp.eq.s32.totalorder %s21, 1
      %p191 = por %p189, %p190
      %p192 = scmp.ne.s32.totalorder %s181, %s182
      %p193 = scmp.eq.s32.totalorder %s21, 0
      %p194 = por %p192, %p193
      %p195 = scmp.ne.s32.totalorder %s181, %s182
      %p196 = scmp.eq.s32.totalorder %s22, 1
      %p197 = por %p195, %p196
      %p199 = scmp.ne.s32.totalorder %s182, %s198
      %p200 = scmp.eq.s32.totalorder %s22, 0
      %p201 = por %p199, %p200
      %p202 = scmp.le.s32.totalorder 1, %s16
      %p203 = scmp.lt.s32.totalorder %s16, 3
      %p204 = pnand %p202, %p203
      %p205 = pneg %p204
      // Predicated region
      $region9: #{tpu_custom_call.1} parent=5 // pred_check
        _
      $region10: #{tpu_custom_call.1} parent=5 // pred_check_branch
        %207 = sbr.rel (%p204) target = $region12
      $region11: #{tpu_custom_call.1} parent=5 // pred_region
        %s208 = ssub.s32 %s16, 1
        // Predicated region
        $region13: #{tpu_custom_call.1} parent=11 // pred_check
          %p209 = pneg %p63
        $region14: #{tpu_custom_call.1} parent=11 // pred_check_branch
          %211 = sbr.rel (%p209) target = $region16
        $region15: #{tpu_custom_call.1} parent=11 // pred_region
          _
        $region16: #{tpu_custom_call.1} parent=11 // pred_fallthru
          _
        // Predicated region
        $region17: #{tpu_custom_call.1} parent=11 // pred_check
          %p212 = pneg %p84
        $region18: #{tpu_custom_call.1} parent=11 // pred_check_branch
          %214 = sbr.rel (%p212) target = $region20
        $region19: #{tpu_custom_call.1} parent=11 // pred_region
          _
        $region20: #{tpu_custom_call.1} parent=11 // pred_fallthru
          _
        // Predicated region
        $region21: #{tpu_custom_call.1} parent=11 // pred_check
          %p215 = pneg %p105
        $region22: #{tpu_custom_call.1} parent=11 // pred_check_branch
          %217 = sbr.rel (%p215) target = $region24
        $region23: #{tpu_custom_call.1} parent=11 // pred_region
          _
        $region24: #{tpu_custom_call.1} parent=11 // pred_fallthru
          _
        // Predicated region
        $region25: #{tpu_custom_call.1} parent=11 // pred_check
          %p218 = pneg %p126
        $region26: #{tpu_custom_call.1} parent=11 // pred_check_branch
          %220 = sbr.rel (%p218) target = $region28
        $region27: #{tpu_custom_call.1} parent=11 // pred_region
          _
        $region28: #{tpu_custom_call.1} parent=11 // pred_fallthru
          _
        // Predicated region
        $region29: #{tpu_custom_call.1} parent=11 // pred_check
          %p221 = pneg %p147
        $region30: #{tpu_custom_call.1} parent=11 // pred_check_branch
          %223 = sbr.rel (%p221) target = $region32
        $region31: #{tpu_custom_call.1} parent=11 // pred_region
          _
        $region32: #{tpu_custom_call.1} parent=11 // pred_fallthru
          _
        // Predicated region
        $region33: #{tpu_custom_call.1} parent=11 // pred_check
          %p224 = pneg %p168
        $region34: #{tpu_custom_call.1} parent=11 // pred_check_branch
          %226 = sbr.rel (%p224) target = $region36
        $region35: #{tpu_custom_call.1} parent=11 // pred_region
          _
        $region36: #{tpu_custom_call.1} parent=11 // pred_fallthru
          _
      $region12: #{tpu_custom_call.1} parent=5 // pred_fallthru
        _
      %p227 = scmp.lt.s32.totalorder %s16, 2
      // Predicated region
      $region37: #{tpu_custom_call.1} parent=5 // pred_check
        %p228 = pneg %p227
      $region38: #{tpu_custom_call.1} parent=5 // pred_check_branch
        %230 = sbr.rel (%p228) target = $region40
      $region39: #{tpu_custom_call.1} parent=5 // pred_region
        // Predicated region
        $region41: #{tpu_custom_call.1} parent=39 // pred_check
          %p231 = pneg %p36
        $region42: #{tpu_custom_call.1} parent=39 // pred_check_branch
          %233 = sbr.rel (%p231) target = $region44
        $region43: #{tpu_custom_call.1} parent=39 // pred_region
          %p234 = scmp.lt.s32.totalorder %s16, 1
          %s235 = scalar_select %p234, %s16, 1
          %s236 = smul.addr %s235, 32
          %s237 = smul.addr %s236, 8
          %s238 = scalar_lea.vmem %s0, %s237
        $region44: #{tpu_custom_call.1} parent=39 // pred_fallthru
          _
      $region40: #{tpu_custom_call.1} parent=5 // pred_fallthru
        _
      %p239 = scmp.le.s32.totalorder 1, %s16
      %p240 = scmp.lt.s32.totalorder %s16, 3
      %p241 = pnand %p239, %p240
      %p242 = pneg %p241
      // Predicated region
      $region45: #{tpu_custom_call.1} parent=5 // pred_check
        _
      $region46: #{tpu_custom_call.1} parent=5 // pred_check_branch
        %244 = sbr.rel (%p241) target = $region48
      $region47: #{tpu_custom_call.1} parent=5 // pred_region
        %s245 = ssub.s32 %s16, 1
        %p246 = scmp.lt.s32.totalorder %s21, 1
        %s247 = scalar_select %p246, %s21, 1
        %s248 = smul.addr %s247, 32
        %s249 = smul.addr %s248, 8
        %s250 = scalar_lea.vmem %s0, %s249
        %p251 = pneg %p42
        %p252 = pneg %p39
        %p253 = pneg %p63
        %p254 = pneg %p60
        %p255 = pneg %p84
        %p256 = pneg %p81
        %p257 = pneg %p105
        %p258 = pneg %p102
        %p259 = pneg %p126
        %p260 = pneg %p123
        %p261 = pneg %p147
        %p262 = pneg %p144
        %p263 = pneg %p168
        %p264 = pneg %p165
        %p265 = pneg %p194
        %p266 = pneg %p191
        %s267 = sand.u32 %s181, 1
        %s268 = scalar_lea.sflag [#allocation5], %s267
        %s269 = sand.u32 %s181, 1
        %s270 = smul.addr %s269, 16
        %s271 = scalar_lea.vmem [#allocation4], %s270
        %p272 = scmp.lt.s32.totalorder %s21, 1
        %s273 = scalar_select %p272, %s21, 1
        %s274 = smul.addr %s273, 32
        %s275 = smul.addr %s274, 8
        %s276 = scalar_lea.vmem %s0, %s275
        %vm277 = vcmask 31744
        %278 = vst.msk [vmem:[#allocation2] sm:$0xff] %vm277, 0.0
        %279 = vst.msk [vmem:[#allocation2 + $0x8] sm:$0xff] %vm277, 0.0
        %vm280 = vcmask 25600
        %281 = vst.msk [vmem:[#allocation2 + $0x10] sm:$0x3] %vm280, 0.0
        %s282 = scalar_lea.vmem [#allocation2], 408
        %283 = vst.msk [vmem:[%s282] sm:$0xff] %vm277, 0.0
        %284 = vst.msk [vmem:[%s282 + $0x8] sm:$0xff] %vm277, 0.0
        %285 = vst.msk [vmem:[%s282 + $0x10] sm:$0x3] %vm280, 0.0
        %vm286 = vcmask 24576
        %287 = vst.msk [vmem:[#allocation2] sm:$0x1] %vm286, 0.0
        %288 = vst.msk [vmem:[#allocation2 + $0x18] sm:$0x1] %vm286, 0.0
        %289 = vst.msk [vmem:[#allocation2 + $0x30] sm:$0x1] %vm286, 0.0
        %290 = vst.msk [vmem:[#allocation2 + $0x48] sm:$0x1] %vm286, 0.0
        %291 = vst.msk [vmem:[#allocation2 + $0x60] sm:$0x1] %vm286, 0.0
        %292 = vst.msk [vmem:[#allocation2 + $0x78] sm:$0x1] %vm286, 0.0
        %293 = vst.msk [vmem:[#allocation2 + $0x90] sm:$0x1] %vm286, 0.0
        %294 = vst.msk [vmem:[#allocation2 + $0xa8] sm:$0x1] %vm286, 0.0
        %295 = vst.msk [vmem:[#allocation2 + $0xc0] sm:$0x1] %vm286, 0.0
        %296 = vst.msk [vmem:[#allocation2 + $0xd8] sm:$0x1] %vm286, 0.0
        %297 = vst.msk [vmem:[#allocation2 + $0xf0] sm:$0x1] %vm286, 0.0
        %298 = vst.msk [vmem:[#allocation2 + $0x108] sm:$0x1] %vm286, 0.0
        %299 = vst.msk [vmem:[#allocation2 + $0x120] sm:$0x1] %vm286, 0.0
        %300 = vst.msk [vmem:[#allocation2 + $0x138] sm:$0x1] %vm286, 0.0
        %301 = vst.msk [vmem:[#allocation2 + $0x150] sm:$0x1] %vm286, 0.0
        %302 = vst.msk [vmem:[#allocation2 + $0x168] sm:$0x1] %vm286, 0.0
        %303 = vst.msk [vmem:[#allocation2 + $0x180] sm:$0x1] %vm286, 0.0
        %304 = vst.msk [vmem:[#allocation2 + $0x198] sm:$0x1] %vm286, 0.0
        %305 = vst.msk [vmem:[#allocation2 + $0x11] sm:$0x1] %vm286, 0.0
        %306 = vst.msk [vmem:[#allocation2 + $0x29] sm:$0x1] %vm286, 0.0
        %307 = vst.msk [vmem:[#allocation2 + $0x41] sm:$0x1] %vm286, 0.0
        %308 = vst.msk [vmem:[#allocation2 + $0x59] sm:$0x1] %vm286, 0.0
        %309 = vst.msk [vmem:[#allocation2 + $0x71] sm:$0x1] %vm286, 0.0
        %310 = vst.msk [vmem:[#allocation2 + $0x89] sm:$0x1] %vm286, 0.0
        %311 = vst.msk [vmem:[#allocation2 + $0xa1] sm:$0x1] %vm286, 0.0
        %312 = vst.msk [vmem:[#allocation2 + $0xb9] sm:$0x1] %vm286, 0.0
        %313 = vst.msk [vmem:[#allocation2 + $0xd1] sm:$0x1] %vm286, 0.0
        %314 = vst.msk [vmem:[#allocation2 + $0xe9] sm:$0x1] %vm286, 0.0
        %315 = vst.msk [vmem:[#allocation2 + $0x101] sm:$0x1] %vm286, 0.0
        %316 = vst.msk [vmem:[#allocation2 + $0x119] sm:$0x1] %vm286, 0.0
        %317 = vst.msk [vmem:[#allocation2 + $0x131] sm:$0x1] %vm286, 0.0
        %318 = vst.msk [vmem:[#allocation2 + $0x149] sm:$0x1] %vm286, 0.0
        %319 = vst.msk [vmem:[#allocation2 + $0x161] sm:$0x1] %vm286, 0.0
        %320 = vst.msk [vmem:[#allocation2 + $0x179] sm:$0x1] %vm286, 0.0
        %321 = vst.msk [vmem:[#allocation2 + $0x191] sm:$0x1] %vm286, 0.0
        %322 = vst.msk [vmem:[#allocation2 + $0x1a9] sm:$0x1] %vm286, 0.0
        %vm323 = vcmask 64512
        %324 = vst.msk [vmem:[#allocation3] sm:$0xff] %vm323, 0.0
        %325 = vst.msk [vmem:[#allocation3 + $0x8] sm:$0xff] %vm323, 0.0
        %vm326 = vcmask 58368
        %327 = vst.msk [vmem:[#allocation3 + $0x10] sm:$0x3] %vm326, 0.0
        %s328 = scalar_lea.vmem [#allocation3], 408
        %329 = vst.msk [vmem:[%s328] sm:$0xff] %vm323, 0.0
        %330 = vst.msk [vmem:[%s328 + $0x8] sm:$0xff] %vm323, 0.0
        %331 = vst.msk [vmem:[%s328 + $0x10] sm:$0x3] %vm326, 0.0
        %vm332 = vcmask 57344
        %333 = vst.msk [vmem:[#allocation3] sm:$0x1] %vm332, 0.0
        %334 = vst.msk [vmem:[#allocation3 + $0x18] sm:$0x1] %vm332, 0.0
        %335 = vst.msk [vmem:[#allocation3 + $0x30] sm:$0x1] %vm332, 0.0
        %336 = vst.msk [vmem:[#allocation3 + $0x48] sm:$0x1] %vm332, 0.0
        %337 = vst.msk [vmem:[#allocation3 + $0x60] sm:$0x1] %vm332, 0.0
        %338 = vst.msk [vmem:[#allocation3 + $0x78] sm:$0x1] %vm332, 0.0
        %339 = vst.msk [vmem:[#allocation3 + $0x90] sm:$0x1] %vm332, 0.0
        %340 = vst.msk [vmem:[#allocation3 + $0xa8] sm:$0x1] %vm332, 0.0
        %341 = vst.msk [vmem:[#allocation3 + $0xc0] sm:$0x1] %vm332, 0.0
        %342 = vst.msk [vmem:[#allocation3 + $0xd8] sm:$0x1] %vm332, 0.0
        %343 = vst.msk [vmem:[#allocation3 + $0xf0] sm:$0x1] %vm332, 0.0
        %344 = vst.msk [vmem:[#allocation3 + $0x108] sm:$0x1] %vm332, 0.0
        %345 = vst.msk [vmem:[#allocation3 + $0x120] sm:$0x1] %vm332, 0.0
        %346 = vst.msk [vmem:[#allocation3 + $0x138] sm:$0x1] %vm332, 0.0
        %347 = vst.msk [vmem:[#allocation3 + $0x150] sm:$0x1] %vm332, 0.0
        %348 = vst.msk [vmem:[#allocation3 + $0x168] sm:$0x1] %vm332, 0.0
        %349 = vst.msk [vmem:[#allocation3 + $0x180] sm:$0x1] %vm332, 0.0
        %350 = vst.msk [vmem:[#allocation3 + $0x198] sm:$0x1] %vm332, 0.0
        %351 = vst.msk [vmem:[#allocation3 + $0x11] sm:$0x1] %vm332, 0.0
        %352 = vst.msk [vmem:[#allocation3 + $0x29] sm:$0x1] %vm332, 0.0
        %353 = vst.msk [vmem:[#allocation3 + $0x41] sm:$0x1] %vm332, 0.0
        %354 = vst.msk [vmem:[#allocation3 + $0x59] sm:$0x1] %vm332, 0.0
        %355 = vst.msk [vmem:[#allocation3 + $0x71] sm:$0x1] %vm332, 0.0
        %356 = vst.msk [vmem:[#allocation3 + $0x89] sm:$0x1] %vm332, 0.0
        %357 = vst.msk [vmem:[#allocation3 + $0xa1] sm:$0x1] %vm332, 0.0
        %358 = vst.msk [vmem:[#allocation3 + $0xb9] sm:$0x1] %vm332, 0.0
        %359 = vst.msk [vmem:[#allocation3 + $0xd1] sm:$0x1] %vm332, 0.0
        %360 = vst.msk [vmem:[#allocation3 + $0xe9] sm:$0x1] %vm332, 0.0
        %361 = vst.msk [vmem:[#allocation3 + $0x101] sm:$0x1] %vm332, 0.0
        %362 = vst.msk [vmem:[#allocation3 + $0x119] sm:$0x1] %vm332, 0.0
        %363 = vst.msk [vmem:[#allocation3 + $0x131] sm:$0x1] %vm332, 0.0
        %364 = vst.msk [vmem:[#allocation3 + $0x149] sm:$0x1] %vm332, 0.0
        %365 = vst.msk [vmem:[#allocation3 + $0x161] sm:$0x1] %vm332, 0.0
        %366 = vst.msk [vmem:[#allocation3 + $0x179] sm:$0x1] %vm332, 0.0
        %367 = vst.msk [vmem:[#allocation3 + $0x191] sm:$0x1] %vm332, 0.0
        %368 = vst.msk [vmem:[#allocation3 + $0x1a9] sm:$0x1] %vm332, 0.0
        %v369 = vld [vmem:[%s276] sm:$0xff]
        %v370 = vld [vmem:[%s276 + $0x8] sm:$0xff]
        %v371 = vld [vmem:[%s276 + $0x10] sm:$0xff]
        %v372 = vld [vmem:[%s276 + $0x18] sm:$0xff]
        %v373 = vld [vmem:[%s276 + $0x20] sm:$0xff]
        %v374 = vld [vmem:[%s276 + $0x28] sm:$0xff]
        %v375 = vld [vmem:[%s276 + $0x30] sm:$0xff]
        %v376 = vld [vmem:[%s276 + $0x38] sm:$0xff]
        %v377 = vld [vmem:[%s276 + $0x40] sm:$0xff]
        %v378 = vld [vmem:[%s276 + $0x48] sm:$0xff]
        %v379 = vld [vmem:[%s276 + $0x50] sm:$0xff]
        %v380 = vld [vmem:[%s276 + $0x58] sm:$0xff]
        %v381 = vld [vmem:[%s276 + $0x60] sm:$0xff]
        %v382 = vld [vmem:[%s276 + $0x68] sm:$0xff]
        %v383 = vld [vmem:[%s276 + $0x70] sm:$0xff]
        %v384 = vld [vmem:[%s276 + $0x78] sm:$0xff]
        %v385 = vld [vmem:[%s276 + $0x80] sm:$0xff]
        %v386 = vld [vmem:[%s276 + $0x88] sm:$0xff]
        %v387 = vld [vmem:[%s276 + $0x90] sm:$0xff]
        %v388 = vld [vmem:[%s276 + $0x98] sm:$0xff]
        %v389 = vld [vmem:[%s276 + $0xa0] sm:$0xff]
        %v390 = vld [vmem:[%s276 + $0xa8] sm:$0xff]
        %v391 = vld [vmem:[%s276 + $0xb0] sm:$0xff]
        %v392 = vld [vmem:[%s276 + $0xb8] sm:$0xff]
        %v393 = vld [vmem:[%s276 + $0xc0] sm:$0xff]
        %v394 = vld [vmem:[%s276 + $0xc8] sm:$0xff]
        %v395 = vld [vmem:[%s276 + $0xd0] sm:$0xff]
        %v396 = vld [vmem:[%s276 + $0xd8] sm:$0xff]
        %v397 = vld [vmem:[%s276 + $0xe0] sm:$0xff]
        %v398 = vld [vmem:[%s276 + $0xe8] sm:$0xff]
        %v399 = vld [vmem:[%s276 + $0xf0] sm:$0xff]
        %v400 = vld [vmem:[%s276 + $0xf8] sm:$0xff]
        %s401 = scalar_lea.vmem [#allocation2], 24
        %402 = vst.msk [vmem:[%s401 + $0x1] sm:$0xff] %vm277, %v369
        %403 = vst.msk [vmem:[%s401 + $0x9] sm:$0xff] %vm277, %v370
        %404 = vst.msk [vmem:[%s401 + $0x19] sm:$0xff] %vm277, %v371
        %405 = vst.msk [vmem:[%s401 + $0x21] sm:$0xff] %vm277, %v372
        %406 = vst.msk [vmem:[%s401 + $0x31] sm:$0xff] %vm277, %v373
        %407 = vst.msk [vmem:[%s401 + $0x39] sm:$0xff] %vm277, %v374
        %408 = vst.msk [vmem:[%s401 + $0x49] sm:$0xff] %vm277, %v375
        %409 = vst.msk [vmem:[%s401 + $0x51] sm:$0xff] %vm277, %v376
        %410 = vst.msk [vmem:[%s401 + $0x61] sm:$0xff] %vm277, %v377
        %411 = vst.msk [vmem:[%s401 + $0x69] sm:$0xff] %vm277, %v378
        %412 = vst.msk [vmem:[%s401 + $0x79] sm:$0xff] %vm277, %v379
        %413 = vst.msk [vmem:[%s401 + $0x81] sm:$0xff] %vm277, %v380
        %414 = vst.msk [vmem:[%s401 + $0x91] sm:$0xff] %vm277, %v381
        %415 = vst.msk [vmem:[%s401 + $0x99] sm:$0xff] %vm277, %v382
        %416 = vst.msk [vmem:[%s401 + $0xa9] sm:$0xff] %vm277, %v383
        %417 = vst.msk [vmem:[%s401 + $0xb1] sm:$0xff] %vm277, %v384
        %418 = vst.msk [vmem:[%s401 + $0xc1] sm:$0xff] %vm277, %v385
        %419 = vst.msk [vmem:[%s401 + $0xc9] sm:$0xff] %vm277, %v386
        %420 = vst.msk [vmem:[%s401 + $0xd9] sm:$0xff] %vm277, %v387
        %421 = vst.msk [vmem:[%s401 + $0xe1] sm:$0xff] %vm277, %v388
        %422 = vst.msk [vmem:[%s401 + $0xf1] sm:$0xff] %vm277, %v389
        %423 = vst.msk [vmem:[%s401 + $0xf9] sm:$0xff] %vm277, %v390
        %424 = vst.msk [vmem:[%s401 + $0x109] sm:$0xff] %vm277, %v391
        %425 = vst.msk [vmem:[%s401 + $0x111] sm:$0xff] %vm277, %v392
        %426 = vst.msk [vmem:[%s401 + $0x121] sm:$0xff] %vm277, %v393
        %427 = vst.msk [vmem:[%s401 + $0x129] sm:$0xff] %vm277, %v394
        %428 = vst.msk [vmem:[%s401 + $0x139] sm:$0xff] %vm277, %v395
        %429 = vst.msk [vmem:[%s401 + $0x141] sm:$0xff] %vm277, %v396
        %430 = vst.msk [vmem:[%s401 + $0x151] sm:$0xff] %vm277, %v397
        %431 = vst.msk [vmem:[%s401 + $0x159] sm:$0xff] %vm277, %v398
        %432 = vst.msk [vmem:[%s401 + $0x169] sm:$0xff] %vm277, %v399
        %433 = vst.msk [vmem:[%s401 + $0x171] sm:$0xff] %vm277, %v400
        %v434 = vld [vmem:[#allocation2] sm:$0xff]
        %v435 = vld [vmem:[#allocation2 + $0x8] sm:$0xff]
        %v436 = vld [vmem:[#allocation2 + $0x18] sm:$0xff]
        %v437 = vld [vmem:[#allocation2 + $0x20] sm:$0xff]
        %v438 = vld [vmem:[#allocation2 + $0x30] sm:$0xff]
        %v439 = vld [vmem:[#allocation2 + $0x38] sm:$0xff]
        %v440 = vld [vmem:[#allocation2 + $0x48] sm:$0xff]
        %v441 = vld [vmem:[#allocation2 + $0x50] sm:$0xff]
        %v442 = vld [vmem:[#allocation2 + $0x60] sm:$0xff]
        %v443 = vld [vmem:[#allocation2 + $0x68] sm:$0xff]
        %v444 = vld [vmem:[#allocation2 + $0x78] sm:$0xff]
        %v445 = vld [vmem:[#allocation2 + $0x80] sm:$0xff]
        %v446 = vld [vmem:[#allocation2 + $0x90] sm:$0xff]
        %v447 = vld [vmem:[#allocation2 + $0x98] sm:$0xff]
        %v448 = vld [vmem:[#allocation2 + $0xa8] sm:$0xff]
        %v449 = vld [vmem:[#allocation2 + $0xb0] sm:$0xff]
        %v450 = vld [vmem:[#allocation2 + $0xc0] sm:$0xff]
        %v451 = vld [vmem:[#allocation2 + $0xc8] sm:$0xff]
        %v452 = vld [vmem:[#allocation2 + $0xd8] sm:$0xff]
        %v453 = vld [vmem:[#allocation2 + $0xe0] sm:$0xff]
        %v454 = vld [vmem:[#allocation2 + $0xf0] sm:$0xff]
        %v455 = vld [vmem:[#allocation2 + $0xf8] sm:$0xff]
        %v456 = vld [vmem:[#allocation2 + $0x108] sm:$0xff]
        %v457 = vld [vmem:[#allocation2 + $0x110] sm:$0xff]
        %v458 = vld [vmem:[#allocation2 + $0x120] sm:$0xff]
        %v459 = vld [vmem:[#allocation2 + $0x128] sm:$0xff]
        %v460 = vld [vmem:[#allocation2 + $0x138] sm:$0xff]
        %v461 = vld [vmem:[#allocation2 + $0x140] sm:$0xff]
        %v462 = vld [vmem:[#allocation2 + $0x150] sm:$0xff]
        %v463 = vld [vmem:[#allocation2 + $0x158] sm:$0xff]
        %v464 = vld [vmem:[#allocation2 + $0x168] sm:$0xff]
        %v465 = vld [vmem:[#allocation2 + $0x170] sm:$0xff]
        %v466 = vld [vmem:[#allocation2 + $0x1] sm:$0xff]
        %v467 = vld [vmem:[#allocation2 + $0x9] sm:$0xff]
        %v468 = vld [vmem:[#allocation2 + $0x19] sm:$0xff]
        %v469 = vld [vmem:[#allocation2 + $0x21] sm:$0xff]
        %v470 = vld [vmem:[#allocation2 + $0x31] sm:$0xff]
        %v471 = vld [vmem:[#allocation2 + $0x39] sm:$0xff]
        %v472 = vld [vmem:[#allocation2 + $0x49] sm:$0xff]
        %v473 = vld [vmem:[#allocation2 + $0x51] sm:$0xff]
        %v474 = vld [vmem:[#allocation2 + $0x61] sm:$0xff]
        %v475 = vld [vmem:[#allocation2 + $0x69] sm:$0xff]
        %v476 = vld [vmem:[#allocation2 + $0x79] sm:$0xff]
        %v477 = vld [vmem:[#allocation2 + $0x81] sm:$0xff]
        %v478 = vld [vmem:[#allocation2 + $0x91] sm:$0xff]
        %v479 = vld [vmem:[#allocation2 + $0x99] sm:$0xff]
        %v480 = vld [vmem:[#allocation2 + $0xa9] sm:$0xff]
        %v481 = vld [vmem:[#allocation2 + $0xb1] sm:$0xff]
        %v482 = vld [vmem:[#allocation2 + $0xc1] sm:$0xff]
        %v483 = vld [vmem:[#allocation2 + $0xc9] sm:$0xff]
        %v484 = vld [vmem:[#allocation2 + $0xd9] sm:$0xff]
        %v485 = vld [vmem:[#allocation2 + $0xe1] sm:$0xff]
        %v486 = vld [vmem:[#allocation2 + $0xf1] sm:$0xff]
        %v487 = vld [vmem:[#allocation2 + $0xf9] sm:$0xff]
        %v488 = vld [vmem:[#allocation2 + $0x109] sm:$0xff]
        %v489 = vld [vmem:[#allocation2 + $0x111] sm:$0xff]
        %v490 = vld [vmem:[#allocation2 + $0x121] sm:$0xff]
        %v491 = vld [vmem:[#allocation2 + $0x129] sm:$0xff]
        %v492 = vld [vmem:[#allocation2 + $0x139] sm:$0xff]
        %v493 = vld [vmem:[#allocation2 + $0x141] sm:$0xff]
        %v494 = vld [vmem:[#allocation2 + $0x151] sm:$0xff]
        %v495 = vld [vmem:[#allocation2 + $0x159] sm:$0xff]
        %v496 = vld [vmem:[#allocation2 + $0x169] sm:$0xff]
        %v497 = vld [vmem:[#allocation2 + $0x171] sm:$0xff]
        %v498 = vld [vmem:[#allocation2 + $0x2] sm:$0xff]
        %v499 = vld [vmem:[#allocation2 + $0xa] sm:$0xff]
        %v500 = vld [vmem:[#allocation2 + $0x1a] sm:$0xff]
        %v501 = vld [vmem:[#allocation2 + $0x22] sm:$0xff]
        %v502 = vld [vmem:[#allocation2 + $0x32] sm:$0xff]
        %v503 = vld [vmem:[#allocation2 + $0x3a] sm:$0xff]
        %v504 = vld [vmem:[#allocation2 + $0x4a] sm:$0xff]
        %v505 = vld [vmem:[#allocation2 + $0x52] sm:$0xff]
        %v506 = vld [vmem:[#allocation2 + $0x62] sm:$0xff]
        %v507 = vld [vmem:[#allocation2 + $0x6a] sm:$0xff]
        %v508 = vld [vmem:[#allocation2 + $0x7a] sm:$0xff]
        %v509 = vld [vmem:[#allocation2 + $0x82] sm:$0xff]
        %v510 = vld [vmem:[#allocation2 + $0x92] sm:$0xff]
        %v511 = vld [vmem:[#allocation2 + $0x9a] sm:$0xff]
        %v512 = vld [vmem:[#allocation2 + $0xaa] sm:$0xff]
        %v513 = vld [vmem:[#allocation2 + $0xb2] sm:$0xff]
        %v514 = vld [vmem:[#allocation2 + $0xc2] sm:$0xff]
        %v515 = vld [vmem:[#allocation2 + $0xca] sm:$0xff]
        %v516 = vld [vmem:[#allocation2 + $0xda] sm:$0xff]
        %v517 = vld [vmem:[#allocation2 + $0xe2] sm:$0xff]
        %v518 = vld [vmem:[#allocation2 + $0xf2] sm:$0xff]
        %v519 = vld [vmem:[#allocation2 + $0xfa] sm:$0xff]
        %v520 = vld [vmem:[#allocation2 + $0x10a] sm:$0xff]
        %v521 = vld [vmem:[#allocation2 + $0x112] sm:$0xff]
        %v522 = vld [vmem:[#allocation2 + $0x122] sm:$0xff]
        %v523 = vld [vmem:[#allocation2 + $0x12a] sm:$0xff]
        %v524 = vld [vmem:[#allocation2 + $0x13a] sm:$0xff]
        %v525 = vld [vmem:[#allocation2 + $0x142] sm:$0xff]
        %v526 = vld [vmem:[#allocation2 + $0x152] sm:$0xff]
        %v527 = vld [vmem:[#allocation2 + $0x15a] sm:$0xff]
        %v528 = vld [vmem:[#allocation2 + $0x16a] sm:$0xff]
        %v529 = vld [vmem:[#allocation2 + $0x172] sm:$0xff]
        %v530 = vld [vmem:[%s401] sm:$0xff]
        %v531 = vld [vmem:[%s401 + $0x8] sm:$0xff]
        %v532 = vld [vmem:[%s401 + $0x18] sm:$0xff]
        %v533 = vld [vmem:[%s401 + $0x20] sm:$0xff]
        %v534 = vld [vmem:[%s401 + $0x30] sm:$0xff]
        %v535 = vld [vmem:[%s401 + $0x38] sm:$0xff]
        %v536 = vld [vmem:[%s401 + $0x48] sm:$0xff]
        %v537 = vld [vmem:[%s401 + $0x50] sm:$0xff]
        %v538 = vld [vmem:[%s401 + $0x60] sm:$0xff]
        %v539 = vld [vmem:[%s401 + $0x68] sm:$0xff]
        %v540 = vld [vmem:[%s401 + $0x78] sm:$0xff]
        %v541 = vld [vmem:[%s401 + $0x80] sm:$0xff]
        %v542 = vld [vmem:[%s401 + $0x90] sm:$0xff]
        %v543 = vld [vmem:[%s401 + $0x98] sm:$0xff]
        %v544 = vld [vmem:[%s401 + $0xa8] sm:$0xff]
        %v545 = vld [vmem:[%s401 + $0xb0] sm:$0xff]
        %v546 = vld [vmem:[%s401 + $0xc0] sm:$0xff]
        %v547 = vld [vmem:[%s401 + $0xc8] sm:$0xff]
        %v548 = vld [vmem:[%s401 + $0xd8] sm:$0xff]
        %v549 = vld [vmem:[%s401 + $0xe0] sm:$0xff]
        %v550 = vld [vmem:[%s401 + $0xf0] sm:$0xff]
        %v551 = vld [vmem:[%s401 + $0xf8] sm:$0xff]
        %v552 = vld [vmem:[%s401 + $0x108] sm:$0xff]
        %v553 = vld [vmem:[%s401 + $0x110] sm:$0xff]
        %v554 = vld [vmem:[%s401 + $0x120] sm:$0xff]
        %v555 = vld [vmem:[%s401 + $0x128] sm:$0xff]
        %v556 = vld [vmem:[%s401 + $0x138] sm:$0xff]
        %v557 = vld [vmem:[%s401 + $0x140] sm:$0xff]
        %v558 = vld [vmem:[%s401 + $0x150] sm:$0xff]
        %v559 = vld [vmem:[%s401 + $0x158] sm:$0xff]
        %v560 = vld [vmem:[%s401 + $0x168] sm:$0xff]
        %v561 = vld [vmem:[%s401 + $0x170] sm:$0xff]
        %v562 = vld [vmem:[%s401 + $0x1] sm:$0xff]
        %v563 = vld [vmem:[%s401 + $0x9] sm:$0xff]
        %v564 = vld [vmem:[%s401 + $0x19] sm:$0xff]
        %v565 = vld [vmem:[%s401 + $0x21] sm:$0xff]
        %v566 = vld [vmem:[%s401 + $0x31] sm:$0xff]
        %v567 = vld [vmem:[%s401 + $0x39] sm:$0xff]
        %v568 = vld [vmem:[%s401 + $0x49] sm:$0xff]
        %v569 = vld [vmem:[%s401 + $0x51] sm:$0xff]
        %v570 = vld [vmem:[%s401 + $0x61] sm:$0xff]
        %v571 = vld [vmem:[%s401 + $0x69] sm:$0xff]
        %v572 = vld [vmem:[%s401 + $0x79] sm:$0xff]
        %v573 = vld [vmem:[%s401 + $0x81] sm:$0xff]
        %v574 = vld [vmem:[%s401 + $0x91] sm:$0xff]
        %v575 = vld [vmem:[%s401 + $0x99] sm:$0xff]
        %v576 = vld [vmem:[%s401 + $0xa9] sm:$0xff]
        %v577 = vld [vmem:[%s401 + $0xb1] sm:$0xff]
        %v578 = vld [vmem:[%s401 + $0xc1] sm:$0xff]
        %v579 = vld [vmem:[%s401 + $0xc9] sm:$0xff]
        %v580 = vld [vmem:[%s401 + $0xd9] sm:$0xff]
        %v581 = vld [vmem:[%s401 + $0xe1] sm:$0xff]
        %v582 = vld [vmem:[%s401 + $0xf1] sm:$0xff]
        %v583 = vld [vmem:[%s401 + $0xf9] sm:$0xff]
        %v584 = vld [vmem:[%s401 + $0x109] sm:$0xff]
        %v585 = vld [vmem:[%s401 + $0x111] sm:$0xff]
        %v586 = vld [vmem:[%s401 + $0x121] sm:$0xff]
        %v587 = vld [vmem:[%s401 + $0x129] sm:$0xff]
        %v588 = vld [vmem:[%s401 + $0x139] sm:$0xff]
        %v589 = vld [vmem:[%s401 + $0x141] sm:$0xff]
        %v590 = vld [vmem:[%s401 + $0x151] sm:$0xff]
        %v591 = vld [vmem:[%s401 + $0x159] sm:$0xff]
        %v592 = vld [vmem:[%s401 + $0x169] sm:$0xff]
        %v593 = vld [vmem:[%s401 + $0x171] sm:$0xff]
        %v594 = vld [vmem:[%s401 + $0x2] sm:$0xff]
        %v595 = vld [vmem:[%s401 + $0xa] sm:$0xff]
        %v596 = vld [vmem:[%s401 + $0x1a] sm:$0xff]
        %v597 = vld [vmem:[%s401 + $0x22] sm:$0xff]
        %v598 = vld [vmem:[%s401 + $0x32] sm:$0xff]
        %v599 = vld [vmem:[%s401 + $0x3a] sm:$0xff]
        %v600 = vld [vmem:[%s401 + $0x4a] sm:$0xff]
        %v601 = vld [vmem:[%s401 + $0x52] sm:$0xff]
        %v602 = vld [vmem:[%s401 + $0x62] sm:$0xff]
        %v603 = vld [vmem:[%s401 + $0x6a] sm:$0xff]
        %v604 = vld [vmem:[%s401 + $0x7a] sm:$0xff]
        %v605 = vld [vmem:[%s401 + $0x82] sm:$0xff]
        %v606 = vld [vmem:[%s401 + $0x92] sm:$0xff]
        %v607 = vld [vmem:[%s401 + $0x9a] sm:$0xff]
        %v608 = vld [vmem:[%s401 + $0xaa] sm:$0xff]
        %v609 = vld [vmem:[%s401 + $0xb2] sm:$0xff]
        %v610 = vld [vmem:[%s401 + $0xc2] sm:$0xff]
        %v611 = vld [vmem:[%s401 + $0xca] sm:$0xff]
        %v612 = vld [vmem:[%s401 + $0xda] sm:$0xff]
        %v613 = vld [vmem:[%s401 + $0xe2] sm:$0xff]
        %v614 = vld [vmem:[%s401 + $0xf2] sm:$0xff]
        %v615 = vld [vmem:[%s401 + $0xfa] sm:$0xff]
        %v616 = vld [vmem:[%s401 + $0x10a] sm:$0xff]
        %v617 = vld [vmem:[%s401 + $0x112] sm:$0xff]
        %v618 = vld [vmem:[%s401 + $0x122] sm:$0xff]
        %v619 = vld [vmem:[%s401 + $0x12a] sm:$0xff]
        %v620 = vld [vmem:[%s401 + $0x13a] sm:$0xff]
        %v621 = vld [vmem:[%s401 + $0x142] sm:$0xff]
        %v622 = vld [vmem:[%s401 + $0x152] sm:$0xff]
        %v623 = vld [vmem:[%s401 + $0x15a] sm:$0xff]
        %v624 = vld [vmem:[%s401 + $0x16a] sm:$0xff]
        %v625 = vld [vmem:[%s401 + $0x172] sm:$0xff]
        %s626 = scalar_lea.vmem [#allocation2], 48
        %v627 = vld [vmem:[%s626] sm:$0xff]
        %v628 = vld [vmem:[%s626 + $0x8] sm:$0xff]
        %v629 = vld [vmem:[%s626 + $0x18] sm:$0xff]
        %v630 = vld [vmem:[%s626 + $0x20] sm:$0xff]
        %v631 = vld [vmem:[%s626 + $0x30] sm:$0xff]
        %v632 = vld [vmem:[%s626 + $0x38] sm:$0xff]
        %v633 = vld [vmem:[%s626 + $0x48] sm:$0xff]
        %v634 = vld [vmem:[%s626 + $0x50] sm:$0xff]
        %v635 = vld [vmem:[%s626 + $0x60] sm:$0xff]
        %v636 = vld [vmem:[%s626 + $0x68] sm:$0xff]
        %v637 = vld [vmem:[%s626 + $0x78] sm:$0xff]
        %v638 = vld [vmem:[%s626 + $0x80] sm:$0xff]
        %v639 = vld [vmem:[%s626 + $0x90] sm:$0xff]
        %v640 = vld [vmem:[%s626 + $0x98] sm:$0xff]
        %v641 = vld [vmem:[%s626 + $0xa8] sm:$0xff]
        %v642 = vld [vmem:[%s626 + $0xb0] sm:$0xff]
        %v643 = vld [vmem:[%s626 + $0xc0] sm:$0xff]
        %v644 = vld [vmem:[%s626 + $0xc8] sm:$0xff]
        %v645 = vld [vmem:[%s626 + $0xd8] sm:$0xff]
        %v646 = vld [vmem:[%s626 + $0xe0] sm:$0xff]
        %v647 = vld [vmem:[%s626 + $0xf0] sm:$0xff]
        %v648 = vld [vmem:[%s626 + $0xf8] sm:$0xff]
        %v649 = vld [vmem:[%s626 + $0x108] sm:$0xff]
        %v650 = vld [vmem:[%s626 + $0x110] sm:$0xff]
        %v651 = vld [vmem:[%s626 + $0x120] sm:$0xff]
        %v652 = vld [vmem:[%s626 + $0x128] sm:$0xff]
        %v653 = vld [vmem:[%s626 + $0x138] sm:$0xff]
        %v654 = vld [vmem:[%s626 + $0x140] sm:$0xff]
        %v655 = vld [vmem:[%s626 + $0x150] sm:$0xff]
        %v656 = vld [vmem:[%s626 + $0x158] sm:$0xff]
        %v657 = vld [vmem:[%s626 + $0x168] sm:$0xff]
        %v658 = vld [vmem:[%s626 + $0x170] sm:$0xff]
        %v659 = vld [vmem:[%s626 + $0x1] sm:$0xff]
        %v660 = vld [vmem:[%s626 + $0x9] sm:$0xff]
        %v661 = vld [vmem:[%s626 + $0x19] sm:$0xff]
        %v662 = vld [vmem:[%s626 + $0x21] sm:$0xff]
        %v663 = vld [vmem:[%s626 + $0x31] sm:$0xff]
        %v664 = vld [vmem:[%s626 + $0x39] sm:$0xff]
        %v665 = vld [vmem:[%s626 + $0x49] sm:$0xff]
        %v666 = vld [vmem:[%s626 + $0x51] sm:$0xff]
        %v667 = vld [vmem:[%s626 + $0x61] sm:$0xff]
        %v668 = vld [vmem:[%s626 + $0x69] sm:$0xff]
        %v669 = vld [vmem:[%s626 + $0x79] sm:$0xff]
        %v670 = vld [vmem:[%s626 + $0x81] sm:$0xff]
        %v671 = vld [vmem:[%s626 + $0x91] sm:$0xff]
        %v672 = vld [vmem:[%s626 + $0x99] sm:$0xff]
        %v673 = vld [vmem:[%s626 + $0xa9] sm:$0xff]
        %v674 = vld [vmem:[%s626 + $0xb1] sm:$0xff]
        %v675 = vld [vmem:[%s626 + $0xc1] sm:$0xff]
        %v676 = vld [vmem:[%s626 + $0xc9] sm:$0xff]
        %v677 = vld [vmem:[%s626 + $0xd9] sm:$0xff]
        %v678 = vld [vmem:[%s626 + $0xe1] sm:$0xff]
        %v679 = vld [vmem:[%s626 + $0xf1] sm:$0xff]
        %v680 = vld [vmem:[%s626 + $0xf9] sm:$0xff]
        %v681 = vld [vmem:[%s626 + $0x109] sm:$0xff]
        %v682 = vld [vmem:[%s626 + $0x111] sm:$0xff]
        %v683 = vld [vmem:[%s626 + $0x121] sm:$0xff]
        %v684 = vld [vmem:[%s626 + $0x129] sm:$0xff]
        %v685 = vld [vmem:[%s626 + $0x139] sm:$0xff]
        %v686 = vld [vmem:[%s626 + $0x141] sm:$0xff]
        %v687 = vld [vmem:[%s626 + $0x151] sm:$0xff]
        %v688 = vld [vmem:[%s626 + $0x159] sm:$0xff]
        %v689 = vld [vmem:[%s626 + $0x169] sm:$0xff]
        %v690 = vld [vmem:[%s626 + $0x171] sm:$0xff]
        %v691 = vld [vmem:[%s626 + $0x2] sm:$0xff]
        %v692 = vld [vmem:[%s626 + $0xa] sm:$0xff]
        %v693 = vld [vmem:[%s626 + $0x1a] sm:$0xff]
        %v694 = vld [vmem:[%s626 + $0x22] sm:$0xff]
        %v695 = vld [vmem:[%s626 + $0x32] sm:$0xff]
        %v696 = vld [vmem:[%s626 + $0x3a] sm:$0xff]
        %v697 = vld [vmem:[%s626 + $0x4a] sm:$0xff]
        %v698 = vld [vmem:[%s626 + $0x52] sm:$0xff]
        %v699 = vld [vmem:[%s626 + $0x62] sm:$0xff]
        %v700 = vld [vmem:[%s626 + $0x6a] sm:$0xff]
        %v701 = vld [vmem:[%s626 + $0x7a] sm:$0xff]
        %v702 = vld [vmem:[%s626 + $0x82] sm:$0xff]
        %v703 = vld [vmem:[%s626 + $0x92] sm:$0xff]
        %v704 = vld [vmem:[%s626 + $0x9a] sm:$0xff]
        %v705 = vld [vmem:[%s626 + $0xaa] sm:$0xff]
        %v706 = vld [vmem:[%s626 + $0xb2] sm:$0xff]
        %v707 = vld [vmem:[%s626 + $0xc2] sm:$0xff]
        %v708 = vld [vmem:[%s626 + $0xca] sm:$0xff]
        %v709 = vld [vmem:[%s626 + $0xda] sm:$0xff]
        %v710 = vld [vmem:[%s626 + $0xe2] sm:$0xff]
        %v711 = vld [vmem:[%s626 + $0xf2] sm:$0xff]
        %v712 = vld [vmem:[%s626 + $0xfa] sm:$0xff]
        %v713 = vld [vmem:[%s626 + $0x10a] sm:$0xff]
        %v714 = vld [vmem:[%s626 + $0x112] sm:$0xff]
        %v715 = vld [vmem:[%s626 + $0x122] sm:$0xff]
        %v716 = vld [vmem:[%s626 + $0x12a] sm:$0xff]
        %v717 = vld [vmem:[%s626 + $0x13a] sm:$0xff]
        %v718 = vld [vmem:[%s626 + $0x142] sm:$0xff]
        %v719 = vld [vmem:[%s626 + $0x152] sm:$0xff]
        %v720 = vld [vmem:[%s626 + $0x15a] sm:$0xff]
        %v721 = vld [vmem:[%s626 + $0x16a] sm:$0xff]
        %v722 = vld [vmem:[%s626 + $0x172] sm:$0xff]
        %755 = vrot.lane.b32.xlu0 %v466, 4
        %v756 = vpop.permute.xlu0 %755
        %757 = vrot.lane.b32.xlu0 %v467, 4
        %v758 = vpop.permute.xlu0 %757
        %759 = vrot.lane.b32.xlu0 %v468, 4
        %v760 = vpop.permute.xlu0 %759
        %761 = vrot.lane.b32.xlu0 %v469, 4
        %v762 = vpop.permute.xlu0 %761
        %763 = vrot.lane.b32.xlu0 %v470, 4
        %v764 = vpop.permute.xlu0 %763
        %765 = vrot.lane.b32.xlu0 %v471, 4
        %v766 = vpop.permute.xlu0 %765
        %767 = vrot.lane.b32.xlu0 %v472, 4
        %v768 = vpop.permute.xlu0 %767
        %769 = vrot.lane.b32.xlu0 %v473, 4
        %v770 = vpop.permute.xlu0 %769
        %771 = vrot.lane.b32.xlu0 %v474, 4
        %v772 = vpop.permute.xlu0 %771
        %773 = vrot.lane.b32.xlu0 %v475, 4
        %v774 = vpop.permute.xlu0 %773
        %775 = vrot.lane.b32.xlu0 %v476, 4
        %v776 = vpop.permute.xlu0 %775
        %777 = vrot.lane.b32.xlu0 %v477, 4
        %v778 = vpop.permute.xlu0 %777
        %779 = vrot.lane.b32.xlu0 %v478, 4
        %v780 = vpop.permute.xlu0 %779
        %781 = vrot.lane.b32.xlu0 %v479, 4
        %v782 = vpop.permute.xlu0 %781
        %783 = vrot.lane.b32.xlu0 %v480, 4
        %v784 = vpop.permute.xlu0 %783
        %785 = vrot.lane.b32.xlu0 %v481, 4
        %v786 = vpop.permute.xlu0 %785
        %787 = vrot.lane.b32.xlu0 %v482, 4
        %v788 = vpop.permute.xlu0 %787
        %789 = vrot.lane.b32.xlu0 %v483, 4
        %v790 = vpop.permute.xlu0 %789
        %791 = vrot.lane.b32.xlu0 %v484, 4
        %v792 = vpop.permute.xlu0 %791
        %793 = vrot.lane.b32.xlu0 %v485, 4
        %v794 = vpop.permute.xlu0 %793
        %795 = vrot.lane.b32.xlu0 %v486, 4
        %v796 = vpop.permute.xlu0 %795
        %797 = vrot.lane.b32.xlu0 %v487, 4
        %v798 = vpop.permute.xlu0 %797
        %799 = vrot.lane.b32.xlu0 %v488, 4
        %v800 = vpop.permute.xlu0 %799
        %801 = vrot.lane.b32.xlu0 %v489, 4
        %v802 = vpop.permute.xlu0 %801
        %803 = vrot.lane.b32.xlu0 %v490, 4
        %v804 = vpop.permute.xlu0 %803
        %805 = vrot.lane.b32.xlu0 %v491, 4
        %v806 = vpop.permute.xlu0 %805
        %807 = vrot.lane.b32.xlu0 %v492, 4
        %v808 = vpop.permute.xlu0 %807
        %809 = vrot.lane.b32.xlu0 %v493, 4
        %v810 = vpop.permute.xlu0 %809
        %811 = vrot.lane.b32.xlu0 %v494, 4
        %v812 = vpop.permute.xlu0 %811
        %813 = vrot.lane.b32.xlu0 %v495, 4
        %v814 = vpop.permute.xlu0 %813
        %815 = vrot.lane.b32.xlu0 %v496, 4
        %v816 = vpop.permute.xlu0 %815
        %817 = vrot.lane.b32.xlu0 %v497, 4
        %v818 = vpop.permute.xlu0 %817
        %883 = vrot.lane.b32.xlu0 %v498, 8
        %v884 = vpop.permute.xlu0 %883
        %885 = vrot.lane.b32.xlu0 %v499, 8
        %v886 = vpop.permute.xlu0 %885
        %887 = vrot.lane.b32.xlu0 %v500, 8
        %v888 = vpop.permute.xlu0 %887
        %889 = vrot.lane.b32.xlu0 %v501, 8
        %v890 = vpop.permute.xlu0 %889
        %891 = vrot.lane.b32.xlu0 %v502, 8
        %v892 = vpop.permute.xlu0 %891
        %893 = vrot.lane.b32.xlu0 %v503, 8
        %v894 = vpop.permute.xlu0 %893
        %895 = vrot.lane.b32.xlu0 %v504, 8
        %v896 = vpop.permute.xlu0 %895
        %897 = vrot.lane.b32.xlu0 %v505, 8
        %v898 = vpop.permute.xlu0 %897
        %899 = vrot.lane.b32.xlu0 %v506, 8
        %v900 = vpop.permute.xlu0 %899
        %901 = vrot.lane.b32.xlu0 %v507, 8
        %v902 = vpop.permute.xlu0 %901
        %903 = vrot.lane.b32.xlu0 %v508, 8
        %v904 = vpop.permute.xlu0 %903
        %905 = vrot.lane.b32.xlu0 %v509, 8
        %v906 = vpop.permute.xlu0 %905
        %907 = vrot.lane.b32.xlu0 %v510, 8
        %v908 = vpop.permute.xlu0 %907
        %909 = vrot.lane.b32.xlu0 %v511, 8
        %v910 = vpop.permute.xlu0 %909
        %911 = vrot.lane.b32.xlu0 %v512, 8
        %v912 = vpop.permute.xlu0 %911
        %913 = vrot.lane.b32.xlu0 %v513, 8
        %v914 = vpop.permute.xlu0 %913
        %915 = vrot.lane.b32.xlu0 %v514, 8
        %v916 = vpop.permute.xlu0 %915
        %917 = vrot.lane.b32.xlu0 %v515, 8
        %v918 = vpop.permute.xlu0 %917
        %919 = vrot.lane.b32.xlu0 %v516, 8
        %v920 = vpop.permute.xlu0 %919
        %921 = vrot.lane.b32.xlu0 %v517, 8
        %v922 = vpop.permute.xlu0 %921
        %923 = vrot.lane.b32.xlu0 %v518, 8
        %v924 = vpop.permute.xlu0 %923
        %925 = vrot.lane.b32.xlu0 %v519, 8
        %v926 = vpop.permute.xlu0 %925
        %927 = vrot.lane.b32.xlu0 %v520, 8
        %v928 = vpop.permute.xlu0 %927
        %929 = vrot.lane.b32.xlu0 %v521, 8
        %v930 = vpop.permute.xlu0 %929
        %931 = vrot.lane.b32.xlu0 %v522, 8
        %v932 = vpop.permute.xlu0 %931
        %933 = vrot.lane.b32.xlu0 %v523, 8
        %v934 = vpop.permute.xlu0 %933
        %935 = vrot.lane.b32.xlu0 %v524, 8
        %v936 = vpop.permute.xlu0 %935
        %937 = vrot.lane.b32.xlu0 %v525, 8
        %v938 = vpop.permute.xlu0 %937
        %939 = vrot.lane.b32.xlu0 %v526, 8
        %v940 = vpop.permute.xlu0 %939
        %941 = vrot.lane.b32.xlu0 %v527, 8
        %v942 = vpop.permute.xlu0 %941
        %943 = vrot.lane.b32.xlu0 %v528, 8
        %v944 = vpop.permute.xlu0 %943
        %945 = vrot.lane.b32.xlu0 %v529, 8
        %v946 = vpop.permute.xlu0 %945
        %1011 = vrot.lane.b32.xlu0 %v530, 12
        %v1012 = vpop.permute.xlu0 %1011
        %1013 = vrot.lane.b32.xlu0 %v531, 12
        %v1014 = vpop.permute.xlu0 %1013
        %1015 = vrot.lane.b32.xlu0 %v532, 12
        %v1016 = vpop.permute.xlu0 %1015
        %1017 = vrot.lane.b32.xlu0 %v533, 12
        %v1018 = vpop.permute.xlu0 %1017
        %1019 = vrot.lane.b32.xlu0 %v534, 12
        %v1020 = vpop.permute.xlu0 %1019
        %1021 = vrot.lane.b32.xlu0 %v535, 12
        %v1022 = vpop.permute.xlu0 %1021
        %1023 = vrot.lane.b32.xlu0 %v536, 12
        %v1024 = vpop.permute.xlu0 %1023
        %1025 = vrot.lane.b32.xlu0 %v537, 12
        %v1026 = vpop.permute.xlu0 %1025
        %1027 = vrot.lane.b32.xlu0 %v538, 12
        %v1028 = vpop.permute.xlu0 %1027
        %1029 = vrot.lane.b32.xlu0 %v539, 12
        %v1030 = vpop.permute.xlu0 %1029
        %1031 = vrot.lane.b32.xlu0 %v540, 12
        %v1032 = vpop.permute.xlu0 %1031
        %1033 = vrot.lane.b32.xlu0 %v541, 12
        %v1034 = vpop.permute.xlu0 %1033
        %1035 = vrot.lane.b32.xlu0 %v542, 12
        %v1036 = vpop.permute.xlu0 %1035
        %1037 = vrot.lane.b32.xlu0 %v543, 12
        %v1038 = vpop.permute.xlu0 %1037
        %1039 = vrot.lane.b32.xlu0 %v544, 12
        %v1040 = vpop.permute.xlu0 %1039
        %1041 = vrot.lane.b32.xlu0 %v545, 12
        %v1042 = vpop.permute.xlu0 %1041
        %1043 = vrot.lane.b32.xlu0 %v546, 12
        %v1044 = vpop.permute.xlu0 %1043
        %1045 = vrot.lane.b32.xlu0 %v547, 12
        %v1046 = vpop.permute.xlu0 %1045
        %1047 = vrot.lane.b32.xlu0 %v548, 12
        %v1048 = vpop.permute.xlu0 %1047
        %1049 = vrot.lane.b32.xlu0 %v549, 12
        %v1050 = vpop.permute.xlu0 %1049
        %1051 = vrot.lane.b32.xlu0 %v550, 12
        %v1052 = vpop.permute.xlu0 %1051
        %1053 = vrot.lane.b32.xlu0 %v551, 12
        %v1054 = vpop.permute.xlu0 %1053
        %1055 = vrot.lane.b32.xlu0 %v552, 12
        %v1056 = vpop.permute.xlu0 %1055
        %1057 = vrot.lane.b32.xlu0 %v553, 12
        %v1058 = vpop.permute.xlu0 %1057
        %1059 = vrot.lane.b32.xlu0 %v554, 12
        %v1060 = vpop.permute.xlu0 %1059
        %1061 = vrot.lane.b32.xlu0 %v555, 12
        %v1062 = vpop.permute.xlu0 %1061
        %1063 = vrot.lane.b32.xlu0 %v556, 12
        %v1064 = vpop.permute.xlu0 %1063
        %1065 = vrot.lane.b32.xlu0 %v557, 12
        %v1066 = vpop.permute.xlu0 %1065
        %1067 = vrot.lane.b32.xlu0 %v558, 12
        %v1068 = vpop.permute.xlu0 %1067
        %1069 = vrot.lane.b32.xlu0 %v559, 12
        %v1070 = vpop.permute.xlu0 %1069
        %1071 = vrot.lane.b32.xlu0 %v560, 12
        %v1072 = vpop.permute.xlu0 %1071
        %1073 = vrot.lane.b32.xlu0 %v561, 12
        %v1074 = vpop.permute.xlu0 %1073
        %1139 = vrot.lane.b32.xlu0 %v562, 16
        %v1140 = vpop.permute.xlu0 %1139
        %1141 = vrot.lane.b32.xlu0 %v563, 16
        %v1142 = vpop.permute.xlu0 %1141
        %1143 = vrot.lane.b32.xlu0 %v564, 16
        %v1144 = vpop.permute.xlu0 %1143
        %1145 = vrot.lane.b32.xlu0 %v565, 16
        %v1146 = vpop.permute.xlu0 %1145
        %1147 = vrot.lane.b32.xlu0 %v566, 16
        %v1148 = vpop.permute.xlu0 %1147
        %1149 = vrot.lane.b32.xlu0 %v567, 16
        %v1150 = vpop.permute.xlu0 %1149
        %1151 = vrot.lane.b32.xlu0 %v568, 16
        %v1152 = vpop.permute.xlu0 %1151
        %1153 = vrot.lane.b32.xlu0 %v569, 16
        %v1154 = vpop.permute.xlu0 %1153
        %1155 = vrot.lane.b32.xlu0 %v570, 16
        %v1156 = vpop.permute.xlu0 %1155
        %1157 = vrot.lane.b32.xlu0 %v571, 16
        %v1158 = vpop.permute.xlu0 %1157
        %1159 = vrot.lane.b32.xlu0 %v572, 16
        %v1160 = vpop.permute.xlu0 %1159
        %1161 = vrot.lane.b32.xlu0 %v573, 16
        %v1162 = vpop.permute.xlu0 %1161
        %1163 = vrot.lane.b32.xlu0 %v574, 16
        %v1164 = vpop.permute.xlu0 %1163
        %1165 = vrot.lane.b32.xlu0 %v575, 16
        %v1166 = vpop.permute.xlu0 %1165
        %1167 = vrot.lane.b32.xlu0 %v576, 16
        %v1168 = vpop.permute.xlu0 %1167
        %1169 = vrot.lane.b32.xlu0 %v577, 16
        %v1170 = vpop.permute.xlu0 %1169
        %1171 = vrot.lane.b32.xlu0 %v578, 16
        %v1172 = vpop.permute.xlu0 %1171
        %1173 = vrot.lane.b32.xlu0 %v579, 16
        %v1174 = vpop.permute.xlu0 %1173
        %1175 = vrot.lane.b32.xlu0 %v580, 16
        %v1176 = vpop.permute.xlu0 %1175
        %1177 = vrot.lane.b32.xlu0 %v581, 16
        %v1178 = vpop.permute.xlu0 %1177
        %1179 = vrot.lane.b32.xlu0 %v582, 16
        %v1180 = vpop.permute.xlu0 %1179
        %1181 = vrot.lane.b32.xlu0 %v583, 16
        %v1182 = vpop.permute.xlu0 %1181
        %1183 = vrot.lane.b32.xlu0 %v584, 16
        %v1184 = vpop.permute.xlu0 %1183
        %1185 = vrot.lane.b32.xlu0 %v585, 16
        %v1186 = vpop.permute.xlu0 %1185
        %1187 = vrot.lane.b32.xlu0 %v586, 16
        %v1188 = vpop.permute.xlu0 %1187
        %1189 = vrot.lane.b32.xlu0 %v587, 16
        %v1190 = vpop.permute.xlu0 %1189
        %1191 = vrot.lane.b32.xlu0 %v588, 16
        %v1192 = vpop.permute.xlu0 %1191
        %1193 = vrot.lane.b32.xlu0 %v589, 16
        %v1194 = vpop.permute.xlu0 %1193
        %1195 = vrot.lane.b32.xlu0 %v590, 16
        %v1196 = vpop.permute.xlu0 %1195
        %1197 = vrot.lane.b32.xlu0 %v591, 16
        %v1198 = vpop.permute.xlu0 %1197
        %1199 = vrot.lane.b32.xlu0 %v592, 16
        %v1200 = vpop.permute.xlu0 %1199
        %1201 = vrot.lane.b32.xlu0 %v593, 16
        %v1202 = vpop.permute.xlu0 %1201
        %1267 = vrot.lane.b32.xlu0 %v594, 20
        %v1268 = vpop.permute.xlu0 %1267
        %1269 = vrot.lane.b32.xlu0 %v595, 20
        %v1270 = vpop.permute.xlu0 %1269
        %1271 = vrot.lane.b32.xlu0 %v596, 20
        %v1272 = vpop.permute.xlu0 %1271
        %1273 = vrot.lane.b32.xlu0 %v597, 20
        %v1274 = vpop.permute.xlu0 %1273
        %1275 = vrot.lane.b32.xlu0 %v598, 20
        %v1276 = vpop.permute.xlu0 %1275
        %1277 = vrot.lane.b32.xlu0 %v599, 20
        %v1278 = vpop.permute.xlu0 %1277
        %1279 = vrot.lane.b32.xlu0 %v600, 20
        %v1280 = vpop.permute.xlu0 %1279
        %1281 = vrot.lane.b32.xlu0 %v601, 20
        %v1282 = vpop.permute.xlu0 %1281
        %1283 = vrot.lane.b32.xlu0 %v602, 20
        %v1284 = vpop.permute.xlu0 %1283
        %1285 = vrot.lane.b32.xlu0 %v603, 20
        %v1286 = vpop.permute.xlu0 %1285
        %1287 = vrot.lane.b32.xlu0 %v604, 20
        %v1288 = vpop.permute.xlu0 %1287
        %1289 = vrot.lane.b32.xlu0 %v605, 20
        %v1290 = vpop.permute.xlu0 %1289
        %1291 = vrot.lane.b32.xlu0 %v606, 20
        %v1292 = vpop.permute.xlu0 %1291
        %1293 = vrot.lane.b32.xlu0 %v607, 20
        %v1294 = vpop.permute.xlu0 %1293
        %1295 = vrot.lane.b32.xlu0 %v608, 20
        %v1296 = vpop.permute.xlu0 %1295
        %1297 = vrot.lane.b32.xlu0 %v609, 20
        %v1298 = vpop.permute.xlu0 %1297
        %1299 = vrot.lane.b32.xlu0 %v610, 20
        %v1300 = vpop.permute.xlu0 %1299
        %1301 = vrot.lane.b32.xlu0 %v611, 20
        %v1302 = vpop.permute.xlu0 %1301
        %1303 = vrot.lane.b32.xlu0 %v612, 20
        %v1304 = vpop.permute.xlu0 %1303
        %1305 = vrot.lane.b32.xlu0 %v613, 20
        %v1306 = vpop.permute.xlu0 %1305
        %1307 = vrot.lane.b32.xlu0 %v614, 20
        %v1308 = vpop.permute.xlu0 %1307
        %1309 = vrot.lane.b32.xlu0 %v615, 20
        %v1310 = vpop.permute.xlu0 %1309
        %1311 = vrot.lane.b32.xlu0 %v616, 20
        %v1312 = vpop.permute.xlu0 %1311
        %1313 = vrot.lane.b32.xlu0 %v617, 20
        %v1314 = vpop.permute.xlu0 %1313
        %1315 = vrot.lane.b32.xlu0 %v618, 20
        %v1316 = vpop.permute.xlu0 %1315
        %1317 = vrot.lane.b32.xlu0 %v619, 20
        %v1318 = vpop.permute.xlu0 %1317
        %1319 = vrot.lane.b32.xlu0 %v620, 20
        %v1320 = vpop.permute.xlu0 %1319
        %1321 = vrot.lane.b32.xlu0 %v621, 20
        %v1322 = vpop.permute.xlu0 %1321
        %1323 = vrot.lane.b32.xlu0 %v622, 20
        %v1324 = vpop.permute.xlu0 %1323
        %1325 = vrot.lane.b32.xlu0 %v623, 20
        %v1326 = vpop.permute.xlu0 %1325
        %1327 = vrot.lane.b32.xlu0 %v624, 20
        %v1328 = vpop.permute.xlu0 %1327
        %1329 = vrot.lane.b32.xlu0 %v625, 20
        %v1330 = vpop.permute.xlu0 %1329
        %1395 = vrot.lane.b32.xlu0 %v627, 24
        %v1396 = vpop.permute.xlu0 %1395
        %1397 = vrot.lane.b32.xlu0 %v628, 24
        %v1398 = vpop.permute.xlu0 %1397
        %1399 = vrot.lane.b32.xlu0 %v629, 24
        %v1400 = vpop.permute.xlu0 %1399
        %1401 = vrot.lane.b32.xlu0 %v630, 24
        %v1402 = vpop.permute.xlu0 %1401
        %1403 = vrot.lane.b32.xlu0 %v631, 24
        %v1404 = vpop.permute.xlu0 %1403
        %1405 = vrot.lane.b32.xlu0 %v632, 24
        %v1406 = vpop.permute.xlu0 %1405
        %1407 = vrot.lane.b32.xlu0 %v633, 24
        %v1408 = vpop.permute.xlu0 %1407
        %1409 = vrot.lane.b32.xlu0 %v634, 24
        %v1410 = vpop.permute.xlu0 %1409
        %1411 = vrot.lane.b32.xlu0 %v635, 24
        %v1412 = vpop.permute.xlu0 %1411
        %1413 = vrot.lane.b32.xlu0 %v636, 24
        %v1414 = vpop.permute.xlu0 %1413
        %1415 = vrot.lane.b32.xlu0 %v637, 24
        %v1416 = vpop.permute.xlu0 %1415
        %1417 = vrot.lane.b32.xlu0 %v638, 24
        %v1418 = vpop.permute.xlu0 %1417
        %1419 = vrot.lane.b32.xlu0 %v639, 24
        %v1420 = vpop.permute.xlu0 %1419
        %1421 = vrot.lane.b32.xlu0 %v640, 24
        %v1422 = vpop.permute.xlu0 %1421
        %1423 = vrot.lane.b32.xlu0 %v641, 24
        %v1424 = vpop.permute.xlu0 %1423
        %1425 = vrot.lane.b32.xlu0 %v642, 24
        %v1426 = vpop.permute.xlu0 %1425
        %1427 = vrot.lane.b32.xlu0 %v643, 24
        %v1428 = vpop.permute.xlu0 %1427
        %1429 = vrot.lane.b32.xlu0 %v644, 24
        %v1430 = vpop.permute.xlu0 %1429
        %1431 = vrot.lane.b32.xlu0 %v645, 24
        %v1432 = vpop.permute.xlu0 %1431
        %1433 = vrot.lane.b32.xlu0 %v646, 24
        %v1434 = vpop.permute.xlu0 %1433
        %1435 = vrot.lane.b32.xlu0 %v647, 24
        %v1436 = vpop.permute.xlu0 %1435
        %1437 = vrot.lane.b32.xlu0 %v648, 24
        %v1438 = vpop.permute.xlu0 %1437
        %1439 = vrot.lane.b32.xlu0 %v649, 24
        %v1440 = vpop.permute.xlu0 %1439
        %1441 = vrot.lane.b32.xlu0 %v650, 24
        %v1442 = vpop.permute.xlu0 %1441
        %1443 = vrot.lane.b32.xlu0 %v651, 24
        %v1444 = vpop.permute.xlu0 %1443
        %1445 = vrot.lane.b32.xlu0 %v652, 24
        %v1446 = vpop.permute.xlu0 %1445
        %1447 = vrot.lane.b32.xlu0 %v653, 24
        %v1448 = vpop.permute.xlu0 %1447
        %1449 = vrot.lane.b32.xlu0 %v654, 24
        %v1450 = vpop.permute.xlu0 %1449
        %1451 = vrot.lane.b32.xlu0 %v655, 24
        %v1452 = vpop.permute.xlu0 %1451
        %1453 = vrot.lane.b32.xlu0 %v656, 24
        %v1454 = vpop.permute.xlu0 %1453
        %1455 = vrot.lane.b32.xlu0 %v657, 24
        %v1456 = vpop.permute.xlu0 %1455
        %1457 = vrot.lane.b32.xlu0 %v658, 24
        %v1458 = vpop.permute.xlu0 %1457
        %1523 = vrot.lane.b32.xlu0 %v659, 28
        %v1524 = vpop.permute.xlu0 %1523
        %1525 = vrot.lane.b32.xlu0 %v660, 28
        %v1526 = vpop.permute.xlu0 %1525
        %1527 = vrot.lane.b32.xlu0 %v661, 28
        %v1528 = vpop.permute.xlu0 %1527
        %1529 = vrot.lane.b32.xlu0 %v662, 28
        %v1530 = vpop.permute.xlu0 %1529
        %1531 = vrot.lane.b32.xlu0 %v663, 28
        %v1532 = vpop.permute.xlu0 %1531
        %1533 = vrot.lane.b32.xlu0 %v664, 28
        %v1534 = vpop.permute.xlu0 %1533
        %1535 = vrot.lane.b32.xlu0 %v665, 28
        %v1536 = vpop.permute.xlu0 %1535
        %1537 = vrot.lane.b32.xlu0 %v666, 28
        %v1538 = vpop.permute.xlu0 %1537
        %1539 = vrot.lane.b32.xlu0 %v667, 28
        %v1540 = vpop.permute.xlu0 %1539
        %1541 = vrot.lane.b32.xlu0 %v668, 28
        %v1542 = vpop.permute.xlu0 %1541
        %1543 = vrot.lane.b32.xlu0 %v669, 28
        %v1544 = vpop.permute.xlu0 %1543
        %1545 = vrot.lane.b32.xlu0 %v670, 28
        %v1546 = vpop.permute.xlu0 %1545
        %1547 = vrot.lane.b32.xlu0 %v671, 28
        %v1548 = vpop.permute.xlu0 %1547
        %1549 = vrot.lane.b32.xlu0 %v672, 28
        %v1550 = vpop.permute.xlu0 %1549
        %1551 = vrot.lane.b32.xlu0 %v673, 28
        %v1552 = vpop.permute.xlu0 %1551
        %1553 = vrot.lane.b32.xlu0 %v674, 28
        %v1554 = vpop.permute.xlu0 %1553
        %1555 = vrot.lane.b32.xlu0 %v675, 28
        %v1556 = vpop.permute.xlu0 %1555
        %1557 = vrot.lane.b32.xlu0 %v676, 28
        %v1558 = vpop.permute.xlu0 %1557
        %1559 = vrot.lane.b32.xlu0 %v677, 28
        %v1560 = vpop.permute.xlu0 %1559
        %1561 = vrot.lane.b32.xlu0 %v678, 28
        %v1562 = vpop.permute.xlu0 %1561
        %1563 = vrot.lane.b32.xlu0 %v679, 28
        %v1564 = vpop.permute.xlu0 %1563
        %1565 = vrot.lane.b32.xlu0 %v680, 28
        %v1566 = vpop.permute.xlu0 %1565
        %1567 = vrot.lane.b32.xlu0 %v681, 28
        %v1568 = vpop.permute.xlu0 %1567
        %1569 = vrot.lane.b32.xlu0 %v682, 28
        %v1570 = vpop.permute.xlu0 %1569
        %1571 = vrot.lane.b32.xlu0 %v683, 28
        %v1572 = vpop.permute.xlu0 %1571
        %1573 = vrot.lane.b32.xlu0 %v684, 28
        %v1574 = vpop.permute.xlu0 %1573
        %1575 = vrot.lane.b32.xlu0 %v685, 28
        %v1576 = vpop.permute.xlu0 %1575
        %1577 = vrot.lane.b32.xlu0 %v686, 28
        %v1578 = vpop.permute.xlu0 %1577
        %1579 = vrot.lane.b32.xlu0 %v687, 28
        %v1580 = vpop.permute.xlu0 %1579
        %1581 = vrot.lane.b32.xlu0 %v688, 28
        %v1582 = vpop.permute.xlu0 %1581
        %1583 = vrot.lane.b32.xlu0 %v689, 28
        %v1584 = vpop.permute.xlu0 %1583
        %1585 = vrot.lane.b32.xlu0 %v690, 28
        %v1586 = vpop.permute.xlu0 %1585
        %1651 = vrot.lane.b32.xlu0 %v691, 32
        %v1652 = vpop.permute.xlu0 %1651
        %1653 = vrot.lane.b32.xlu0 %v692, 32
        %v1654 = vpop.permute.xlu0 %1653
        %1655 = vrot.lane.b32.xlu0 %v693, 32
        %v1656 = vpop.permute.xlu0 %1655
        %1657 = vrot.lane.b32.xlu0 %v694, 32
        %v1658 = vpop.permute.xlu0 %1657
        %1659 = vrot.lane.b32.xlu0 %v695, 32
        %v1660 = vpop.permute.xlu0 %1659
        %1661 = vrot.lane.b32.xlu0 %v696, 32
        %v1662 = vpop.permute.xlu0 %1661
        %1663 = vrot.lane.b32.xlu0 %v697, 32
        %v1664 = vpop.permute.xlu0 %1663
        %1665 = vrot.lane.b32.xlu0 %v698, 32
        %v1666 = vpop.permute.xlu0 %1665
        %1667 = vrot.lane.b32.xlu0 %v699, 32
        %v1668 = vpop.permute.xlu0 %1667
        %1669 = vrot.lane.b32.xlu0 %v700, 32
        %v1670 = vpop.permute.xlu0 %1669
        %1671 = vrot.lane.b32.xlu0 %v701, 32
        %v1672 = vpop.permute.xlu0 %1671
        %1673 = vrot.lane.b32.xlu0 %v702, 32
        %v1674 = vpop.permute.xlu0 %1673
        %1675 = vrot.lane.b32.xlu0 %v703, 32
        %v1676 = vpop.permute.xlu0 %1675
        %1677 = vrot.lane.b32.xlu0 %v704, 32
        %v1678 = vpop.permute.xlu0 %1677
        %1679 = vrot.lane.b32.xlu0 %v705, 32
        %v1680 = vpop.permute.xlu0 %1679
        %1681 = vrot.lane.b32.xlu0 %v706, 32
        %v1682 = vpop.permute.xlu0 %1681
        %1683 = vrot.lane.b32.xlu0 %v707, 32
        %v1684 = vpop.permute.xlu0 %1683
        %1685 = vrot.lane.b32.xlu0 %v708, 32
        %v1686 = vpop.permute.xlu0 %1685
        %1687 = vrot.lane.b32.xlu0 %v709, 32
        %v1688 = vpop.permute.xlu0 %1687
        %1689 = vrot.lane.b32.xlu0 %v710, 32
        %v1690 = vpop.permute.xlu0 %1689
        %1691 = vrot.lane.b32.xlu0 %v711, 32
        %v1692 = vpop.permute.xlu0 %1691
        %1693 = vrot.lane.b32.xlu0 %v712, 32
        %v1694 = vpop.permute.xlu0 %1693
        %1695 = vrot.lane.b32.xlu0 %v713, 32
        %v1696 = vpop.permute.xlu0 %1695
        %1697 = vrot.lane.b32.xlu0 %v714, 32
        %v1698 = vpop.permute.xlu0 %1697
        %1699 = vrot.lane.b32.xlu0 %v715, 32
        %v1700 = vpop.permute.xlu0 %1699
        %1701 = vrot.lane.b32.xlu0 %v716, 32
        %v1702 = vpop.permute.xlu0 %1701
        %1703 = vrot.lane.b32.xlu0 %v717, 32
        %v1704 = vpop.permute.xlu0 %1703
        %1705 = vrot.lane.b32.xlu0 %v718, 32
        %v1706 = vpop.permute.xlu0 %1705
        %1707 = vrot.lane.b32.xlu0 %v719, 32
        %v1708 = vpop.permute.xlu0 %1707
        %1709 = vrot.lane.b32.xlu0 %v720, 32
        %v1710 = vpop.permute.xlu0 %1709
        %1711 = vrot.lane.b32.xlu0 %v721, 32
        %v1712 = vpop.permute.xlu0 %1711
        %1713 = vrot.lane.b32.xlu0 %v722, 32
        %v1714 = vpop.permute.xlu0 %1713
        %v1747 = vsel %vm277, %v434, %v756
        %v1748 = vsel %vm277, %v435, %v758
        %v1749 = vsel %vm277, %v436, %v760
        %v1750 = vsel %vm277, %v437, %v762
        %v1751 = vsel %vm277, %v438, %v764
        %v1752 = vsel %vm277, %v439, %v766
        %v1753 = vsel %vm277, %v440, %v768
        %v1754 = vsel %vm277, %v441, %v770
        %v1755 = vsel %vm277, %v442, %v772
        %v1756 = vsel %vm277, %v443, %v774
        %v1757 = vsel %vm277, %v444, %v776
        %v1758 = vsel %vm277, %v445, %v778
        %v1759 = vsel %vm277, %v446, %v780
        %v1760 = vsel %vm277, %v447, %v782
        %v1761 = vsel %vm277, %v448, %v784
        %v1762 = vsel %vm277, %v449, %v786
        %v1763 = vsel %vm277, %v450, %v788
        %v1764 = vsel %vm277, %v451, %v790
        %v1765 = vsel %vm277, %v452, %v792
        %v1766 = vsel %vm277, %v453, %v794
        %v1767 = vsel %vm277, %v454, %v796
        %v1768 = vsel %vm277, %v455, %v798
        %v1769 = vsel %vm277, %v456, %v800
        %v1770 = vsel %vm277, %v457, %v802
        %v1771 = vsel %vm277, %v458, %v804
        %v1772 = vsel %vm277, %v459, %v806
        %v1773 = vsel %vm277, %v460, %v808
        %v1774 = vsel %vm277, %v461, %v810
        %v1775 = vsel %vm277, %v462, %v812
        %v1776 = vsel %vm277, %v463, %v814
        %v1777 = vsel %vm277, %v464, %v816
        %v1778 = vsel %vm277, %v465, %v818
        %v1779 = vsel %vm323, %v1747, %v884
        %v1780 = vsel %vm323, %v1748, %v886
        %v1781 = vsel %vm323, %v1749, %v888
        %v1782 = vsel %vm323, %v1750, %v890
        %v1783 = vsel %vm323, %v1751, %v892
        %v1784 = vsel %vm323, %v1752, %v894
        %v1785 = vsel %vm323, %v1753, %v896
        %v1786 = vsel %vm323, %v1754, %v898
        %v1787 = vsel %vm323, %v1755, %v900
        %v1788 = vsel %vm323, %v1756, %v902
        %v1789 = vsel %vm323, %v1757, %v904
        %v1790 = vsel %vm323, %v1758, %v906
        %v1791 = vsel %vm323, %v1759, %v908
        %v1792 = vsel %vm323, %v1760, %v910
        %v1793 = vsel %vm323, %v1761, %v912
        %v1794 = vsel %vm323, %v1762, %v914
        %v1795 = vsel %vm323, %v1763, %v916
        %v1796 = vsel %vm323, %v1764, %v918
        %v1797 = vsel %vm323, %v1765, %v920
        %v1798 = vsel %vm323, %v1766, %v922
        %v1799 = vsel %vm323, %v1767, %v924
        %v1800 = vsel %vm323, %v1768, %v926
        %v1801 = vsel %vm323, %v1769, %v928
        %v1802 = vsel %vm323, %v1770, %v930
        %v1803 = vsel %vm323, %v1771, %v932
        %v1804 = vsel %vm323, %v1772, %v934
        %v1805 = vsel %vm323, %v1773, %v936
        %v1806 = vsel %vm323, %v1774, %v938
        %v1807 = vsel %vm323, %v1775, %v940
        %v1808 = vsel %vm323, %v1776, %v942
        %v1809 = vsel %vm323, %v1777, %v944
        %v1810 = vsel %vm323, %v1778, %v946
        %vm1811 = vcmask 97280
        %v1812 = vsel %vm1811, %v1779, %v1012
        %v1813 = vsel %vm1811, %v1780, %v1014
        %v1814 = vsel %vm1811, %v1781, %v1016
        %v1815 = vsel %vm1811, %v1782, %v1018
        %v1816 = vsel %vm1811, %v1783, %v1020
        %v1817 = vsel %vm1811, %v1784, %v1022
        %v1818 = vsel %vm1811, %v1785, %v1024
        %v1819 = vsel %vm1811, %v1786, %v1026
        %v1820 = vsel %vm1811, %v1787, %v1028
        %v1821 = vsel %vm1811, %v1788, %v1030
        %v1822 = vsel %vm1811, %v1789, %v1032
        %v1823 = vsel %vm1811, %v1790, %v1034
        %v1824 = vsel %vm1811, %v1791, %v1036
        %v1825 = vsel %vm1811, %v1792, %v1038
        %v1826 = vsel %vm1811, %v1793, %v1040
        %v1827 = vsel %vm1811, %v1794, %v1042
        %v1828 = vsel %vm1811, %v1795, %v1044
        %v1829 = vsel %vm1811, %v1796, %v1046
        %v1830 = vsel %vm1811, %v1797, %v1048
        %v1831 = vsel %vm1811, %v1798, %v1050
        %v1832 = vsel %vm1811, %v1799, %v1052
        %v1833 = vsel %vm1811, %v1800, %v1054
        %v1834 = vsel %vm1811, %v1801, %v1056
        %v1835 = vsel %vm1811, %v1802, %v1058
        %v1836 = vsel %vm1811, %v1803, %v1060
        %v1837 = vsel %vm1811, %v1804, %v1062
        %v1838 = vsel %vm1811, %v1805, %v1064
        %v1839 = vsel %vm1811, %v1806, %v1066
        %v1840 = vsel %vm1811, %v1807, %v1068
        %v1841 = vsel %vm1811, %v1808, %v1070
        %v1842 = vsel %vm1811, %v1809, %v1072
        %v1843 = vsel %vm1811, %v1810, %v1074
        %vm1844 = vcmask 130048
        %v1845 = vsel %vm1844, %v1812, %v1140
        %v1846 = vsel %vm1844, %v1813, %v1142
        %v1847 = vsel %vm1844, %v1814, %v1144
        %v1848 = vsel %vm1844, %v1815, %v1146
        %v1849 = vsel %vm1844, %v1816, %v1148
        %v1850 = vsel %vm1844, %v1817, %v1150
        %v1851 = vsel %vm1844, %v1818, %v1152
        %v1852 = vsel %vm1844, %v1819, %v1154
        %v1853 = vsel %vm1844, %v1820, %v1156
        %v1854 = vsel %vm1844, %v1821, %v1158
        %v1855 = vsel %vm1844, %v1822, %v1160
        %v1856 = vsel %vm1844, %v1823, %v1162
        %v1857 = vsel %vm1844, %v1824, %v1164
        %v1858 = vsel %vm1844, %v1825, %v1166
        %v1859 = vsel %vm1844, %v1826, %v1168
        %v1860 = vsel %vm1844, %v1827, %v1170
        %v1861 = vsel %vm1844, %v1828, %v1172
        %v1862 = vsel %vm1844, %v1829, %v1174
        %v1863 = vsel %vm1844, %v1830, %v1176
        %v1864 = vsel %vm1844, %v1831, %v1178
        %v1865 = vsel %vm1844, %v1832, %v1180
        %v1866 = vsel %vm1844, %v1833, %v1182
        %v1867 = vsel %vm1844, %v1834, %v1184
        %v1868 = vsel %vm1844, %v1835, %v1186
        %v1869 = vsel %vm1844, %v1836, %v1188
        %v1870 = vsel %vm1844, %v1837, %v1190
        %v1871 = vsel %vm1844, %v1838, %v1192
        %v1872 = vsel %vm1844, %v1839, %v1194
        %v1873 = vsel %vm1844, %v1840, %v1196
        %v1874 = vsel %vm1844, %v1841, %v1198
        %v1875 = vsel %vm1844, %v1842, %v1200
        %v1876 = vsel %vm1844, %v1843, %v1202
        %vm1877 = vcmask 162816
        %v1878 = vsel %vm1877, %v1845, %v1268
        %v1879 = vsel %vm1877, %v1846, %v1270
        %v1880 = vsel %vm1877, %v1847, %v1272
        %v1881 = vsel %vm1877, %v1848, %v1274
        %v1882 = vsel %vm1877, %v1849, %v1276
        %v1883 = vsel %vm1877, %v1850, %v1278
        %v1884 = vsel %vm1877, %v1851, %v1280
        %v1885 = vsel %vm1877, %v1852, %v1282
        %v1886 = vsel %vm1877, %v1853, %v1284
        %v1887 = vsel %vm1877, %v1854, %v1286
        %v1888 = vsel %vm1877, %v1855, %v1288
        %v1889 = vsel %vm1877, %v1856, %v1290
        %v1890 = vsel %vm1877, %v1857, %v1292
        %v1891 = vsel %vm1877, %v1858, %v1294
        %v1892 = vsel %vm1877, %v1859, %v1296
        %v1893 = vsel %vm1877, %v1860, %v1298
        %v1894 = vsel %vm1877, %v1861, %v1300
        %v1895 = vsel %vm1877, %v1862, %v1302
        %v1896 = vsel %vm1877, %v1863, %v1304
        %v1897 = vsel %vm1877, %v1864, %v1306
        %v1898 = vsel %vm1877, %v1865, %v1308
        %v1899 = vsel %vm1877, %v1866, %v1310
        %v1900 = vsel %vm1877, %v1867, %v1312
        %v1901 = vsel %vm1877, %v1868, %v1314
        %v1902 = vsel %vm1877, %v1869, %v1316
        %v1903 = vsel %vm1877, %v1870, %v1318
        %v1904 = vsel %vm1877, %v1871, %v1320
        %v1905 = vsel %vm1877, %v1872, %v1322
        %v1906 = vsel %vm1877, %v1873, %v1324
        %v1907 = vsel %vm1877, %v1874, %v1326
        %v1908 = vsel %vm1877, %v1875, %v1328
        %v1909 = vsel %vm1877, %v1876, %v1330
        %vm1910 = vcmask 195584
        %v1911 = vsel %vm1910, %v1878, %v1396
        %v1912 = vsel %vm1910, %v1879, %v1398
        %v1913 = vsel %vm1910, %v1880, %v1400
        %v1914 = vsel %vm1910, %v1881, %v1402
        %v1915 = vsel %vm1910, %v1882, %v1404
        %v1916 = vsel %vm1910, %v1883, %v1406
        %v1917 = vsel %vm1910, %v1884, %v1408
        %v1918 = vsel %vm1910, %v1885, %v1410
        %v1919 = vsel %vm1910, %v1886, %v1412
        %v1920 = vsel %vm1910, %v1887, %v1414
        %v1921 = vsel %vm1910, %v1888, %v1416
        %v1922 = vsel %vm1910, %v1889, %v1418
        %v1923 = vsel %vm1910, %v1890, %v1420
        %v1924 = vsel %vm1910, %v1891, %v1422
        %v1925 = vsel %vm1910, %v1892, %v1424
        %v1926 = vsel %vm1910, %v1893, %v1426
        %v1927 = vsel %vm1910, %v1894, %v1428
        %v1928 = vsel %vm1910, %v1895, %v1430
        %v1929 = vsel %vm1910, %v1896, %v1432
        %v1930 = vsel %vm1910, %v1897, %v1434
        %v1931 = vsel %vm1910, %v1898, %v1436
        %v1932 = vsel %vm1910, %v1899, %v1438
        %v1933 = vsel %vm1910, %v1900, %v1440
        %v1934 = vsel %vm1910, %v1901, %v1442
        %v1935 = vsel %vm1910, %v1902, %v1444
        %v1936 = vsel %vm1910, %v1903, %v1446
        %v1937 = vsel %vm1910, %v1904, %v1448
        %v1938 = vsel %vm1910, %v1905, %v1450
        %v1939 = vsel %vm1910, %v1906, %v1452
        %v1940 = vsel %vm1910, %v1907, %v1454
        %v1941 = vsel %vm1910, %v1908, %v1456
        %v1942 = vsel %vm1910, %v1909, %v1458
        %vm1943 = vcmask 228352
        %v1944 = vsel %vm1943, %v1911, %v1524
        %v1945 = vsel %vm1943, %v1912, %v1526
        %v1946 = vsel %vm1943, %v1913, %v1528
        %v1947 = vsel %vm1943, %v1914, %v1530
        %v1948 = vsel %vm1943, %v1915, %v1532
        %v1949 = vsel %vm1943, %v1916, %v1534
        %v1950 = vsel %vm1943, %v1917, %v1536
        %v1951 = vsel %vm1943, %v1918, %v1538
        %v1952 = vsel %vm1943, %v1919, %v1540
        %v1953 = vsel %vm1943, %v1920, %v1542
        %v1954 = vsel %vm1943, %v1921, %v1544
        %v1955 = vsel %vm1943, %v1922, %v1546
        %v1956 = vsel %vm1943, %v1923, %v1548
        %v1957 = vsel %vm1943, %v1924, %v1550
        %v1958 = vsel %vm1943, %v1925, %v1552
        %v1959 = vsel %vm1943, %v1926, %v1554
        %v1960 = vsel %vm1943, %v1927, %v1556
        %v1961 = vsel %vm1943, %v1928, %v1558
        %v1962 = vsel %vm1943, %v1929, %v1560
        %v1963 = vsel %vm1943, %v1930, %v1562
        %v1964 = vsel %vm1943, %v1931, %v1564
        %v1965 = vsel %vm1943, %v1932, %v1566
        %v1966 = vsel %vm1943, %v1933, %v1568
        %v1967 = vsel %vm1943, %v1934, %v1570
        %v1968 = vsel %vm1943, %v1935, %v1572
        %v1969 = vsel %vm1943, %v1936, %v1574
        %v1970 = vsel %vm1943, %v1937, %v1576
        %v1971 = vsel %vm1943, %v1938, %v1578
        %v1972 = vsel %vm1943, %v1939, %v1580
        %v1973 = vsel %vm1943, %v1940, %v1582
        %v1974 = vsel %vm1943, %v1941, %v1584
        %v1975 = vsel %vm1943, %v1942, %v1586
        %vm1976 = vcmask 261120
        %v1977 = vsel %vm1976, %v1944, %v1652
        %v1978 = vsel %vm1976, %v1945, %v1654
        %v1979 = vsel %vm1976, %v1946, %v1656
        %v1980 = vsel %vm1976, %v1947, %v1658
        %v1981 = vsel %vm1976, %v1948, %v1660
        %v1982 = vsel %vm1976, %v1949, %v1662
        %v1983 = vsel %vm1976, %v1950, %v1664
        %v1984 = vsel %vm1976, %v1951, %v1666
        %v1985 = vsel %vm1976, %v1952, %v1668
        %v1986 = vsel %vm1976, %v1953, %v1670
        %v1987 = vsel %vm1976, %v1954, %v1672
        %v1988 = vsel %vm1976, %v1955, %v1674
        %v1989 = vsel %vm1976, %v1956, %v1676
        %v1990 = vsel %vm1976, %v1957, %v1678
        %v1991 = vsel %vm1976, %v1958, %v1680
        %v1992 = vsel %vm1976, %v1959, %v1682
        %v1993 = vsel %vm1976, %v1960, %v1684
        %v1994 = vsel %vm1976, %v1961, %v1686
        %v1995 = vsel %vm1976, %v1962, %v1688
        %v1996 = vsel %vm1976, %v1963, %v1690
        %v1997 = vsel %vm1976, %v1964, %v1692
        %v1998 = vsel %vm1976, %v1965, %v1694
        %v1999 = vsel %vm1976, %v1966, %v1696
        %v2000 = vsel %vm1976, %v1967, %v1698
        %v2001 = vsel %vm1976, %v1968, %v1700
        %v2002 = vsel %vm1976, %v1969, %v1702
        %v2003 = vsel %vm1976, %v1970, %v1704
        %v2004 = vsel %vm1976, %v1971, %v1706
        %v2005 = vsel %vm1976, %v1972, %v1708
        %v2006 = vsel %vm1976, %v1973, %v1710
        %v2007 = vsel %vm1976, %v1974, %v1712
        %v2008 = vsel %vm1976, %v1975, %v1714
        %v2009 = vld [vmem:[%s1] sm:$0xff]
        %v2010 = vld [vmem:[%s1 + $0x8] sm:$0xff]
        %v2011 = vld [vmem:[%s1 + $0x10] sm:$0xff]
        %v2012 = vld [vmem:[%s1 + $0x18] sm:$0xff]
        %v2013 = vld [vmem:[%s1 + $0x20] sm:$0xf]
        %vm2014 = vcmask 293888
        %v2016 = vsel %vm2014, %v1977, 0
        %v2019 = vsel %vm2014, %v1978, 0
        %v2022 = vsel %vm2014, %v1979, 0
        %v2025 = vsel %vm2014, %v1980, 0
        %v2028 = vsel %vm2014, %v1981, 0
        %v2031 = vsel %vm2014, %v1982, 0
        %v2034 = vsel %vm2014, %v1983, 0
        %v2037 = vsel %vm2014, %v1984, 0
        %v2040 = vsel %vm2014, %v1985, 0
        %v2043 = vsel %vm2014, %v1986, 0
        %v2046 = vsel %vm2014, %v1987, 0
        %v2049 = vsel %vm2014, %v1988, 0
        %v2052 = vsel %vm2014, %v1989, 0
        %v2055 = vsel %vm2014, %v1990, 0
        %v2058 = vsel %vm2014, %v1991, 0
        %v2061 = vsel %vm2014, %v1992, 0
        %v2064 = vsel %vm2014, %v1993, 0
        %v2067 = vsel %vm2014, %v1994, 0
        %v2070 = vsel %vm2014, %v1995, 0
        %v2073 = vsel %vm2014, %v1996, 0
        %v2076 = vsel %vm2014, %v1997, 0
        %v2079 = vsel %vm2014, %v1998, 0
        %v2082 = vsel %vm2014, %v1999, 0
        %v2085 = vsel %vm2014, %v2000, 0
        %v2088 = vsel %vm2014, %v2001, 0
        %v2091 = vsel %vm2014, %v2002, 0
        %v2094 = vsel %vm2014, %v2003, 0
        %v2097 = vsel %vm2014, %v2004, 0
        %v2100 = vsel %vm2014, %v2005, 0
        %v2103 = vsel %vm2014, %v2006, 0
        %v2106 = vsel %vm2014, %v2007, 0
        %v2109 = vsel %vm2014, %v2008, 0
        %vm2111 = vcmask 1043456
        %v2113 = vsel %vm2111, %v2013, 0
        %2115 = vmatpush.msra.mxu0 0.0
        %2116 = vmatpush.msra.mxu0 0.0
        %2117 = vmatpush.msra.mxu0 0.0
        %2118 = vmatpush.msra.mxu0 0.0
        %2119 = vmatpush.msra.mxu0 0.0
        %2120 = vmatpush.msra.mxu0 0.0
        %2121 = vmatpush.msra.mxu0 0.0
        %2122 = vmatpush.msra.mxu0 0.0
        %2123 = vmatpush.msra.mxu0 0.0
        %2124 = vmatpush.msra.mxu0 0.0
        %2125 = vmatpush.msra.mxu0 0.0
        %2126 = vmatpush.msra.mxu0 %v2113
        %2127 = vmatpush.msra.mxu0 %v2012
        %2128 = vmatpush.msra.mxu0 %v2011
        %2129 = vmatpush.msra.mxu0 %v2010
        %2130 = vmatpush.msra.mxu0 %v2009
        %2131 = vmatmul.f32.gmra.mxu0 %v2016
        %v2132 = vpop.f32.mrf.mxu0
        %v2133 = vadd.f32 0.0, %v2132
        %2134 = vmatmul.f32.gmra.mxu0 %v2019
        %v2135 = vpop.f32.mrf.mxu0
        %v2136 = vadd.f32 0.0, %v2135
        %2137 = vmatmul.f32.gmra.mxu0 %v2022
        %v2138 = vpop.f32.mrf.mxu0
        %v2139 = vadd.f32 0.0, %v2138
        %2140 = vmatmul.f32.gmra.mxu0 %v2025
        %v2141 = vpop.f32.mrf.mxu0
        %v2142 = vadd.f32 0.0, %v2141
        %2143 = vmatmul.f32.gmra.mxu0 %v2028
        %v2144 = vpop.f32.mrf.mxu0
        %v2145 = vadd.f32 0.0, %v2144
        %2146 = vmatmul.f32.gmra.mxu0 %v2031
        %v2147 = vpop.f32.mrf.mxu0
        %v2148 = vadd.f32 0.0, %v2147
        %2149 = vmatmul.f32.gmra.mxu0 %v2034
        %v2150 = vpop.f32.mrf.mxu0
        %v2151 = vadd.f32 0.0, %v2150
        %2152 = vmatmul.f32.gmra.mxu0 %v2037
        %v2153 = vpop.f32.mrf.mxu0
        %v2154 = vadd.f32 0.0, %v2153
        %2155 = vmatmul.f32.gmra.mxu0 %v2040
        %v2156 = vpop.f32.mrf.mxu0
        %v2157 = vadd.f32 0.0, %v2156
        %2158 = vmatmul.f32.gmra.mxu0 %v2043
        %v2159 = vpop.f32.mrf.mxu0
        %v2160 = vadd.f32 0.0, %v2159
        %2161 = vmatmul.f32.gmra.mxu0 %v2046
        %v2162 = vpop.f32.mrf.mxu0
        %v2163 = vadd.f32 0.0, %v2162
        %2164 = vmatmul.f32.gmra.mxu0 %v2049
        %v2165 = vpop.f32.mrf.mxu0
        %v2166 = vadd.f32 0.0, %v2165
        %2167 = vmatmul.f32.gmra.mxu0 %v2052
        %v2168 = vpop.f32.mrf.mxu0
        %v2169 = vadd.f32 0.0, %v2168
        %2170 = vmatmul.f32.gmra.mxu0 %v2055
        %v2171 = vpop.f32.mrf.mxu0
        %v2172 = vadd.f32 0.0, %v2171
        %2173 = vmatmul.f32.gmra.mxu0 %v2058
        %v2174 = vpop.f32.mrf.mxu0
        %v2175 = vadd.f32 0.0, %v2174
        %2176 = vmatmul.f32.gmra.mxu0 %v2061
        %v2177 = vpop.f32.mrf.mxu0
        %v2178 = vadd.f32 0.0, %v2177
        %2179 = vmatmul.f32.gmra.mxu0 %v2064
        %v2180 = vpop.f32.mrf.mxu0
        %v2181 = vadd.f32 0.0, %v2180
        %2182 = vmatmul.f32.gmra.mxu0 %v2067
        %v2183 = vpop.f32.mrf.mxu0
        %v2184 = vadd.f32 0.0, %v2183
        %2185 = vmatmul.f32.gmra.mxu0 %v2070
        %v2186 = vpop.f32.mrf.mxu0
        %v2187 = vadd.f32 0.0, %v2186
        %2188 = vmatmul.f32.gmra.mxu0 %v2073
        %v2189 = vpop.f32.mrf.mxu0
        %v2190 = vadd.f32 0.0, %v2189
        %2191 = vmatmul.f32.gmra.mxu0 %v2076
        %v2192 = vpop.f32.mrf.mxu0
        %v2193 = vadd.f32 0.0, %v2192
        %2194 = vmatmul.f32.gmra.mxu0 %v2079
        %v2195 = vpop.f32.mrf.mxu0
        %v2196 = vadd.f32 0.0, %v2195
        %2197 = vmatmul.f32.gmra.mxu0 %v2082
        %v2198 = vpop.f32.mrf.mxu0
        %v2199 = vadd.f32 0.0, %v2198
        %2200 = vmatmul.f32.gmra.mxu0 %v2085
        %v2201 = vpop.f32.mrf.mxu0
        %v2202 = vadd.f32 0.0, %v2201
        %2203 = vmatmul.f32.gmra.mxu0 %v2088
        %v2204 = vpop.f32.mrf.mxu0
        %v2205 = vadd.f32 0.0, %v2204
        %2206 = vmatmul.f32.gmra.mxu0 %v2091
        %v2207 = vpop.f32.mrf.mxu0
        %v2208 = vadd.f32 0.0, %v2207
        %2209 = vmatmul.f32.gmra.mxu0 %v2094
        %v2210 = vpop.f32.mrf.mxu0
        %v2211 = vadd.f32 0.0, %v2210
        %2212 = vmatmul.f32.gmra.mxu0 %v2097
        %v2213 = vpop.f32.mrf.mxu0
        %v2214 = vadd.f32 0.0, %v2213
        %2215 = vmatmul.f32.gmra.mxu0 %v2100
        %v2216 = vpop.f32.mrf.mxu0
        %v2217 = vadd.f32 0.0, %v2216
        %2218 = vmatmul.f32.gmra.mxu0 %v2103
        %v2219 = vpop.f32.mrf.mxu0
        %v2220 = vadd.f32 0.0, %v2219
        %2221 = vmatmul.f32.gmra.mxu0 %v2106
        %v2222 = vpop.f32.mrf.mxu0
        %v2223 = vadd.f32 0.0, %v2222
        %2224 = vmatmul.f32.gmra.mxu0 %v2109
        %v2225 = vpop.f32.mrf.mxu0
        %v2226 = vadd.f32 0.0, %v2225
        %2227 = vdwg.mxu0
        %v2228 = vld [vmem:[%s2] sm:$0x1]
        %v2230 = vperm.slane %v2228, 0
        %v2232 = vmul.f32 %v2133, %v2230
        %v2233 = vmul.f32 %v2136, %v2230
        %v2234 = vmul.f32 %v2139, %v2230
        %v2235 = vmul.f32 %v2142, %v2230
        %v2236 = vmul.f32 %v2145, %v2230
        %v2237 = vmul.f32 %v2148, %v2230
        %v2238 = vmul.f32 %v2151, %v2230
        %v2239 = vmul.f32 %v2154, %v2230
        %v2240 = vmul.f32 %v2157, %v2230
        %v2241 = vmul.f32 %v2160, %v2230
        %v2242 = vmul.f32 %v2163, %v2230
        %v2243 = vmul.f32 %v2166, %v2230
        %v2244 = vmul.f32 %v2169, %v2230
        %v2245 = vmul.f32 %v2172, %v2230
        %v2246 = vmul.f32 %v2175, %v2230
        %v2247 = vmul.f32 %v2178, %v2230
        %v2248 = vmul.f32 %v2181, %v2230
        %v2249 = vmul.f32 %v2184, %v2230
        %v2250 = vmul.f32 %v2187, %v2230
        %v2251 = vmul.f32 %v2190, %v2230
        %v2252 = vmul.f32 %v2193, %v2230
        %v2253 = vmul.f32 %v2196, %v2230
        %v2254 = vmul.f32 %v2199, %v2230
        %v2255 = vmul.f32 %v2202, %v2230
        %v2256 = vmul.f32 %v2205, %v2230
        %v2257 = vmul.f32 %v2208, %v2230
        %v2258 = vmul.f32 %v2211, %v2230
        %v2259 = vmul.f32 %v2214, %v2230
        %v2260 = vmul.f32 %v2217, %v2230
        %v2261 = vmul.f32 %v2220, %v2230
        %v2262 = vmul.f32 %v2223, %v2230
        %v2263 = vmul.f32 %v2226, %v2230
        %v2264 = vld [vmem:[%s3] sm:$0x1]
        %v2266 = vperm.slane %v2264, 0
        %v2268 = vadd.f32 %v2232, %v2266
        %v2269 = vadd.f32 %v2233, %v2266
        %v2270 = vadd.f32 %v2234, %v2266
        %v2271 = vadd.f32 %v2235, %v2266
        %v2272 = vadd.f32 %v2236, %v2266
        %v2273 = vadd.f32 %v2237, %v2266
        %v2274 = vadd.f32 %v2238, %v2266
        %v2275 = vadd.f32 %v2239, %v2266
        %v2276 = vadd.f32 %v2240, %v2266
        %v2277 = vadd.f32 %v2241, %v2266
        %v2278 = vadd.f32 %v2242, %v2266
        %v2279 = vadd.f32 %v2243, %v2266
        %v2280 = vadd.f32 %v2244, %v2266
        %v2281 = vadd.f32 %v2245, %v2266
        %v2282 = vadd.f32 %v2246, %v2266
        %v2283 = vadd.f32 %v2247, %v2266
        %v2284 = vadd.f32 %v2248, %v2266
        %v2285 = vadd.f32 %v2249, %v2266
        %v2286 = vadd.f32 %v2250, %v2266
        %v2287 = vadd.f32 %v2251, %v2266
        %v2288 = vadd.f32 %v2252, %v2266
        %v2289 = vadd.f32 %v2253, %v2266
        %v2290 = vadd.f32 %v2254, %v2266
        %v2291 = vadd.f32 %v2255, %v2266
        %v2292 = vadd.f32 %v2256, %v2266
        %v2293 = vadd.f32 %v2257, %v2266
        %v2294 = vadd.f32 %v2258, %v2266
        %v2295 = vadd.f32 %v2259, %v2266
        %v2296 = vadd.f32 %v2260, %v2266
        %v2297 = vadd.f32 %v2261, %v2266
        %v2298 = vadd.f32 %v2262, %v2266
        %v2299 = vadd.f32 %v2263, %v2266
        %v2300 = vmax.f32 %v2268, 0.0
        %v2301 = vmax.f32 %v2269, 0.0
        %v2302 = vmax.f32 %v2270, 0.0
        %v2303 = vmax.f32 %v2271, 0.0
        %v2304 = vmax.f32 %v2272, 0.0
        %v2305 = vmax.f32 %v2273, 0.0
        %v2306 = vmax.f32 %v2274, 0.0
        %v2307 = vmax.f32 %v2275, 0.0
        %v2308 = vmax.f32 %v2276, 0.0
        %v2309 = vmax.f32 %v2277, 0.0
        %v2310 = vmax.f32 %v2278, 0.0
        %v2311 = vmax.f32 %v2279, 0.0
        %v2312 = vmax.f32 %v2280, 0.0
        %v2313 = vmax.f32 %v2281, 0.0
        %v2314 = vmax.f32 %v2282, 0.0
        %v2315 = vmax.f32 %v2283, 0.0
        %v2316 = vmax.f32 %v2284, 0.0
        %v2317 = vmax.f32 %v2285, 0.0
        %v2318 = vmax.f32 %v2286, 0.0
        %v2319 = vmax.f32 %v2287, 0.0
        %v2320 = vmax.f32 %v2288, 0.0
        %v2321 = vmax.f32 %v2289, 0.0
        %v2322 = vmax.f32 %v2290, 0.0
        %v2323 = vmax.f32 %v2291, 0.0
        %v2324 = vmax.f32 %v2292, 0.0
        %v2325 = vmax.f32 %v2293, 0.0
        %v2326 = vmax.f32 %v2294, 0.0
        %v2327 = vmax.f32 %v2295, 0.0
        %v2328 = vmax.f32 %v2296, 0.0
        %v2329 = vmax.f32 %v2297, 0.0
        %v2330 = vmax.f32 %v2298, 0.0
        %v2331 = vmax.f32 %v2299, 0.0
        %s2332 = scalar_lea.vmem [#allocation3], 24
        %2333 = vst.msk [vmem:[%s2332 + $0x1] sm:$0xff] %vm323, %v2300
        %2334 = vst.msk [vmem:[%s2332 + $0x9] sm:$0xff] %vm323, %v2301
        %2335 = vst.msk [vmem:[%s2332 + $0x19] sm:$0xff] %vm323, %v2302
        %2336 = vst.msk [vmem:[%s2332 + $0x21] sm:$0xff] %vm323, %v2303
        %2337 = vst.msk [vmem:[%s2332 + $0x31] sm:$0xff] %vm323, %v2304
        %2338 = vst.msk [vmem:[%s2332 + $0x39] sm:$0xff] %vm323, %v2305
        %2339 = vst.msk [vmem:[%s2332 + $0x49] sm:$0xff] %vm323, %v2306
        %2340 = vst.msk [vmem:[%s2332 + $0x51] sm:$0xff] %vm323, %v2307
        %2341 = vst.msk [vmem:[%s2332 + $0x61] sm:$0xff] %vm323, %v2308
        %2342 = vst.msk [vmem:[%s2332 + $0x69] sm:$0xff] %vm323, %v2309
        %2343 = vst.msk [vmem:[%s2332 + $0x79] sm:$0xff] %vm323, %v2310
        %2344 = vst.msk [vmem:[%s2332 + $0x81] sm:$0xff] %vm323, %v2311
        %2345 = vst.msk [vmem:[%s2332 + $0x91] sm:$0xff] %vm323, %v2312
        %2346 = vst.msk [vmem:[%s2332 + $0x99] sm:$0xff] %vm323, %v2313
        %2347 = vst.msk [vmem:[%s2332 + $0xa9] sm:$0xff] %vm323, %v2314
        %2348 = vst.msk [vmem:[%s2332 + $0xb1] sm:$0xff] %vm323, %v2315
        %2349 = vst.msk [vmem:[%s2332 + $0xc1] sm:$0xff] %vm323, %v2316
        %2350 = vst.msk [vmem:[%s2332 + $0xc9] sm:$0xff] %vm323, %v2317
        %2351 = vst.msk [vmem:[%s2332 + $0xd9] sm:$0xff] %vm323, %v2318
        %2352 = vst.msk [vmem:[%s2332 + $0xe1] sm:$0xff] %vm323, %v2319
        %2353 = vst.msk [vmem:[%s2332 + $0xf1] sm:$0xff] %vm323, %v2320
        %2354 = vst.msk [vmem:[%s2332 + $0xf9] sm:$0xff] %vm323, %v2321
        %2355 = vst.msk [vmem:[%s2332 + $0x109] sm:$0xff] %vm323, %v2322
        %2356 = vst.msk [vmem:[%s2332 + $0x111] sm:$0xff] %vm323, %v2323
        %2357 = vst.msk [vmem:[%s2332 + $0x121] sm:$0xff] %vm323, %v2324
        %2358 = vst.msk [vmem:[%s2332 + $0x129] sm:$0xff] %vm323, %v2325
        %2359 = vst.msk [vmem:[%s2332 + $0x139] sm:$0xff] %vm323, %v2326
        %2360 = vst.msk [vmem:[%s2332 + $0x141] sm:$0xff] %vm323, %v2327
        %2361 = vst.msk [vmem:[%s2332 + $0x151] sm:$0xff] %vm323, %v2328
        %2362 = vst.msk [vmem:[%s2332 + $0x159] sm:$0xff] %vm323, %v2329
        %2363 = vst.msk [vmem:[%s2332 + $0x169] sm:$0xff] %vm323, %v2330
        %2364 = vst.msk [vmem:[%s2332 + $0x171] sm:$0xff] %vm323, %v2331
        %v2365 = vld [vmem:[#allocation3] sm:$0xff]
        %v2366 = vld [vmem:[#allocation3 + $0x8] sm:$0xff]
        %v2367 = vld [vmem:[#allocation3 + $0x18] sm:$0xff]
        %v2368 = vld [vmem:[#allocation3 + $0x20] sm:$0xff]
        %v2369 = vld [vmem:[#allocation3 + $0x30] sm:$0xff]
        %v2370 = vld [vmem:[#allocation3 + $0x38] sm:$0xff]
        %v2371 = vld [vmem:[#allocation3 + $0x48] sm:$0xff]
        %v2372 = vld [vmem:[#allocation3 + $0x50] sm:$0xff]
        %v2373 = vld [vmem:[#allocation3 + $0x60] sm:$0xff]
        %v2374 = vld [vmem:[#allocation3 + $0x68] sm:$0xff]
        %v2375 = vld [vmem:[#allocation3 + $0x78] sm:$0xff]
        %v2376 = vld [vmem:[#allocation3 + $0x80] sm:$0xff]
        %v2377 = vld [vmem:[#allocation3 + $0x90] sm:$0xff]
        %v2378 = vld [vmem:[#allocation3 + $0x98] sm:$0xff]
        %v2379 = vld [vmem:[#allocation3 + $0xa8] sm:$0xff]
        %v2380 = vld [vmem:[#allocation3 + $0xb0] sm:$0xff]
        %v2381 = vld [vmem:[#allocation3 + $0xc0] sm:$0xff]
        %v2382 = vld [vmem:[#allocation3 + $0xc8] sm:$0xff]
        %v2383 = vld [vmem:[#allocation3 + $0xd8] sm:$0xff]
        %v2384 = vld [vmem:[#allocation3 + $0xe0] sm:$0xff]
        %v2385 = vld [vmem:[#allocation3 + $0xf0] sm:$0xff]
        %v2386 = vld [vmem:[#allocation3 + $0xf8] sm:$0xff]
        %v2387 = vld [vmem:[#allocation3 + $0x108] sm:$0xff]
        %v2388 = vld [vmem:[#allocation3 + $0x110] sm:$0xff]
        %v2389 = vld [vmem:[#allocation3 + $0x120] sm:$0xff]
        %v2390 = vld [vmem:[#allocation3 + $0x128] sm:$0xff]
        %v2391 = vld [vmem:[#allocation3 + $0x138] sm:$0xff]
        %v2392 = vld [vmem:[#allocation3 + $0x140] sm:$0xff]
        %v2393 = vld [vmem:[#allocation3 + $0x150] sm:$0xff]
        %v2394 = vld [vmem:[#allocation3 + $0x158] sm:$0xff]
        %v2395 = vld [vmem:[#allocation3 + $0x168] sm:$0xff]
        %v2396 = vld [vmem:[#allocation3 + $0x170] sm:$0xff]
        %v2397 = vld [vmem:[#allocation3 + $0x1] sm:$0xff]
        %v2398 = vld [vmem:[#allocation3 + $0x9] sm:$0xff]
        %v2399 = vld [vmem:[#allocation3 + $0x19] sm:$0xff]
        %v2400 = vld [vmem:[#allocation3 + $0x21] sm:$0xff]
        %v2401 = vld [vmem:[#allocation3 + $0x31] sm:$0xff]
        %v2402 = vld [vmem:[#allocation3 + $0x39] sm:$0xff]
        %v2403 = vld [vmem:[#allocation3 + $0x49] sm:$0xff]
        %v2404 = vld [vmem:[#allocation3 + $0x51] sm:$0xff]
        %v2405 = vld [vmem:[#allocation3 + $0x61] sm:$0xff]
        %v2406 = vld [vmem:[#allocation3 + $0x69] sm:$0xff]
        %v2407 = vld [vmem:[#allocation3 + $0x79] sm:$0xff]
        %v2408 = vld [vmem:[#allocation3 + $0x81] sm:$0xff]
        %v2409 = vld [vmem:[#allocation3 + $0x91] sm:$0xff]
        %v2410 = vld [vmem:[#allocation3 + $0x99] sm:$0xff]
        %v2411 = vld [vmem:[#allocation3 + $0xa9] sm:$0xff]
        %v2412 = vld [vmem:[#allocation3 + $0xb1] sm:$0xff]
        %v2413 = vld [vmem:[#allocation3 + $0xc1] sm:$0xff]
        %v2414 = vld [vmem:[#allocation3 + $0xc9] sm:$0xff]
        %v2415 = vld [vmem:[#allocation3 + $0xd9] sm:$0xff]
        %v2416 = vld [vmem:[#allocation3 + $0xe1] sm:$0xff]
        %v2417 = vld [vmem:[#allocation3 + $0xf1] sm:$0xff]
        %v2418 = vld [vmem:[#allocation3 + $0xf9] sm:$0xff]
        %v2419 = vld [vmem:[#allocation3 + $0x109] sm:$0xff]
        %v2420 = vld [vmem:[#allocation3 + $0x111] sm:$0xff]
        %v2421 = vld [vmem:[#allocation3 + $0x121] sm:$0xff]
        %v2422 = vld [vmem:[#allocation3 + $0x129] sm:$0xff]
        %v2423 = vld [vmem:[#allocation3 + $0x139] sm:$0xff]
        %v2424 = vld [vmem:[#allocation3 + $0x141] sm:$0xff]
        %v2425 = vld [vmem:[#allocation3 + $0x151] sm:$0xff]
        %v2426 = vld [vmem:[#allocation3 + $0x159] sm:$0xff]
        %v2427 = vld [vmem:[#allocation3 + $0x169] sm:$0xff]
        %v2428 = vld [vmem:[#allocation3 + $0x171] sm:$0xff]
        %v2429 = vld [vmem:[#allocation3 + $0x2] sm:$0xff]
        %v2430 = vld [vmem:[#allocation3 + $0xa] sm:$0xff]
        %v2431 = vld [vmem:[#allocation3 + $0x1a] sm:$0xff]
        %v2432 = vld [vmem:[#allocation3 + $0x22] sm:$0xff]
        %v2433 = vld [vmem:[#allocation3 + $0x32] sm:$0xff]
        %v2434 = vld [vmem:[#allocation3 + $0x3a] sm:$0xff]
        %v2435 = vld [vmem:[#allocation3 + $0x4a] sm:$0xff]
        %v2436 = vld [vmem:[#allocation3 + $0x52] sm:$0xff]
        %v2437 = vld [vmem:[#allocation3 + $0x62] sm:$0xff]
        %v2438 = vld [vmem:[#allocation3 + $0x6a] sm:$0xff]
        %v2439 = vld [vmem:[#allocation3 + $0x7a] sm:$0xff]
        %v2440 = vld [vmem:[#allocation3 + $0x82] sm:$0xff]
        %v2441 = vld [vmem:[#allocation3 + $0x92] sm:$0xff]
        %v2442 = vld [vmem:[#allocation3 + $0x9a] sm:$0xff]
        %v2443 = vld [vmem:[#allocation3 + $0xaa] sm:$0xff]
        %v2444 = vld [vmem:[#allocation3 + $0xb2] sm:$0xff]
        %v2445 = vld [vmem:[#allocation3 + $0xc2] sm:$0xff]
        %v2446 = vld [vmem:[#allocation3 + $0xca] sm:$0xff]
        %v2447 = vld [vmem:[#allocation3 + $0xda] sm:$0xff]
        %v2448 = vld [vmem:[#allocation3 + $0xe2] sm:$0xff]
        %v2449 = vld [vmem:[#allocation3 + $0xf2] sm:$0xff]
        %v2450 = vld [vmem:[#allocation3 + $0xfa] sm:$0xff]
        %v2451 = vld [vmem:[#allocation3 + $0x10a] sm:$0xff]
        %v2452 = vld [vmem:[#allocation3 + $0x112] sm:$0xff]
        %v2453 = vld [vmem:[#allocation3 + $0x122] sm:$0xff]
        %v2454 = vld [vmem:[#allocation3 + $0x12a] sm:$0xff]
        %v2455 = vld [vmem:[#allocation3 + $0x13a] sm:$0xff]
        %v2456 = vld [vmem:[#allocation3 + $0x142] sm:$0xff]
        %v2457 = vld [vmem:[#allocation3 + $0x152] sm:$0xff]
        %v2458 = vld [vmem:[#allocation3 + $0x15a] sm:$0xff]
        %v2459 = vld [vmem:[#allocation3 + $0x16a] sm:$0xff]
        %v2460 = vld [vmem:[#allocation3 + $0x172] sm:$0xff]
        %v2461 = vld [vmem:[%s2332] sm:$0xff]
        %v2462 = vld [vmem:[%s2332 + $0x8] sm:$0xff]
        %v2463 = vld [vmem:[%s2332 + $0x18] sm:$0xff]
        %v2464 = vld [vmem:[%s2332 + $0x20] sm:$0xff]
        %v2465 = vld [vmem:[%s2332 + $0x30] sm:$0xff]
        %v2466 = vld [vmem:[%s2332 + $0x38] sm:$0xff]
        %v2467 = vld [vmem:[%s2332 + $0x48] sm:$0xff]
        %v2468 = vld [vmem:[%s2332 + $0x50] sm:$0xff]
        %v2469 = vld [vmem:[%s2332 + $0x60] sm:$0xff]
        %v2470 = vld [vmem:[%s2332 + $0x68] sm:$0xff]
        %v2471 = vld [vmem:[%s2332 + $0x78] sm:$0xff]
        %v2472 = vld [vmem:[%s2332 + $0x80] sm:$0xff]
        %v2473 = vld [vmem:[%s2332 + $0x90] sm:$0xff]
        %v2474 = vld [vmem:[%s2332 + $0x98] sm:$0xff]
        %v2475 = vld [vmem:[%s2332 + $0xa8] sm:$0xff]
        %v2476 = vld [vmem:[%s2332 + $0xb0] sm:$0xff]
        %v2477 = vld [vmem:[%s2332 + $0xc0] sm:$0xff]
        %v2478 = vld [vmem:[%s2332 + $0xc8] sm:$0xff]
        %v2479 = vld [vmem:[%s2332 + $0xd8] sm:$0xff]
        %v2480 = vld [vmem:[%s2332 + $0xe0] sm:$0xff]
        %v2481 = vld [vmem:[%s2332 + $0xf0] sm:$0xff]
        %v2482 = vld [vmem:[%s2332 + $0xf8] sm:$0xff]
        %v2483 = vld [vmem:[%s2332 + $0x108] sm:$0xff]
        %v2484 = vld [vmem:[%s2332 + $0x110] sm:$0xff]
        %v2485 = vld [vmem:[%s2332 + $0x120] sm:$0xff]
        %v2486 = vld [vmem:[%s2332 + $0x128] sm:$0xff]
        %v2487 = vld [vmem:[%s2332 + $0x138] sm:$0xff]
        %v2488 = vld [vmem:[%s2332 + $0x140] sm:$0xff]
        %v2489 = vld [vmem:[%s2332 + $0x150] sm:$0xff]
        %v2490 = vld [vmem:[%s2332 + $0x158] sm:$0xff]
        %v2491 = vld [vmem:[%s2332 + $0x168] sm:$0xff]
        %v2492 = vld [vmem:[%s2332 + $0x170] sm:$0xff]
        %v2493 = vld [vmem:[%s2332 + $0x1] sm:$0xff]
        %v2494 = vld [vmem:[%s2332 + $0x9] sm:$0xff]
        %v2495 = vld [vmem:[%s2332 + $0x19] sm:$0xff]
        %v2496 = vld [vmem:[%s2332 + $0x21] sm:$0xff]
        %v2497 = vld [vmem:[%s2332 + $0x31] sm:$0xff]
        %v2498 = vld [vmem:[%s2332 + $0x39] sm:$0xff]
        %v2499 = vld [vmem:[%s2332 + $0x49] sm:$0xff]
        %v2500 = vld [vmem:[%s2332 + $0x51] sm:$0xff]
        %v2501 = vld [vmem:[%s2332 + $0x61] sm:$0xff]
        %v2502 = vld [vmem:[%s2332 + $0x69] sm:$0xff]
        %v2503 = vld [vmem:[%s2332 + $0x79] sm:$0xff]
        %v2504 = vld [vmem:[%s2332 + $0x81] sm:$0xff]
        %v2505 = vld [vmem:[%s2332 + $0x91] sm:$0xff]
        %v2506 = vld [vmem:[%s2332 + $0x99] sm:$0xff]
        %v2507 = vld [vmem:[%s2332 + $0xa9] sm:$0xff]
        %v2508 = vld [vmem:[%s2332 + $0xb1] sm:$0xff]
        %v2509 = vld [vmem:[%s2332 + $0xc1] sm:$0xff]
        %v2510 = vld [vmem:[%s2332 + $0xc9] sm:$0xff]
        %v2511 = vld [vmem:[%s2332 + $0xd9] sm:$0xff]
        %v2512 = vld [vmem:[%s2332 + $0xe1] sm:$0xff]
        %v2513 = vld [vmem:[%s2332 + $0xf1] sm:$0xff]
        %v2514 = vld [vmem:[%s2332 + $0xf9] sm:$0xff]
        %v2515 = vld [vmem:[%s2332 + $0x109] sm:$0xff]
        %v2516 = vld [vmem:[%s2332 + $0x111] sm:$0xff]
        %v2517 = vld [vmem:[%s2332 + $0x121] sm:$0xff]
        %v2518 = vld [vmem:[%s2332 + $0x129] sm:$0xff]
        %v2519 = vld [vmem:[%s2332 + $0x139] sm:$0xff]
        %v2520 = vld [vmem:[%s2332 + $0x141] sm:$0xff]
        %v2521 = vld [vmem:[%s2332 + $0x151] sm:$0xff]
        %v2522 = vld [vmem:[%s2332 + $0x159] sm:$0xff]
        %v2523 = vld [vmem:[%s2332 + $0x169] sm:$0xff]
        %v2524 = vld [vmem:[%s2332 + $0x171] sm:$0xff]
        %v2525 = vld [vmem:[%s2332 + $0x2] sm:$0xff]
        %v2526 = vld [vmem:[%s2332 + $0xa] sm:$0xff]
        %v2527 = vld [vmem:[%s2332 + $0x1a] sm:$0xff]
        %v2528 = vld [vmem:[%s2332 + $0x22] sm:$0xff]
        %v2529 = vld [vmem:[%s2332 + $0x32] sm:$0xff]
        %v2530 = vld [vmem:[%s2332 + $0x3a] sm:$0xff]
        %v2531 = vld [vmem:[%s2332 + $0x4a] sm:$0xff]
        %v2532 = vld [vmem:[%s2332 + $0x52] sm:$0xff]
        %v2533 = vld [vmem:[%s2332 + $0x62] sm:$0xff]
        %v2534 = vld [vmem:[%s2332 + $0x6a] sm:$0xff]
        %v2535 = vld [vmem:[%s2332 + $0x7a] sm:$0xff]
        %v2536 = vld [vmem:[%s2332 + $0x82] sm:$0xff]
        %v2537 = vld [vmem:[%s2332 + $0x92] sm:$0xff]
        %v2538 = vld [vmem:[%s2332 + $0x9a] sm:$0xff]
        %v2539 = vld [vmem:[%s2332 + $0xaa] sm:$0xff]
        %v2540 = vld [vmem:[%s2332 + $0xb2] sm:$0xff]
        %v2541 = vld [vmem:[%s2332 + $0xc2] sm:$0xff]
        %v2542 = vld [vmem:[%s2332 + $0xca] sm:$0xff]
        %v2543 = vld [vmem:[%s2332 + $0xda] sm:$0xff]
        %v2544 = vld [vmem:[%s2332 + $0xe2] sm:$0xff]
        %v2545 = vld [vmem:[%s2332 + $0xf2] sm:$0xff]
        %v2546 = vld [vmem:[%s2332 + $0xfa] sm:$0xff]
        %v2547 = vld [vmem:[%s2332 + $0x10a] sm:$0xff]
        %v2548 = vld [vmem:[%s2332 + $0x112] sm:$0xff]
        %v2549 = vld [vmem:[%s2332 + $0x122] sm:$0xff]
        %v2550 = vld [vmem:[%s2332 + $0x12a] sm:$0xff]
        %v2551 = vld [vmem:[%s2332 + $0x13a] sm:$0xff]
        %v2552 = vld [vmem:[%s2332 + $0x142] sm:$0xff]
        %v2553 = vld [vmem:[%s2332 + $0x152] sm:$0xff]
        %v2554 = vld [vmem:[%s2332 + $0x15a] sm:$0xff]
        %v2555 = vld [vmem:[%s2332 + $0x16a] sm:$0xff]
        %v2556 = vld [vmem:[%s2332 + $0x172] sm:$0xff]
        %s2557 = scalar_lea.vmem [#allocation3], 48
        %v2558 = vld [vmem:[%s2557] sm:$0xff]
        %v2559 = vld [vmem:[%s2557 + $0x8] sm:$0xff]
        %v2560 = vld [vmem:[%s2557 + $0x18] sm:$0xff]
        %v2561 = vld [vmem:[%s2557 + $0x20] sm:$0xff]
        %v2562 = vld [vmem:[%s2557 + $0x30] sm:$0xff]
        %v2563 = vld [vmem:[%s2557 + $0x38] sm:$0xff]
        %v2564 = vld [vmem:[%s2557 + $0x48] sm:$0xff]
        %v2565 = vld [vmem:[%s2557 + $0x50] sm:$0xff]
        %v2566 = vld [vmem:[%s2557 + $0x60] sm:$0xff]
        %v2567 = vld [vmem:[%s2557 + $0x68] sm:$0xff]
        %v2568 = vld [vmem:[%s2557 + $0x78] sm:$0xff]
        %v2569 = vld [vmem:[%s2557 + $0x80] sm:$0xff]
        %v2570 = vld [vmem:[%s2557 + $0x90] sm:$0xff]
        %v2571 = vld [vmem:[%s2557 + $0x98] sm:$0xff]
        %v2572 = vld [vmem:[%s2557 + $0xa8] sm:$0xff]
        %v2573 = vld [vmem:[%s2557 + $0xb0] sm:$0xff]
        %v2574 = vld [vmem:[%s2557 + $0xc0] sm:$0xff]
        %v2575 = vld [vmem:[%s2557 + $0xc8] sm:$0xff]
        %v2576 = vld [vmem:[%s2557 + $0xd8] sm:$0xff]
        %v2577 = vld [vmem:[%s2557 + $0xe0] sm:$0xff]
        %v2578 = vld [vmem:[%s2557 + $0xf0] sm:$0xff]
        %v2579 = vld [vmem:[%s2557 + $0xf8] sm:$0xff]
        %v2580 = vld [vmem:[%s2557 + $0x108] sm:$0xff]
        %v2581 = vld [vmem:[%s2557 + $0x110] sm:$0xff]
        %v2582 = vld [vmem:[%s2557 + $0x120] sm:$0xff]
        %v2583 = vld [vmem:[%s2557 + $0x128] sm:$0xff]
        %v2584 = vld [vmem:[%s2557 + $0x138] sm:$0xff]
        %v2585 = vld [vmem:[%s2557 + $0x140] sm:$0xff]
        %v2586 = vld [vmem:[%s2557 + $0x150] sm:$0xff]
        %v2587 = vld [vmem:[%s2557 + $0x158] sm:$0xff]
        %v2588 = vld [vmem:[%s2557 + $0x168] sm:$0xff]
        %v2589 = vld [vmem:[%s2557 + $0x170] sm:$0xff]
        %v2590 = vld [vmem:[%s2557 + $0x1] sm:$0xff]
        %v2591 = vld [vmem:[%s2557 + $0x9] sm:$0xff]
        %v2592 = vld [vmem:[%s2557 + $0x19] sm:$0xff]
        %v2593 = vld [vmem:[%s2557 + $0x21] sm:$0xff]
        %v2594 = vld [vmem:[%s2557 + $0x31] sm:$0xff]
        %v2595 = vld [vmem:[%s2557 + $0x39] sm:$0xff]
        %v2596 = vld [vmem:[%s2557 + $0x49] sm:$0xff]
        %v2597 = vld [vmem:[%s2557 + $0x51] sm:$0xff]
        %v2598 = vld [vmem:[%s2557 + $0x61] sm:$0xff]
        %v2599 = vld [vmem:[%s2557 + $0x69] sm:$0xff]
        %v2600 = vld [vmem:[%s2557 + $0x79] sm:$0xff]
        %v2601 = vld [vmem:[%s2557 + $0x81] sm:$0xff]
        %v2602 = vld [vmem:[%s2557 + $0x91] sm:$0xff]
        %v2603 = vld [vmem:[%s2557 + $0x99] sm:$0xff]
        %v2604 = vld [vmem:[%s2557 + $0xa9] sm:$0xff]
        %v2605 = vld [vmem:[%s2557 + $0xb1] sm:$0xff]
        %v2606 = vld [vmem:[%s2557 + $0xc1] sm:$0xff]
        %v2607 = vld [vmem:[%s2557 + $0xc9] sm:$0xff]
        %v2608 = vld [vmem:[%s2557 + $0xd9] sm:$0xff]
        %v2609 = vld [vmem:[%s2557 + $0xe1] sm:$0xff]
        %v2610 = vld [vmem:[%s2557 + $0xf1] sm:$0xff]
        %v2611 = vld [vmem:[%s2557 + $0xf9] sm:$0xff]
        %v2612 = vld [vmem:[%s2557 + $0x109] sm:$0xff]
        %v2613 = vld [vmem:[%s2557 + $0x111] sm:$0xff]
        %v2614 = vld [vmem:[%s2557 + $0x121] sm:$0xff]
        %v2615 = vld [vmem:[%s2557 + $0x129] sm:$0xff]
        %v2616 = vld [vmem:[%s2557 + $0x139] sm:$0xff]
        %v2617 = vld [vmem:[%s2557 + $0x141] sm:$0xff]
        %v2618 = vld [vmem:[%s2557 + $0x151] sm:$0xff]
        %v2619 = vld [vmem:[%s2557 + $0x159] sm:$0xff]
        %v2620 = vld [vmem:[%s2557 + $0x169] sm:$0xff]
        %v2621 = vld [vmem:[%s2557 + $0x171] sm:$0xff]
        %v2622 = vld [vmem:[%s2557 + $0x2] sm:$0xff]
        %v2623 = vld [vmem:[%s2557 + $0xa] sm:$0xff]
        %v2624 = vld [vmem:[%s2557 + $0x1a] sm:$0xff]
        %v2625 = vld [vmem:[%s2557 + $0x22] sm:$0xff]
        %v2626 = vld [vmem:[%s2557 + $0x32] sm:$0xff]
        %v2627 = vld [vmem:[%s2557 + $0x3a] sm:$0xff]
        %v2628 = vld [vmem:[%s2557 + $0x4a] sm:$0xff]
        %v2629 = vld [vmem:[%s2557 + $0x52] sm:$0xff]
        %v2630 = vld [vmem:[%s2557 + $0x62] sm:$0xff]
        %v2631 = vld [vmem:[%s2557 + $0x6a] sm:$0xff]
        %v2632 = vld [vmem:[%s2557 + $0x7a] sm:$0xff]
        %v2633 = vld [vmem:[%s2557 + $0x82] sm:$0xff]
        %v2634 = vld [vmem:[%s2557 + $0x92] sm:$0xff]
        %v2635 = vld [vmem:[%s2557 + $0x9a] sm:$0xff]
        %v2636 = vld [vmem:[%s2557 + $0xaa] sm:$0xff]
        %v2637 = vld [vmem:[%s2557 + $0xb2] sm:$0xff]
        %v2638 = vld [vmem:[%s2557 + $0xc2] sm:$0xff]
        %v2639 = vld [vmem:[%s2557 + $0xca] sm:$0xff]
        %v2640 = vld [vmem:[%s2557 + $0xda] sm:$0xff]
        %v2641 = vld [vmem:[%s2557 + $0xe2] sm:$0xff]
        %v2642 = vld [vmem:[%s2557 + $0xf2] sm:$0xff]
        %v2643 = vld [vmem:[%s2557 + $0xfa] sm:$0xff]
        %v2644 = vld [vmem:[%s2557 + $0x10a] sm:$0xff]
        %v2645 = vld [vmem:[%s2557 + $0x112] sm:$0xff]
        %v2646 = vld [vmem:[%s2557 + $0x122] sm:$0xff]
        %v2647 = vld [vmem:[%s2557 + $0x12a] sm:$0xff]
        %v2648 = vld [vmem:[%s2557 + $0x13a] sm:$0xff]
        %v2649 = vld [vmem:[%s2557 + $0x142] sm:$0xff]
        %v2650 = vld [vmem:[%s2557 + $0x152] sm:$0xff]
        %v2651 = vld [vmem:[%s2557 + $0x15a] sm:$0xff]
        %v2652 = vld [vmem:[%s2557 + $0x16a] sm:$0xff]
        %v2653 = vld [vmem:[%s2557 + $0x172] sm:$0xff]
        %2686 = vrot.lane.b32.xlu0 %v2397, 8
        %v2687 = vpop.permute.xlu0 %2686
        %2688 = vrot.lane.b32.xlu0 %v2398, 8
        %v2689 = vpop.permute.xlu0 %2688
        %2690 = vrot.lane.b32.xlu0 %v2399, 8
        %v2691 = vpop.permute.xlu0 %2690
        %2692 = vrot.lane.b32.xlu0 %v2400, 8
        %v2693 = vpop.permute.xlu0 %2692
        %2694 = vrot.lane.b32.xlu0 %v2401, 8
        %v2695 = vpop.permute.xlu0 %2694
        %2696 = vrot.lane.b32.xlu0 %v2402, 8
        %v2697 = vpop.permute.xlu0 %2696
        %2698 = vrot.lane.b32.xlu0 %v2403, 8
        %v2699 = vpop.permute.xlu0 %2698
        %2700 = vrot.lane.b32.xlu0 %v2404, 8
        %v2701 = vpop.permute.xlu0 %2700
        %2702 = vrot.lane.b32.xlu0 %v2405, 8
        %v2703 = vpop.permute.xlu0 %2702
        %2704 = vrot.lane.b32.xlu0 %v2406, 8
        %v2705 = vpop.permute.xlu0 %2704
        %2706 = vrot.lane.b32.xlu0 %v2407, 8
        %v2707 = vpop.permute.xlu0 %2706
        %2708 = vrot.lane.b32.xlu0 %v2408, 8
        %v2709 = vpop.permute.xlu0 %2708
        %2710 = vrot.lane.b32.xlu0 %v2409, 8
        %v2711 = vpop.permute.xlu0 %2710
        %2712 = vrot.lane.b32.xlu0 %v2410, 8
        %v2713 = vpop.permute.xlu0 %2712
        %2714 = vrot.lane.b32.xlu0 %v2411, 8
        %v2715 = vpop.permute.xlu0 %2714
        %2716 = vrot.lane.b32.xlu0 %v2412, 8
        %v2717 = vpop.permute.xlu0 %2716
        %2718 = vrot.lane.b32.xlu0 %v2413, 8
        %v2719 = vpop.permute.xlu0 %2718
        %2720 = vrot.lane.b32.xlu0 %v2414, 8
        %v2721 = vpop.permute.xlu0 %2720
        %2722 = vrot.lane.b32.xlu0 %v2415, 8
        %v2723 = vpop.permute.xlu0 %2722
        %2724 = vrot.lane.b32.xlu0 %v2416, 8
        %v2725 = vpop.permute.xlu0 %2724
        %2726 = vrot.lane.b32.xlu0 %v2417, 8
        %v2727 = vpop.permute.xlu0 %2726
        %2728 = vrot.lane.b32.xlu0 %v2418, 8
        %v2729 = vpop.permute.xlu0 %2728
        %2730 = vrot.lane.b32.xlu0 %v2419, 8
        %v2731 = vpop.permute.xlu0 %2730
        %2732 = vrot.lane.b32.xlu0 %v2420, 8
        %v2733 = vpop.permute.xlu0 %2732
        %2734 = vrot.lane.b32.xlu0 %v2421, 8
        %v2735 = vpop.permute.xlu0 %2734
        %2736 = vrot.lane.b32.xlu0 %v2422, 8
        %v2737 = vpop.permute.xlu0 %2736
        %2738 = vrot.lane.b32.xlu0 %v2423, 8
        %v2739 = vpop.permute.xlu0 %2738
        %2740 = vrot.lane.b32.xlu0 %v2424, 8
        %v2741 = vpop.permute.xlu0 %2740
        %2742 = vrot.lane.b32.xlu0 %v2425, 8
        %v2743 = vpop.permute.xlu0 %2742
        %2744 = vrot.lane.b32.xlu0 %v2426, 8
        %v2745 = vpop.permute.xlu0 %2744
        %2746 = vrot.lane.b32.xlu0 %v2427, 8
        %v2747 = vpop.permute.xlu0 %2746
        %2748 = vrot.lane.b32.xlu0 %v2428, 8
        %v2749 = vpop.permute.xlu0 %2748
        %2814 = vrot.lane.b32.xlu0 %v2429, 16
        %v2815 = vpop.permute.xlu0 %2814
        %2816 = vrot.lane.b32.xlu0 %v2430, 16
        %v2817 = vpop.permute.xlu0 %2816
        %2818 = vrot.lane.b32.xlu0 %v2431, 16
        %v2819 = vpop.permute.xlu0 %2818
        %2820 = vrot.lane.b32.xlu0 %v2432, 16
        %v2821 = vpop.permute.xlu0 %2820
        %2822 = vrot.lane.b32.xlu0 %v2433, 16
        %v2823 = vpop.permute.xlu0 %2822
        %2824 = vrot.lane.b32.xlu0 %v2434, 16
        %v2825 = vpop.permute.xlu0 %2824
        %2826 = vrot.lane.b32.xlu0 %v2435, 16
        %v2827 = vpop.permute.xlu0 %2826
        %2828 = vrot.lane.b32.xlu0 %v2436, 16
        %v2829 = vpop.permute.xlu0 %2828
        %2830 = vrot.lane.b32.xlu0 %v2437, 16
        %v2831 = vpop.permute.xlu0 %2830
        %2832 = vrot.lane.b32.xlu0 %v2438, 16
        %v2833 = vpop.permute.xlu0 %2832
        %2834 = vrot.lane.b32.xlu0 %v2439, 16
        %v2835 = vpop.permute.xlu0 %2834
        %2836 = vrot.lane.b32.xlu0 %v2440, 16
        %v2837 = vpop.permute.xlu0 %2836
        %2838 = vrot.lane.b32.xlu0 %v2441, 16
        %v2839 = vpop.permute.xlu0 %2838
        %2840 = vrot.lane.b32.xlu0 %v2442, 16
        %v2841 = vpop.permute.xlu0 %2840
        %2842 = vrot.lane.b32.xlu0 %v2443, 16
        %v2843 = vpop.permute.xlu0 %2842
        %2844 = vrot.lane.b32.xlu0 %v2444, 16
        %v2845 = vpop.permute.xlu0 %2844
        %2846 = vrot.lane.b32.xlu0 %v2445, 16
        %v2847 = vpop.permute.xlu0 %2846
        %2848 = vrot.lane.b32.xlu0 %v2446, 16
        %v2849 = vpop.permute.xlu0 %2848
        %2850 = vrot.lane.b32.xlu0 %v2447, 16
        %v2851 = vpop.permute.xlu0 %2850
        %2852 = vrot.lane.b32.xlu0 %v2448, 16
        %v2853 = vpop.permute.xlu0 %2852
        %2854 = vrot.lane.b32.xlu0 %v2449, 16
        %v2855 = vpop.permute.xlu0 %2854
        %2856 = vrot.lane.b32.xlu0 %v2450, 16
        %v2857 = vpop.permute.xlu0 %2856
        %2858 = vrot.lane.b32.xlu0 %v2451, 16
        %v2859 = vpop.permute.xlu0 %2858
        %2860 = vrot.lane.b32.xlu0 %v2452, 16
        %v2861 = vpop.permute.xlu0 %2860
        %2862 = vrot.lane.b32.xlu0 %v2453, 16
        %v2863 = vpop.permute.xlu0 %2862
        %2864 = vrot.lane.b32.xlu0 %v2454, 16
        %v2865 = vpop.permute.xlu0 %2864
        %2866 = vrot.lane.b32.xlu0 %v2455, 16
        %v2867 = vpop.permute.xlu0 %2866
        %2868 = vrot.lane.b32.xlu0 %v2456, 16
        %v2869 = vpop.permute.xlu0 %2868
        %2870 = vrot.lane.b32.xlu0 %v2457, 16
        %v2871 = vpop.permute.xlu0 %2870
        %2872 = vrot.lane.b32.xlu0 %v2458, 16
        %v2873 = vpop.permute.xlu0 %2872
        %2874 = vrot.lane.b32.xlu0 %v2459, 16
        %v2875 = vpop.permute.xlu0 %2874
        %2876 = vrot.lane.b32.xlu0 %v2460, 16
        %v2877 = vpop.permute.xlu0 %2876
        %2942 = vrot.lane.b32.xlu0 %v2461, 24
        %v2943 = vpop.permute.xlu0 %2942
        %2944 = vrot.lane.b32.xlu0 %v2462, 24
        %v2945 = vpop.permute.xlu0 %2944
        %2946 = vrot.lane.b32.xlu0 %v2463, 24
        %v2947 = vpop.permute.xlu0 %2946
        %2948 = vrot.lane.b32.xlu0 %v2464, 24
        %v2949 = vpop.permute.xlu0 %2948
        %2950 = vrot.lane.b32.xlu0 %v2465, 24
        %v2951 = vpop.permute.xlu0 %2950
        %2952 = vrot.lane.b32.xlu0 %v2466, 24
        %v2953 = vpop.permute.xlu0 %2952
        %2954 = vrot.lane.b32.xlu0 %v2467, 24
        %v2955 = vpop.permute.xlu0 %2954
        %2956 = vrot.lane.b32.xlu0 %v2468, 24
        %v2957 = vpop.permute.xlu0 %2956
        %2958 = vrot.lane.b32.xlu0 %v2469, 24
        %v2959 = vpop.permute.xlu0 %2958
        %2960 = vrot.lane.b32.xlu0 %v2470, 24
        %v2961 = vpop.permute.xlu0 %2960
        %2962 = vrot.lane.b32.xlu0 %v2471, 24
        %v2963 = vpop.permute.xlu0 %2962
        %2964 = vrot.lane.b32.xlu0 %v2472, 24
        %v2965 = vpop.permute.xlu0 %2964
        %2966 = vrot.lane.b32.xlu0 %v2473, 24
        %v2967 = vpop.permute.xlu0 %2966
        %2968 = vrot.lane.b32.xlu0 %v2474, 24
        %v2969 = vpop.permute.xlu0 %2968
        %2970 = vrot.lane.b32.xlu0 %v2475, 24
        %v2971 = vpop.permute.xlu0 %2970
        %2972 = vrot.lane.b32.xlu0 %v2476, 24
        %v2973 = vpop.permute.xlu0 %2972
        %2974 = vrot.lane.b32.xlu0 %v2477, 24
        %v2975 = vpop.permute.xlu0 %2974
        %2976 = vrot.lane.b32.xlu0 %v2478, 24
        %v2977 = vpop.permute.xlu0 %2976
        %2978 = vrot.lane.b32.xlu0 %v2479, 24
        %v2979 = vpop.permute.xlu0 %2978
        %2980 = vrot.lane.b32.xlu0 %v2480, 24
        %v2981 = vpop.permute.xlu0 %2980
        %2982 = vrot.lane.b32.xlu0 %v2481, 24
        %v2983 = vpop.permute.xlu0 %2982
        %2984 = vrot.lane.b32.xlu0 %v2482, 24
        %v2985 = vpop.permute.xlu0 %2984
        %2986 = vrot.lane.b32.xlu0 %v2483, 24
        %v2987 = vpop.permute.xlu0 %2986
        %2988 = vrot.lane.b32.xlu0 %v2484, 24
        %v2989 = vpop.permute.xlu0 %2988
        %2990 = vrot.lane.b32.xlu0 %v2485, 24
        %v2991 = vpop.permute.xlu0 %2990
        %2992 = vrot.lane.b32.xlu0 %v2486, 24
        %v2993 = vpop.permute.xlu0 %2992
        %2994 = vrot.lane.b32.xlu0 %v2487, 24
        %v2995 = vpop.permute.xlu0 %2994
        %2996 = vrot.lane.b32.xlu0 %v2488, 24
        %v2997 = vpop.permute.xlu0 %2996
        %2998 = vrot.lane.b32.xlu0 %v2489, 24
        %v2999 = vpop.permute.xlu0 %2998
        %3000 = vrot.lane.b32.xlu0 %v2490, 24
        %v3001 = vpop.permute.xlu0 %3000
        %3002 = vrot.lane.b32.xlu0 %v2491, 24
        %v3003 = vpop.permute.xlu0 %3002
        %3004 = vrot.lane.b32.xlu0 %v2492, 24
        %v3005 = vpop.permute.xlu0 %3004
        %3070 = vrot.lane.b32.xlu0 %v2493, 32
        %v3071 = vpop.permute.xlu0 %3070
        %3072 = vrot.lane.b32.xlu0 %v2494, 32
        %v3073 = vpop.permute.xlu0 %3072
        %3074 = vrot.lane.b32.xlu0 %v2495, 32
        %v3075 = vpop.permute.xlu0 %3074
        %3076 = vrot.lane.b32.xlu0 %v2496, 32
        %v3077 = vpop.permute.xlu0 %3076
        %3078 = vrot.lane.b32.xlu0 %v2497, 32
        %v3079 = vpop.permute.xlu0 %3078
        %3080 = vrot.lane.b32.xlu0 %v2498, 32
        %v3081 = vpop.permute.xlu0 %3080
        %3082 = vrot.lane.b32.xlu0 %v2499, 32
        %v3083 = vpop.permute.xlu0 %3082
        %3084 = vrot.lane.b32.xlu0 %v2500, 32
        %v3085 = vpop.permute.xlu0 %3084
        %3086 = vrot.lane.b32.xlu0 %v2501, 32
        %v3087 = vpop.permute.xlu0 %3086
        %3088 = vrot.lane.b32.xlu0 %v2502, 32
        %v3089 = vpop.permute.xlu0 %3088
        %3090 = vrot.lane.b32.xlu0 %v2503, 32
        %v3091 = vpop.permute.xlu0 %3090
        %3092 = vrot.lane.b32.xlu0 %v2504, 32
        %v3093 = vpop.permute.xlu0 %3092
        %3094 = vrot.lane.b32.xlu0 %v2505, 32
        %v3095 = vpop.permute.xlu0 %3094
        %3096 = vrot.lane.b32.xlu0 %v2506, 32
        %v3097 = vpop.permute.xlu0 %3096
        %3098 = vrot.lane.b32.xlu0 %v2507, 32
        %v3099 = vpop.permute.xlu0 %3098
        %3100 = vrot.lane.b32.xlu0 %v2508, 32
        %v3101 = vpop.permute.xlu0 %3100
        %3102 = vrot.lane.b32.xlu0 %v2509, 32
        %v3103 = vpop.permute.xlu0 %3102
        %3104 = vrot.lane.b32.xlu0 %v2510, 32
        %v3105 = vpop.permute.xlu0 %3104
        %3106 = vrot.lane.b32.xlu0 %v2511, 32
        %v3107 = vpop.permute.xlu0 %3106
        %3108 = vrot.lane.b32.xlu0 %v2512, 32
        %v3109 = vpop.permute.xlu0 %3108
        %3110 = vrot.lane.b32.xlu0 %v2513, 32
        %v3111 = vpop.permute.xlu0 %3110
        %3112 = vrot.lane.b32.xlu0 %v2514, 32
        %v3113 = vpop.permute.xlu0 %3112
        %3114 = vrot.lane.b32.xlu0 %v2515, 32
        %v3115 = vpop.permute.xlu0 %3114
        %3116 = vrot.lane.b32.xlu0 %v2516, 32
        %v3117 = vpop.permute.xlu0 %3116
        %3118 = vrot.lane.b32.xlu0 %v2517, 32
        %v3119 = vpop.permute.xlu0 %3118
        %3120 = vrot.lane.b32.xlu0 %v2518, 32
        %v3121 = vpop.permute.xlu0 %3120
        %3122 = vrot.lane.b32.xlu0 %v2519, 32
        %v3123 = vpop.permute.xlu0 %3122
        %3124 = vrot.lane.b32.xlu0 %v2520, 32
        %v3125 = vpop.permute.xlu0 %3124
        %3126 = vrot.lane.b32.xlu0 %v2521, 32
        %v3127 = vpop.permute.xlu0 %3126
        %3128 = vrot.lane.b32.xlu0 %v2522, 32
        %v3129 = vpop.permute.xlu0 %3128
        %3130 = vrot.lane.b32.xlu0 %v2523, 32
        %v3131 = vpop.permute.xlu0 %3130
        %3132 = vrot.lane.b32.xlu0 %v2524, 32
        %v3133 = vpop.permute.xlu0 %3132
        %3198 = vrot.lane.b32.xlu0 %v2525, 40
        %v3199 = vpop.permute.xlu0 %3198
        %3200 = vrot.lane.b32.xlu0 %v2526, 40
        %v3201 = vpop.permute.xlu0 %3200
        %3202 = vrot.lane.b32.xlu0 %v2527, 40
        %v3203 = vpop.permute.xlu0 %3202
        %3204 = vrot.lane.b32.xlu0 %v2528, 40
        %v3205 = vpop.permute.xlu0 %3204
        %3206 = vrot.lane.b32.xlu0 %v2529, 40
        %v3207 = vpop.permute.xlu0 %3206
        %3208 = vrot.lane.b32.xlu0 %v2530, 40
        %v3209 = vpop.permute.xlu0 %3208
        %3210 = vrot.lane.b32.xlu0 %v2531, 40
        %v3211 = vpop.permute.xlu0 %3210
        %3212 = vrot.lane.b32.xlu0 %v2532, 40
        %v3213 = vpop.permute.xlu0 %3212
        %3214 = vrot.lane.b32.xlu0 %v2533, 40
        %v3215 = vpop.permute.xlu0 %3214
        %3216 = vrot.lane.b32.xlu0 %v2534, 40
        %v3217 = vpop.permute.xlu0 %3216
        %3218 = vrot.lane.b32.xlu0 %v2535, 40
        %v3219 = vpop.permute.xlu0 %3218
        %3220 = vrot.lane.b32.xlu0 %v2536, 40
        %v3221 = vpop.permute.xlu0 %3220
        %3222 = vrot.lane.b32.xlu0 %v2537, 40
        %v3223 = vpop.permute.xlu0 %3222
        %3224 = vrot.lane.b32.xlu0 %v2538, 40
        %v3225 = vpop.permute.xlu0 %3224
        %3226 = vrot.lane.b32.xlu0 %v2539, 40
        %v3227 = vpop.permute.xlu0 %3226
        %3228 = vrot.lane.b32.xlu0 %v2540, 40
        %v3229 = vpop.permute.xlu0 %3228
        %3230 = vrot.lane.b32.xlu0 %v2541, 40
        %v3231 = vpop.permute.xlu0 %3230
        %3232 = vrot.lane.b32.xlu0 %v2542, 40
        %v3233 = vpop.permute.xlu0 %3232
        %3234 = vrot.lane.b32.xlu0 %v2543, 40
        %v3235 = vpop.permute.xlu0 %3234
        %3236 = vrot.lane.b32.xlu0 %v2544, 40
        %v3237 = vpop.permute.xlu0 %3236
        %3238 = vrot.lane.b32.xlu0 %v2545, 40
        %v3239 = vpop.permute.xlu0 %3238
        %3240 = vrot.lane.b32.xlu0 %v2546, 40
        %v3241 = vpop.permute.xlu0 %3240
        %3242 = vrot.lane.b32.xlu0 %v2547, 40
        %v3243 = vpop.permute.xlu0 %3242
        %3244 = vrot.lane.b32.xlu0 %v2548, 40
        %v3245 = vpop.permute.xlu0 %3244
        %3246 = vrot.lane.b32.xlu0 %v2549, 40
        %v3247 = vpop.permute.xlu0 %3246
        %3248 = vrot.lane.b32.xlu0 %v2550, 40
        %v3249 = vpop.permute.xlu0 %3248
        %3250 = vrot.lane.b32.xlu0 %v2551, 40
        %v3251 = vpop.permute.xlu0 %3250
        %3252 = vrot.lane.b32.xlu0 %v2552, 40
        %v3253 = vpop.permute.xlu0 %3252
        %3254 = vrot.lane.b32.xlu0 %v2553, 40
        %v3255 = vpop.permute.xlu0 %3254
        %3256 = vrot.lane.b32.xlu0 %v2554, 40
        %v3257 = vpop.permute.xlu0 %3256
        %3258 = vrot.lane.b32.xlu0 %v2555, 40
        %v3259 = vpop.permute.xlu0 %3258
        %3260 = vrot.lane.b32.xlu0 %v2556, 40
        %v3261 = vpop.permute.xlu0 %3260
        %3326 = vrot.lane.b32.xlu0 %v2558, 48
        %v3327 = vpop.permute.xlu0 %3326
        %3328 = vrot.lane.b32.xlu0 %v2559, 48
        %v3329 = vpop.permute.xlu0 %3328
        %3330 = vrot.lane.b32.xlu0 %v2560, 48
        %v3331 = vpop.permute.xlu0 %3330
        %3332 = vrot.lane.b32.xlu0 %v2561, 48
        %v3333 = vpop.permute.xlu0 %3332
        %3334 = vrot.lane.b32.xlu0 %v2562, 48
        %v3335 = vpop.permute.xlu0 %3334
        %3336 = vrot.lane.b32.xlu0 %v2563, 48
        %v3337 = vpop.permute.xlu0 %3336
        %3338 = vrot.lane.b32.xlu0 %v2564, 48
        %v3339 = vpop.permute.xlu0 %3338
        %3340 = vrot.lane.b32.xlu0 %v2565, 48
        %v3341 = vpop.permute.xlu0 %3340
        %3342 = vrot.lane.b32.xlu0 %v2566, 48
        %v3343 = vpop.permute.xlu0 %3342
        %3344 = vrot.lane.b32.xlu0 %v2567, 48
        %v3345 = vpop.permute.xlu0 %3344
        %3346 = vrot.lane.b32.xlu0 %v2568, 48
        %v3347 = vpop.permute.xlu0 %3346
        %3348 = vrot.lane.b32.xlu0 %v2569, 48
        %v3349 = vpop.permute.xlu0 %3348
        %3350 = vrot.lane.b32.xlu0 %v2570, 48
        %v3351 = vpop.permute.xlu0 %3350
        %3352 = vrot.lane.b32.xlu0 %v2571, 48
        %v3353 = vpop.permute.xlu0 %3352
        %3354 = vrot.lane.b32.xlu0 %v2572, 48
        %v3355 = vpop.permute.xlu0 %3354
        %3356 = vrot.lane.b32.xlu0 %v2573, 48
        %v3357 = vpop.permute.xlu0 %3356
        %3358 = vrot.lane.b32.xlu0 %v2574, 48
        %v3359 = vpop.permute.xlu0 %3358
        %3360 = vrot.lane.b32.xlu0 %v2575, 48
        %v3361 = vpop.permute.xlu0 %3360
        %3362 = vrot.lane.b32.xlu0 %v2576, 48
        %v3363 = vpop.permute.xlu0 %3362
        %3364 = vrot.lane.b32.xlu0 %v2577, 48
        %v3365 = vpop.permute.xlu0 %3364
        %3366 = vrot.lane.b32.xlu0 %v2578, 48
        %v3367 = vpop.permute.xlu0 %3366
        %3368 = vrot.lane.b32.xlu0 %v2579, 48
        %v3369 = vpop.permute.xlu0 %3368
        %3370 = vrot.lane.b32.xlu0 %v2580, 48
        %v3371 = vpop.permute.xlu0 %3370
        %3372 = vrot.lane.b32.xlu0 %v2581, 48
        %v3373 = vpop.permute.xlu0 %3372
        %3374 = vrot.lane.b32.xlu0 %v2582, 48
        %v3375 = vpop.permute.xlu0 %3374
        %3376 = vrot.lane.b32.xlu0 %v2583, 48
        %v3377 = vpop.permute.xlu0 %3376
        %3378 = vrot.lane.b32.xlu0 %v2584, 48
        %v3379 = vpop.permute.xlu0 %3378
        %3380 = vrot.lane.b32.xlu0 %v2585, 48
        %v3381 = vpop.permute.xlu0 %3380
        %3382 = vrot.lane.b32.xlu0 %v2586, 48
        %v3383 = vpop.permute.xlu0 %3382
        %3384 = vrot.lane.b32.xlu0 %v2587, 48
        %v3385 = vpop.permute.xlu0 %3384
        %3386 = vrot.lane.b32.xlu0 %v2588, 48
        %v3387 = vpop.permute.xlu0 %3386
        %3388 = vrot.lane.b32.xlu0 %v2589, 48
        %v3389 = vpop.permute.xlu0 %3388
        %3454 = vrot.lane.b32.xlu0 %v2590, 56
        %v3455 = vpop.permute.xlu0 %3454
        %3456 = vrot.lane.b32.xlu0 %v2591, 56
        %v3457 = vpop.permute.xlu0 %3456
        %3458 = vrot.lane.b32.xlu0 %v2592, 56
        %v3459 = vpop.permute.xlu0 %3458
        %3460 = vrot.lane.b32.xlu0 %v2593, 56
        %v3461 = vpop.permute.xlu0 %3460
        %3462 = vrot.lane.b32.xlu0 %v2594, 56
        %v3463 = vpop.permute.xlu0 %3462
        %3464 = vrot.lane.b32.xlu0 %v2595, 56
        %v3465 = vpop.permute.xlu0 %3464
        %3466 = vrot.lane.b32.xlu0 %v2596, 56
        %v3467 = vpop.permute.xlu0 %3466
        %3468 = vrot.lane.b32.xlu0 %v2597, 56
        %v3469 = vpop.permute.xlu0 %3468
        %3470 = vrot.lane.b32.xlu0 %v2598, 56
        %v3471 = vpop.permute.xlu0 %3470
        %3472 = vrot.lane.b32.xlu0 %v2599, 56
        %v3473 = vpop.permute.xlu0 %3472
        %3474 = vrot.lane.b32.xlu0 %v2600, 56
        %v3475 = vpop.permute.xlu0 %3474
        %3476 = vrot.lane.b32.xlu0 %v2601, 56
        %v3477 = vpop.permute.xlu0 %3476
        %3478 = vrot.lane.b32.xlu0 %v2602, 56
        %v3479 = vpop.permute.xlu0 %3478
        %3480 = vrot.lane.b32.xlu0 %v2603, 56
        %v3481 = vpop.permute.xlu0 %3480
        %3482 = vrot.lane.b32.xlu0 %v2604, 56
        %v3483 = vpop.permute.xlu0 %3482
        %3484 = vrot.lane.b32.xlu0 %v2605, 56
        %v3485 = vpop.permute.xlu0 %3484
        %3486 = vrot.lane.b32.xlu0 %v2606, 56
        %v3487 = vpop.permute.xlu0 %3486
        %3488 = vrot.lane.b32.xlu0 %v2607, 56
        %v3489 = vpop.permute.xlu0 %3488
        %3490 = vrot.lane.b32.xlu0 %v2608, 56
        %v3491 = vpop.permute.xlu0 %3490
        %3492 = vrot.lane.b32.xlu0 %v2609, 56
        %v3493 = vpop.permute.xlu0 %3492
        %3494 = vrot.lane.b32.xlu0 %v2610, 56
        %v3495 = vpop.permute.xlu0 %3494
        %3496 = vrot.lane.b32.xlu0 %v2611, 56
        %v3497 = vpop.permute.xlu0 %3496
        %3498 = vrot.lane.b32.xlu0 %v2612, 56
        %v3499 = vpop.permute.xlu0 %3498
        %3500 = vrot.lane.b32.xlu0 %v2613, 56
        %v3501 = vpop.permute.xlu0 %3500
        %3502 = vrot.lane.b32.xlu0 %v2614, 56
        %v3503 = vpop.permute.xlu0 %3502
        %3504 = vrot.lane.b32.xlu0 %v2615, 56
        %v3505 = vpop.permute.xlu0 %3504
        %3506 = vrot.lane.b32.xlu0 %v2616, 56
        %v3507 = vpop.permute.xlu0 %3506
        %3508 = vrot.lane.b32.xlu0 %v2617, 56
        %v3509 = vpop.permute.xlu0 %3508
        %3510 = vrot.lane.b32.xlu0 %v2618, 56
        %v3511 = vpop.permute.xlu0 %3510
        %3512 = vrot.lane.b32.xlu0 %v2619, 56
        %v3513 = vpop.permute.xlu0 %3512
        %3514 = vrot.lane.b32.xlu0 %v2620, 56
        %v3515 = vpop.permute.xlu0 %3514
        %3516 = vrot.lane.b32.xlu0 %v2621, 56
        %v3517 = vpop.permute.xlu0 %3516
        %3582 = vrot.lane.b32.xlu0 %v2622, 64
        %v3583 = vpop.permute.xlu0 %3582
        %3584 = vrot.lane.b32.xlu0 %v2623, 64
        %v3585 = vpop.permute.xlu0 %3584
        %3586 = vrot.lane.b32.xlu0 %v2624, 64
        %v3587 = vpop.permute.xlu0 %3586
        %3588 = vrot.lane.b32.xlu0 %v2625, 64
        %v3589 = vpop.permute.xlu0 %3588
        %3590 = vrot.lane.b32.xlu0 %v2626, 64
        %v3591 = vpop.permute.xlu0 %3590
        %3592 = vrot.lane.b32.xlu0 %v2627, 64
        %v3593 = vpop.permute.xlu0 %3592
        %3594 = vrot.lane.b32.xlu0 %v2628, 64
        %v3595 = vpop.permute.xlu0 %3594
        %3596 = vrot.lane.b32.xlu0 %v2629, 64
        %v3597 = vpop.permute.xlu0 %3596
        %3598 = vrot.lane.b32.xlu0 %v2630, 64
        %v3599 = vpop.permute.xlu0 %3598
        %3600 = vrot.lane.b32.xlu0 %v2631, 64
        %v3601 = vpop.permute.xlu0 %3600
        %3602 = vrot.lane.b32.xlu0 %v2632, 64
        %v3603 = vpop.permute.xlu0 %3602
        %3604 = vrot.lane.b32.xlu0 %v2633, 64
        %v3605 = vpop.permute.xlu0 %3604
        %3606 = vrot.lane.b32.xlu0 %v2634, 64
        %v3607 = vpop.permute.xlu0 %3606
        %3608 = vrot.lane.b32.xlu0 %v2635, 64
        %v3609 = vpop.permute.xlu0 %3608
        %3610 = vrot.lane.b32.xlu0 %v2636, 64
        %v3611 = vpop.permute.xlu0 %3610
        %3612 = vrot.lane.b32.xlu0 %v2637, 64
        %v3613 = vpop.permute.xlu0 %3612
        %3614 = vrot.lane.b32.xlu0 %v2638, 64
        %v3615 = vpop.permute.xlu0 %3614
        %3616 = vrot.lane.b32.xlu0 %v2639, 64
        %v3617 = vpop.permute.xlu0 %3616
        %3618 = vrot.lane.b32.xlu0 %v2640, 64
        %v3619 = vpop.permute.xlu0 %3618
        %3620 = vrot.lane.b32.xlu0 %v2641, 64
        %v3621 = vpop.permute.xlu0 %3620
        %3622 = vrot.lane.b32.xlu0 %v2642, 64
        %v3623 = vpop.permute.xlu0 %3622
        %3624 = vrot.lane.b32.xlu0 %v2643, 64
        %v3625 = vpop.permute.xlu0 %3624
        %3626 = vrot.lane.b32.xlu0 %v2644, 64
        %v3627 = vpop.permute.xlu0 %3626
        %3628 = vrot.lane.b32.xlu0 %v2645, 64
        %v3629 = vpop.permute.xlu0 %3628
        %3630 = vrot.lane.b32.xlu0 %v2646, 64
        %v3631 = vpop.permute.xlu0 %3630
        %3632 = vrot.lane.b32.xlu0 %v2647, 64
        %v3633 = vpop.permute.xlu0 %3632
        %3634 = vrot.lane.b32.xlu0 %v2648, 64
        %v3635 = vpop.permute.xlu0 %3634
        %3636 = vrot.lane.b32.xlu0 %v2649, 64
        %v3637 = vpop.permute.xlu0 %3636
        %3638 = vrot.lane.b32.xlu0 %v2650, 64
        %v3639 = vpop.permute.xlu0 %3638
        %3640 = vrot.lane.b32.xlu0 %v2651, 64
        %v3641 = vpop.permute.xlu0 %3640
        %3642 = vrot.lane.b32.xlu0 %v2652, 64
        %v3643 = vpop.permute.xlu0 %3642
        %3644 = vrot.lane.b32.xlu0 %v2653, 64
        %v3645 = vpop.permute.xlu0 %3644
        %v3678 = vsel %vm323, %v2365, %v2687
        %v3679 = vsel %vm323, %v2366, %v2689
        %v3680 = vsel %vm323, %v2367, %v2691
        %v3681 = vsel %vm323, %v2368, %v2693
        %v3682 = vsel %vm323, %v2369, %v2695
        %v3683 = vsel %vm323, %v2370, %v2697
        %v3684 = vsel %vm323, %v2371, %v2699
        %v3685 = vsel %vm323, %v2372, %v2701
        %v3686 = vsel %vm323, %v2373, %v2703
        %v3687 = vsel %vm323, %v2374, %v2705
        %v3688 = vsel %vm323, %v2375, %v2707
        %v3689 = vsel %vm323, %v2376, %v2709
        %v3690 = vsel %vm323, %v2377, %v2711
        %v3691 = vsel %vm323, %v2378, %v2713
        %v3692 = vsel %vm323, %v2379, %v2715
        %v3693 = vsel %vm323, %v2380, %v2717
        %v3694 = vsel %vm323, %v2381, %v2719
        %v3695 = vsel %vm323, %v2382, %v2721
        %v3696 = vsel %vm323, %v2383, %v2723
        %v3697 = vsel %vm323, %v2384, %v2725
        %v3698 = vsel %vm323, %v2385, %v2727
        %v3699 = vsel %vm323, %v2386, %v2729
        %v3700 = vsel %vm323, %v2387, %v2731
        %v3701 = vsel %vm323, %v2388, %v2733
        %v3702 = vsel %vm323, %v2389, %v2735
        %v3703 = vsel %vm323, %v2390, %v2737
        %v3704 = vsel %vm323, %v2391, %v2739
        %v3705 = vsel %vm323, %v2392, %v2741
        %v3706 = vsel %vm323, %v2393, %v2743
        %v3707 = vsel %vm323, %v2394, %v2745
        %v3708 = vsel %vm323, %v2395, %v2747
        %v3709 = vsel %vm323, %v2396, %v2749
        %v3710 = vsel %vm1844, %v3678, %v2815
        %v3711 = vsel %vm1844, %v3679, %v2817
        %v3712 = vsel %vm1844, %v3680, %v2819
        %v3713 = vsel %vm1844, %v3681, %v2821
        %v3714 = vsel %vm1844, %v3682, %v2823
        %v3715 = vsel %vm1844, %v3683, %v2825
        %v3716 = vsel %vm1844, %v3684, %v2827
        %v3717 = vsel %vm1844, %v3685, %v2829
        %v3718 = vsel %vm1844, %v3686, %v2831
        %v3719 = vsel %vm1844, %v3687, %v2833
        %v3720 = vsel %vm1844, %v3688, %v2835
        %v3721 = vsel %vm1844, %v3689, %v2837
        %v3722 = vsel %vm1844, %v3690, %v2839
        %v3723 = vsel %vm1844, %v3691, %v2841
        %v3724 = vsel %vm1844, %v3692, %v2843
        %v3725 = vsel %vm1844, %v3693, %v2845
        %v3726 = vsel %vm1844, %v3694, %v2847
        %v3727 = vsel %vm1844, %v3695, %v2849
        %v3728 = vsel %vm1844, %v3696, %v2851
        %v3729 = vsel %vm1844, %v3697, %v2853
        %v3730 = vsel %vm1844, %v3698, %v2855
        %v3731 = vsel %vm1844, %v3699, %v2857
        %v3732 = vsel %vm1844, %v3700, %v2859
        %v3733 = vsel %vm1844, %v3701, %v2861
        %v3734 = vsel %vm1844, %v3702, %v2863
        %v3735 = vsel %vm1844, %v3703, %v2865
        %v3736 = vsel %vm1844, %v3704, %v2867
        %v3737 = vsel %vm1844, %v3705, %v2869
        %v3738 = vsel %vm1844, %v3706, %v2871
        %v3739 = vsel %vm1844, %v3707, %v2873
        %v3740 = vsel %vm1844, %v3708, %v2875
        %v3741 = vsel %vm1844, %v3709, %v2877
        %v3742 = vsel %vm1910, %v3710, %v2943
        %v3743 = vsel %vm1910, %v3711, %v2945
        %v3744 = vsel %vm1910, %v3712, %v2947
        %v3745 = vsel %vm1910, %v3713, %v2949
        %v3746 = vsel %vm1910, %v3714, %v2951
        %v3747 = vsel %vm1910, %v3715, %v2953
        %v3748 = vsel %vm1910, %v3716, %v2955
        %v3749 = vsel %vm1910, %v3717, %v2957
        %v3750 = vsel %vm1910, %v3718, %v2959
        %v3751 = vsel %vm1910, %v3719, %v2961
        %v3752 = vsel %vm1910, %v3720, %v2963
        %v3753 = vsel %vm1910, %v3721, %v2965
        %v3754 = vsel %vm1910, %v3722, %v2967
        %v3755 = vsel %vm1910, %v3723, %v2969
        %v3756 = vsel %vm1910, %v3724, %v2971
        %v3757 = vsel %vm1910, %v3725, %v2973
        %v3758 = vsel %vm1910, %v3726, %v2975
        %v3759 = vsel %vm1910, %v3727, %v2977
        %v3760 = vsel %vm1910, %v3728, %v2979
        %v3761 = vsel %vm1910, %v3729, %v2981
        %v3762 = vsel %vm1910, %v3730, %v2983
        %v3763 = vsel %vm1910, %v3731, %v2985
        %v3764 = vsel %vm1910, %v3732, %v2987
        %v3765 = vsel %vm1910, %v3733, %v2989
        %v3766 = vsel %vm1910, %v3734, %v2991
        %v3767 = vsel %vm1910, %v3735, %v2993
        %v3768 = vsel %vm1910, %v3736, %v2995
        %v3769 = vsel %vm1910, %v3737, %v2997
        %v3770 = vsel %vm1910, %v3738, %v2999
        %v3771 = vsel %vm1910, %v3739, %v3001
        %v3772 = vsel %vm1910, %v3740, %v3003
        %v3773 = vsel %vm1910, %v3741, %v3005
        %v3774 = vsel %vm1976, %v3742, %v3071
        %v3775 = vsel %vm1976, %v3743, %v3073
        %v3776 = vsel %vm1976, %v3744, %v3075
        %v3777 = vsel %vm1976, %v3745, %v3077
        %v3778 = vsel %vm1976, %v3746, %v3079
        %v3779 = vsel %vm1976, %v3747, %v3081
        %v3780 = vsel %vm1976, %v3748, %v3083
        %v3781 = vsel %vm1976, %v3749, %v3085
        %v3782 = vsel %vm1976, %v3750, %v3087
        %v3783 = vsel %vm1976, %v3751, %v3089
        %v3784 = vsel %vm1976, %v3752, %v3091
        %v3785 = vsel %vm1976, %v3753, %v3093
        %v3786 = vsel %vm1976, %v3754, %v3095
        %v3787 = vsel %vm1976, %v3755, %v3097
        %v3788 = vsel %vm1976, %v3756, %v3099
        %v3789 = vsel %vm1976, %v3757, %v3101
        %v3790 = vsel %vm1976, %v3758, %v3103
        %v3791 = vsel %vm1976, %v3759, %v3105
        %v3792 = vsel %vm1976, %v3760, %v3107
        %v3793 = vsel %vm1976, %v3761, %v3109
        %v3794 = vsel %vm1976, %v3762, %v3111
        %v3795 = vsel %vm1976, %v3763, %v3113
        %v3796 = vsel %vm1976, %v3764, %v3115
        %v3797 = vsel %vm1976, %v3765, %v3117
        %v3798 = vsel %vm1976, %v3766, %v3119
        %v3799 = vsel %vm1976, %v3767, %v3121
        %v3800 = vsel %vm1976, %v3768, %v3123
        %v3801 = vsel %vm1976, %v3769, %v3125
        %v3802 = vsel %vm1976, %v3770, %v3127
        %v3803 = vsel %vm1976, %v3771, %v3129
        %v3804 = vsel %vm1976, %v3772, %v3131
        %v3805 = vsel %vm1976, %v3773, %v3133
        %vm3806 = vcmask 326656
        %v3807 = vsel %vm3806, %v3774, %v3199
        %v3808 = vsel %vm3806, %v3775, %v3201
        %v3809 = vsel %vm3806, %v3776, %v3203
        %v3810 = vsel %vm3806, %v3777, %v3205
        %v3811 = vsel %vm3806, %v3778, %v3207
        %v3812 = vsel %vm3806, %v3779, %v3209
        %v3813 = vsel %vm3806, %v3780, %v3211
        %v3814 = vsel %vm3806, %v3781, %v3213
        %v3815 = vsel %vm3806, %v3782, %v3215
        %v3816 = vsel %vm3806, %v3783, %v3217
        %v3817 = vsel %vm3806, %v3784, %v3219
        %v3818 = vsel %vm3806, %v3785, %v3221
        %v3819 = vsel %vm3806, %v3786, %v3223
        %v3820 = vsel %vm3806, %v3787, %v3225
        %v3821 = vsel %vm3806, %v3788, %v3227
        %v3822 = vsel %vm3806, %v3789, %v3229
        %v3823 = vsel %vm3806, %v3790, %v3231
        %v3824 = vsel %vm3806, %v3791, %v3233
        %v3825 = vsel %vm3806, %v3792, %v3235
        %v3826 = vsel %vm3806, %v3793, %v3237
        %v3827 = vsel %vm3806, %v3794, %v3239
        %v3828 = vsel %vm3806, %v3795, %v3241
        %v3829 = vsel %vm3806, %v3796, %v3243
        %v3830 = vsel %vm3806, %v3797, %v3245
        %v3831 = vsel %vm3806, %v3798, %v3247
        %v3832 = vsel %vm3806, %v3799, %v3249
        %v3833 = vsel %vm3806, %v3800, %v3251
        %v3834 = vsel %vm3806, %v3801, %v3253
        %v3835 = vsel %vm3806, %v3802, %v3255
        %v3836 = vsel %vm3806, %v3803, %v3257
        %v3837 = vsel %vm3806, %v3804, %v3259
        %v3838 = vsel %vm3806, %v3805, %v3261
        %vm3839 = vcmask 392192
        %v3840 = vsel %vm3839, %v3807, %v3327
        %v3841 = vsel %vm3839, %v3808, %v3329
        %v3842 = vsel %vm3839, %v3809, %v3331
        %v3843 = vsel %vm3839, %v3810, %v3333
        %v3844 = vsel %vm3839, %v3811, %v3335
        %v3845 = vsel %vm3839, %v3812, %v3337
        %v3846 = vsel %vm3839, %v3813, %v3339
        %v3847 = vsel %vm3839, %v3814, %v3341
        %v3848 = vsel %vm3839, %v3815, %v3343
        %v3849 = vsel %vm3839, %v3816, %v3345
        %v3850 = vsel %vm3839, %v3817, %v3347
        %v3851 = vsel %vm3839, %v3818, %v3349
        %v3852 = vsel %vm3839, %v3819, %v3351
        %v3853 = vsel %vm3839, %v3820, %v3353
        %v3854 = vsel %vm3839, %v3821, %v3355
        %v3855 = vsel %vm3839, %v3822, %v3357
        %v3856 = vsel %vm3839, %v3823, %v3359
        %v3857 = vsel %vm3839, %v3824, %v3361
        %v3858 = vsel %vm3839, %v3825, %v3363
        %v3859 = vsel %vm3839, %v3826, %v3365
        %v3860 = vsel %vm3839, %v3827, %v3367
        %v3861 = vsel %vm3839, %v3828, %v3369
        %v3862 = vsel %vm3839, %v3829, %v3371
        %v3863 = vsel %vm3839, %v3830, %v3373
        %v3864 = vsel %vm3839, %v3831, %v3375
        %v3865 = vsel %vm3839, %v3832, %v3377
        %v3866 = vsel %vm3839, %v3833, %v3379
        %v3867 = vsel %vm3839, %v3834, %v3381
        %v3868 = vsel %vm3839, %v3835, %v3383
        %v3869 = vsel %vm3839, %v3836, %v3385
        %v3870 = vsel %vm3839, %v3837, %v3387
        %v3871 = vsel %vm3839, %v3838, %v3389
        %vm3872 = vcmask 457728
        %v3873 = vsel %vm3872, %v3840, %v3455
        %v3874 = vsel %vm3872, %v3841, %v3457
        %v3875 = vsel %vm3872, %v3842, %v3459
        %v3876 = vsel %vm3872, %v3843, %v3461
        %v3877 = vsel %vm3872, %v3844, %v3463
        %v3878 = vsel %vm3872, %v3845, %v3465
        %v3879 = vsel %vm3872, %v3846, %v3467
        %v3880 = vsel %vm3872, %v3847, %v3469
        %v3881 = vsel %vm3872, %v3848, %v3471
        %v3882 = vsel %vm3872, %v3849, %v3473
        %v3883 = vsel %vm3872, %v3850, %v3475
        %v3884 = vsel %vm3872, %v3851, %v3477
        %v3885 = vsel %vm3872, %v3852, %v3479
        %v3886 = vsel %vm3872, %v3853, %v3481
        %v3887 = vsel %vm3872, %v3854, %v3483
        %v3888 = vsel %vm3872, %v3855, %v3485
        %v3889 = vsel %vm3872, %v3856, %v3487
        %v3890 = vsel %vm3872, %v3857, %v3489
        %v3891 = vsel %vm3872, %v3858, %v3491
        %v3892 = vsel %vm3872, %v3859, %v3493
        %v3893 = vsel %vm3872, %v3860, %v3495
        %v3894 = vsel %vm3872, %v3861, %v3497
        %v3895 = vsel %vm3872, %v3862, %v3499
        %v3896 = vsel %vm3872, %v3863, %v3501
        %v3897 = vsel %vm3872, %v3864, %v3503
        %v3898 = vsel %vm3872, %v3865, %v3505
        %v3899 = vsel %vm3872, %v3866, %v3507
        %v3900 = vsel %vm3872, %v3867, %v3509
        %v3901 = vsel %vm3872, %v3868, %v3511
        %v3902 = vsel %vm3872, %v3869, %v3513
        %v3903 = vsel %vm3872, %v3870, %v3515
        %v3904 = vsel %vm3872, %v3871, %v3517
        %vm3905 = vcmask 523264
        %v3906 = vsel %vm3905, %v3873, %v3583
        %v3907 = vsel %vm3905, %v3874, %v3585
        %v3908 = vsel %vm3905, %v3875, %v3587
        %v3909 = vsel %vm3905, %v3876, %v3589
        %v3910 = vsel %vm3905, %v3877, %v3591
        %v3911 = vsel %vm3905, %v3878, %v3593
        %v3912 = vsel %vm3905, %v3879, %v3595
        %v3913 = vsel %vm3905, %v3880, %v3597
        %v3914 = vsel %vm3905, %v3881, %v3599
        %v3915 = vsel %vm3905, %v3882, %v3601
        %v3916 = vsel %vm3905, %v3883, %v3603
        %v3917 = vsel %vm3905, %v3884, %v3605
        %v3918 = vsel %vm3905, %v3885, %v3607
        %v3919 = vsel %vm3905, %v3886, %v3609
        %v3920 = vsel %vm3905, %v3887, %v3611
        %v3921 = vsel %vm3905, %v3888, %v3613
        %v3922 = vsel %vm3905, %v3889, %v3615
        %v3923 = vsel %vm3905, %v3890, %v3617
        %v3924 = vsel %vm3905, %v3891, %v3619
        %v3925 = vsel %vm3905, %v3892, %v3621
        %v3926 = vsel %vm3905, %v3893, %v3623
        %v3927 = vsel %vm3905, %v3894, %v3625
        %v3928 = vsel %vm3905, %v3895, %v3627
        %v3929 = vsel %vm3905, %v3896, %v3629
        %v3930 = vsel %vm3905, %v3897, %v3631
        %v3931 = vsel %vm3905, %v3898, %v3633
        %v3932 = vsel %vm3905, %v3899, %v3635
        %v3933 = vsel %vm3905, %v3900, %v3637
        %v3934 = vsel %vm3905, %v3901, %v3639
        %v3935 = vsel %vm3905, %v3902, %v3641
        %v3936 = vsel %vm3905, %v3903, %v3643
        %v3937 = vsel %vm3905, %v3904, %v3645
        %v3938 = vld [vmem:[%s4] sm:$0xff]
        %v3939 = vld [vmem:[%s4 + $0x8] sm:$0xff]
        %v3940 = vld [vmem:[%s4 + $0x10] sm:$0xff]
        %v3941 = vld [vmem:[%s4 + $0x18] sm:$0xff]
        %v3942 = vld [vmem:[%s4 + $0x20] sm:$0xff]
        %v3943 = vld [vmem:[%s4 + $0x28] sm:$0xff]
        %v3944 = vld [vmem:[%s4 + $0x30] sm:$0xff]
        %v3945 = vld [vmem:[%s4 + $0x38] sm:$0xff]
        %v3946 = vld [vmem:[%s4 + $0x40] sm:$0xff]
        %vm3947 = vcmask 588800
        %v3949 = vsel %vm3947, %v3906, 0
        %v3952 = vsel %vm3947, %v3907, 0
        %v3955 = vsel %vm3947, %v3908, 0
        %v3958 = vsel %vm3947, %v3909, 0
        %v3961 = vsel %vm3947, %v3910, 0
        %v3964 = vsel %vm3947, %v3911, 0
        %v3967 = vsel %vm3947, %v3912, 0
        %v3970 = vsel %vm3947, %v3913, 0
        %v3973 = vsel %vm3947, %v3914, 0
        %v3976 = vsel %vm3947, %v3915, 0
        %v3979 = vsel %vm3947, %v3916, 0
        %v3982 = vsel %vm3947, %v3917, 0
        %v3985 = vsel %vm3947, %v3918, 0
        %v3988 = vsel %vm3947, %v3919, 0
        %v3991 = vsel %vm3947, %v3920, 0
        %v3994 = vsel %vm3947, %v3921, 0
        %v3997 = vsel %vm3947, %v3922, 0
        %v4000 = vsel %vm3947, %v3923, 0
        %v4003 = vsel %vm3947, %v3924, 0
        %v4006 = vsel %vm3947, %v3925, 0
        %v4009 = vsel %vm3947, %v3926, 0
        %v4012 = vsel %vm3947, %v3927, 0
        %v4015 = vsel %vm3947, %v3928, 0
        %v4018 = vsel %vm3947, %v3929, 0
        %v4021 = vsel %vm3947, %v3930, 0
        %v4024 = vsel %vm3947, %v3931, 0
        %v4027 = vsel %vm3947, %v3932, 0
        %v4030 = vsel %vm3947, %v3933, 0
        %v4033 = vsel %vm3947, %v3934, 0
        %v4036 = vsel %vm3947, %v3935, 0
        %v4039 = vsel %vm3947, %v3936, 0
        %v4042 = vsel %vm3947, %v3937, 0
        %4044 = vmatpush.msra.mxu0 0.0
        %4045 = vmatpush.msra.mxu0 0.0
        %4046 = vmatpush.msra.mxu0 0.0
        %4047 = vmatpush.msra.mxu0 0.0
        %4048 = vmatpush.msra.mxu0 0.0
        %4049 = vmatpush.msra.mxu0 0.0
        %4050 = vmatpush.msra.mxu0 0.0
        %4051 = vmatpush.msra.mxu0 %v3946
        %4052 = vmatpush.msra.mxu0 %v3945
        %4053 = vmatpush.msra.mxu0 %v3944
        %4054 = vmatpush.msra.mxu0 %v3943
        %4055 = vmatpush.msra.mxu0 %v3942
        %4056 = vmatpush.msra.mxu0 %v3941
        %4057 = vmatpush.msra.mxu0 %v3940
        %4058 = vmatpush.msra.mxu0 %v3939
        %4059 = vmatpush.msra.mxu0 %v3938
        %4060 = vmatmul.f32.gmra.mxu0 %v3949
        %v4061 = vpop.f32.mrf.mxu0
        %v4062 = vadd.f32 0.0, %v4061
        %4063 = vmatmul.f32.gmra.mxu0 %v3952
        %v4064 = vpop.f32.mrf.mxu0
        %v4065 = vadd.f32 0.0, %v4064
        %4066 = vmatmul.f32.gmra.mxu0 %v3955
        %v4067 = vpop.f32.mrf.mxu0
        %v4068 = vadd.f32 0.0, %v4067
        %4069 = vmatmul.f32.gmra.mxu0 %v3958
        %v4070 = vpop.f32.mrf.mxu0
        %v4071 = vadd.f32 0.0, %v4070
        %4072 = vmatmul.f32.gmra.mxu0 %v3961
        %v4073 = vpop.f32.mrf.mxu0
        %v4074 = vadd.f32 0.0, %v4073
        %4075 = vmatmul.f32.gmra.mxu0 %v3964
        %v4076 = vpop.f32.mrf.mxu0
        %v4077 = vadd.f32 0.0, %v4076
        %4078 = vmatmul.f32.gmra.mxu0 %v3967
        %v4079 = vpop.f32.mrf.mxu0
        %v4080 = vadd.f32 0.0, %v4079
        %4081 = vmatmul.f32.gmra.mxu0 %v3970
        %v4082 = vpop.f32.mrf.mxu0
        %v4083 = vadd.f32 0.0, %v4082
        %4084 = vmatmul.f32.gmra.mxu0 %v3973
        %v4085 = vpop.f32.mrf.mxu0
        %v4086 = vadd.f32 0.0, %v4085
        %4087 = vmatmul.f32.gmra.mxu0 %v3976
        %v4088 = vpop.f32.mrf.mxu0
        %v4089 = vadd.f32 0.0, %v4088
        %4090 = vmatmul.f32.gmra.mxu0 %v3979
        %v4091 = vpop.f32.mrf.mxu0
        %v4092 = vadd.f32 0.0, %v4091
        %4093 = vmatmul.f32.gmra.mxu0 %v3982
        %v4094 = vpop.f32.mrf.mxu0
        %v4095 = vadd.f32 0.0, %v4094
        %4096 = vmatmul.f32.gmra.mxu0 %v3985
        %v4097 = vpop.f32.mrf.mxu0
        %v4098 = vadd.f32 0.0, %v4097
        %4099 = vmatmul.f32.gmra.mxu0 %v3988
        %v4100 = vpop.f32.mrf.mxu0
        %v4101 = vadd.f32 0.0, %v4100
        %4102 = vmatmul.f32.gmra.mxu0 %v3991
        %v4103 = vpop.f32.mrf.mxu0
        %v4104 = vadd.f32 0.0, %v4103
        %4105 = vmatmul.f32.gmra.mxu0 %v3994
        %v4106 = vpop.f32.mrf.mxu0
        %v4107 = vadd.f32 0.0, %v4106
        %4108 = vmatmul.f32.gmra.mxu0 %v3997
        %v4109 = vpop.f32.mrf.mxu0
        %v4110 = vadd.f32 0.0, %v4109
        %4111 = vmatmul.f32.gmra.mxu0 %v4000
        %v4112 = vpop.f32.mrf.mxu0
        %v4113 = vadd.f32 0.0, %v4112
        %4114 = vmatmul.f32.gmra.mxu0 %v4003
        %v4115 = vpop.f32.mrf.mxu0
        %v4116 = vadd.f32 0.0, %v4115
        %4117 = vmatmul.f32.gmra.mxu0 %v4006
        %v4118 = vpop.f32.mrf.mxu0
        %v4119 = vadd.f32 0.0, %v4118
        %4120 = vmatmul.f32.gmra.mxu0 %v4009
        %v4121 = vpop.f32.mrf.mxu0
        %v4122 = vadd.f32 0.0, %v4121
        %4123 = vmatmul.f32.gmra.mxu0 %v4012
        %v4124 = vpop.f32.mrf.mxu0
        %v4125 = vadd.f32 0.0, %v4124
        %4126 = vmatmul.f32.gmra.mxu0 %v4015
        %v4127 = vpop.f32.mrf.mxu0
        %v4128 = vadd.f32 0.0, %v4127
        %4129 = vmatmul.f32.gmra.mxu0 %v4018
        %v4130 = vpop.f32.mrf.mxu0
        %v4131 = vadd.f32 0.0, %v4130
        %4132 = vmatmul.f32.gmra.mxu0 %v4021
        %v4133 = vpop.f32.mrf.mxu0
        %v4134 = vadd.f32 0.0, %v4133
        %4135 = vmatmul.f32.gmra.mxu0 %v4024
        %v4136 = vpop.f32.mrf.mxu0
        %v4137 = vadd.f32 0.0, %v4136
        %4138 = vmatmul.f32.gmra.mxu0 %v4027
        %v4139 = vpop.f32.mrf.mxu0
        %v4140 = vadd.f32 0.0, %v4139
        %4141 = vmatmul.f32.gmra.mxu0 %v4030
        %v4142 = vpop.f32.mrf.mxu0
        %v4143 = vadd.f32 0.0, %v4142
        %4144 = vmatmul.f32.gmra.mxu0 %v4033
        %v4145 = vpop.f32.mrf.mxu0
        %v4146 = vadd.f32 0.0, %v4145
        %4147 = vmatmul.f32.gmra.mxu0 %v4036
        %v4148 = vpop.f32.mrf.mxu0
        %v4149 = vadd.f32 0.0, %v4148
        %4150 = vmatmul.f32.gmra.mxu0 %v4039
        %v4151 = vpop.f32.mrf.mxu0
        %v4152 = vadd.f32 0.0, %v4151
        %4153 = vmatmul.f32.gmra.mxu0 %v4042
        %v4154 = vpop.f32.mrf.mxu0
        %v4155 = vadd.f32 0.0, %v4154
        %4156 = vdwg.mxu0
        %v4157 = vld [vmem:[%s5] sm:$0x1]
        %v4159 = vperm.slane %v4157, 0
        %v4161 = vmul.f32 %v4062, %v4159
        %v4162 = vmul.f32 %v4065, %v4159
        %v4163 = vmul.f32 %v4068, %v4159
        %v4164 = vmul.f32 %v4071, %v4159
        %v4165 = vmul.f32 %v4074, %v4159
        %v4166 = vmul.f32 %v4077, %v4159
        %v4167 = vmul.f32 %v4080, %v4159
        %v4168 = vmul.f32 %v4083, %v4159
        %v4169 = vmul.f32 %v4086, %v4159
        %v4170 = vmul.f32 %v4089, %v4159
        %v4171 = vmul.f32 %v4092, %v4159
        %v4172 = vmul.f32 %v4095, %v4159
        %v4173 = vmul.f32 %v4098, %v4159
        %v4174 = vmul.f32 %v4101, %v4159
        %v4175 = vmul.f32 %v4104, %v4159
        %v4176 = vmul.f32 %v4107, %v4159
        %v4177 = vmul.f32 %v4110, %v4159
        %v4178 = vmul.f32 %v4113, %v4159
        %v4179 = vmul.f32 %v4116, %v4159
        %v4180 = vmul.f32 %v4119, %v4159
        %v4181 = vmul.f32 %v4122, %v4159
        %v4182 = vmul.f32 %v4125, %v4159
        %v4183 = vmul.f32 %v4128, %v4159
        %v4184 = vmul.f32 %v4131, %v4159
        %v4185 = vmul.f32 %v4134, %v4159
        %v4186 = vmul.f32 %v4137, %v4159
        %v4187 = vmul.f32 %v4140, %v4159
        %v4188 = vmul.f32 %v4143, %v4159
        %v4189 = vmul.f32 %v4146, %v4159
        %v4190 = vmul.f32 %v4149, %v4159
        %v4191 = vmul.f32 %v4152, %v4159
        %v4192 = vmul.f32 %v4155, %v4159
        %v4193 = vld [vmem:[%s6] sm:$0x1]
        %v4195 = vperm.slane %v4193, 0
        %v4197 = vadd.f32 %v4161, %v4195
        %v4198 = vadd.f32 %v4162, %v4195
        %v4199 = vadd.f32 %v4163, %v4195
        %v4200 = vadd.f32 %v4164, %v4195
        %v4201 = vadd.f32 %v4165, %v4195
        %v4202 = vadd.f32 %v4166, %v4195
        %v4203 = vadd.f32 %v4167, %v4195
        %v4204 = vadd.f32 %v4168, %v4195
        %v4205 = vadd.f32 %v4169, %v4195
        %v4206 = vadd.f32 %v4170, %v4195
        %v4207 = vadd.f32 %v4171, %v4195
        %v4208 = vadd.f32 %v4172, %v4195
        %v4209 = vadd.f32 %v4173, %v4195
        %v4210 = vadd.f32 %v4174, %v4195
        %v4211 = vadd.f32 %v4175, %v4195
        %v4212 = vadd.f32 %v4176, %v4195
        %v4213 = vadd.f32 %v4177, %v4195
        %v4214 = vadd.f32 %v4178, %v4195
        %v4215 = vadd.f32 %v4179, %v4195
        %v4216 = vadd.f32 %v4180, %v4195
        %v4217 = vadd.f32 %v4181, %v4195
        %v4218 = vadd.f32 %v4182, %v4195
        %v4219 = vadd.f32 %v4183, %v4195
        %v4220 = vadd.f32 %v4184, %v4195
        %v4221 = vadd.f32 %v4185, %v4195
        %v4222 = vadd.f32 %v4186, %v4195
        %v4223 = vadd.f32 %v4187, %v4195
        %v4224 = vadd.f32 %v4188, %v4195
        %v4225 = vadd.f32 %v4189, %v4195
        %v4226 = vadd.f32 %v4190, %v4195
        %v4227 = vadd.f32 %v4191, %v4195
        %v4228 = vadd.f32 %v4192, %v4195
        %v4229 = vmax.f32 %v4197, 0.0
        %v4230 = vmax.f32 %v4198, 0.0
        %v4231 = vmax.f32 %v4199, 0.0
        %v4232 = vmax.f32 %v4200, 0.0
        %v4233 = vmax.f32 %v4201, 0.0
        %v4234 = vmax.f32 %v4202, 0.0
        %v4235 = vmax.f32 %v4203, 0.0
        %v4236 = vmax.f32 %v4204, 0.0
        %v4237 = vmax.f32 %v4205, 0.0
        %v4238 = vmax.f32 %v4206, 0.0
        %v4239 = vmax.f32 %v4207, 0.0
        %v4240 = vmax.f32 %v4208, 0.0
        %v4241 = vmax.f32 %v4209, 0.0
        %v4242 = vmax.f32 %v4210, 0.0
        %v4243 = vmax.f32 %v4211, 0.0
        %v4244 = vmax.f32 %v4212, 0.0
        %v4245 = vmax.f32 %v4213, 0.0
        %v4246 = vmax.f32 %v4214, 0.0
        %v4247 = vmax.f32 %v4215, 0.0
        %v4248 = vmax.f32 %v4216, 0.0
        %v4249 = vmax.f32 %v4217, 0.0
        %v4250 = vmax.f32 %v4218, 0.0
        %v4251 = vmax.f32 %v4219, 0.0
        %v4252 = vmax.f32 %v4220, 0.0
        %v4253 = vmax.f32 %v4221, 0.0
        %v4254 = vmax.f32 %v4222, 0.0
        %v4255 = vmax.f32 %v4223, 0.0
        %v4256 = vmax.f32 %v4224, 0.0
        %v4257 = vmax.f32 %v4225, 0.0
        %v4258 = vmax.f32 %v4226, 0.0
        %v4259 = vmax.f32 %v4227, 0.0
        %v4260 = vmax.f32 %v4228, 0.0
        %4261 = vxpose.xlu0.b32.start [1/16] %v4229, 128
        %4262 = vxpose.xlu0.b32.cont [2/16] %v4230, 128
        %4263 = vxpose.xlu0.b32.cont [3/16] %v4231, 128
        %4264 = vxpose.xlu0.b32.cont [4/16] %v4232, 128
        %4265 = vxpose.xlu0.b32.cont [5/16] %v4233, 128
        %4266 = vxpose.xlu0.b32.cont [6/16] %v4234, 128
        %4267 = vxpose.xlu0.b32.cont [7/16] %v4235, 128
        %4268 = vxpose.xlu0.b32.cont [8/16] %v4236, 128
        %4269 = vxpose.xlu0.b32.cont [9/16] %v4237, 128
        %4270 = vxpose.xlu0.b32.cont [10/16] %v4238, 128
        %4271 = vxpose.xlu0.b32.cont [11/16] %v4239, 128
        %4272 = vxpose.xlu0.b32.cont [12/16] %v4240, 128
        %4273 = vxpose.xlu0.b32.cont [13/16] %v4241, 128
        %4274 = vxpose.xlu0.b32.cont [14/16] %v4242, 128
        %4275 = vxpose.xlu0.b32.cont [15/16] %v4243, 128
        %4276 = vxpose.xlu0.b32.end [16/16] %v4244, 128
        %v4277 = vpop.trf.xlu0
        %v4278 = vpop.trf.xlu0
        %v4279 = vpop.trf.xlu0
        %v4280 = vpop.trf.xlu0
        %v4281 = vpop.trf.xlu0
        %v4282 = vpop.trf.xlu0
        %v4283 = vpop.trf.xlu0
        %v4284 = vpop.trf.xlu0
        %v4285 = vpop.trf.xlu0
        %v4286 = vpop.trf.xlu0
        %v4287 = vpop.trf.xlu0
        %v4288 = vpop.trf.xlu0
        %v4289 = vpop.trf.xlu0
        %v4290 = vpop.trf.xlu0
        %v4291 = vpop.trf.xlu0
        %v4292 = vpop.trf.xlu0
        %4293 = vxpose.xlu0.b32.start [1/16] %v4245, 128
        %4294 = vxpose.xlu0.b32.cont [2/16] %v4246, 128
        %4295 = vxpose.xlu0.b32.cont [3/16] %v4247, 128
        %4296 = vxpose.xlu0.b32.cont [4/16] %v4248, 128
        %4297 = vxpose.xlu0.b32.cont [5/16] %v4249, 128
        %4298 = vxpose.xlu0.b32.cont [6/16] %v4250, 128
        %4299 = vxpose.xlu0.b32.cont [7/16] %v4251, 128
        %4300 = vxpose.xlu0.b32.cont [8/16] %v4252, 128
        %4301 = vxpose.xlu0.b32.cont [9/16] %v4253, 128
        %4302 = vxpose.xlu0.b32.cont [10/16] %v4254, 128
        %4303 = vxpose.xlu0.b32.cont [11/16] %v4255, 128
        %4304 = vxpose.xlu0.b32.cont [12/16] %v4256, 128
        %4305 = vxpose.xlu0.b32.cont [13/16] %v4257, 128
        %4306 = vxpose.xlu0.b32.cont [14/16] %v4258, 128
        %4307 = vxpose.xlu0.b32.cont [15/16] %v4259, 128
        %4308 = vxpose.xlu0.b32.end [16/16] %v4260, 128
        %v4309 = vpop.trf.xlu0
        %v4310 = vpop.trf.xlu0
        %v4311 = vpop.trf.xlu0
        %v4312 = vpop.trf.xlu0
        %v4313 = vpop.trf.xlu0
        %v4314 = vpop.trf.xlu0
        %v4315 = vpop.trf.xlu0
        %v4316 = vpop.trf.xlu0
        %v4317 = vpop.trf.xlu0
        %v4318 = vpop.trf.xlu0
        %v4319 = vpop.trf.xlu0
        %v4320 = vpop.trf.xlu0
        %v4321 = vpop.trf.xlu0
        %v4322 = vpop.trf.xlu0
        %v4323 = vpop.trf.xlu0
        %v4324 = vpop.trf.xlu0
        %4325 = vst [vmem:[%s271] sm:$0xff] %v4277
        %4326 = vst [vmem:[%s271 + $0x8] sm:$0xff] %v4309
        %s4327 = sand.u32 %s181, 1
        %s4328 = scalar_lea.sflag [#allocation5], %s4327
        %s4329 = sand.u32 %s181, 1
        %s4330 = smul.addr %s4329, 16
        %s4331 = scalar_lea.vmem [#allocation4], %s4330
        // Predicated region
        $region49: #{tpu_custom_call.1} parent=47 // pred_check
          %p4332 = pneg %p191
        $region50: #{tpu_custom_call.1} parent=47 // pred_check_branch
          %4334 = sbr.rel (%p4332) target = $region52
        $region51: #{tpu_custom_call.1} parent=47 // pred_region
          %4336 = vsyncadd %s4328, 0
          %s4337 = smul.addr %s21, 2
          %s4338 = smul.addr %s4337, 8
          %s4339 = scalar_lea.hbm %s7, %s4338
          %s4341 = sshll.u32 %s4331, 4
          %s4342 = int_to_ptr.vmem [resolvable:$true] %s4341
          %s4343 = sshll.u32 %s4339, 4
          %s4344 = int_to_ptr.hbm [resolvable:$true] %s4343
          %4346 = dma.vmem_to_hbm [thread:$0]  %s4342, 256, %s4344, %s4328
        $region52: #{tpu_custom_call.1} parent=47 // pred_fallthru
          _
      $region48: #{tpu_custom_call.1} parent=5 // pred_fallthru
        _
      %p4347 = scmp.le.s32.totalorder 2, %s16
      // Predicated region
      $region53: #{tpu_custom_call.1} parent=5 // pred_check
        %p4348 = pneg %p4347
      $region54: #{tpu_custom_call.1} parent=5 // pred_check_branch
        %4350 = sbr.rel (%p4348) target = $region56
      $region55: #{tpu_custom_call.1} parent=5 // pred_region
        %s4351 = ssub.s32 %s16, 2
        // Predicated region
        $region57: #{tpu_custom_call.1} parent=55 // pred_check
          %p4352 = pneg %p197
        $region58: #{tpu_custom_call.1} parent=55 // pred_check_branch
          %4354 = sbr.rel (%p4352) target = $region60
        $region59: #{tpu_custom_call.1} parent=55 // pred_region
          %s4355 = sand.u32 %s182, 1
          %s4356 = scalar_lea.sflag [#allocation5], %s4355
          %s4357 = sand.u32 %s182, 1
          %s4358 = smul.addr %s4357, 16
          %s4359 = scalar_lea.vmem [#allocation4], %s4358
          %4361 = dma.done %s4356, 256
        $region60: #{tpu_custom_call.1} parent=55 // pred_fallthru
          _
      $region56: #{tpu_custom_call.1} parent=5 // pred_fallthru
        _
    $region6: #{tpu_custom_call.1} parent=1 // loop_footer
      %s20 = sadd.s32 1, %s16
    $region7: #{tpu_custom_call.1} parent=1 // loop_footer_branch
      %15 = sbr.rel target = $region3
    $region8: #{tpu_custom_call.1} parent=1 // loop_exit
      _
    %4362 = vsyncpa [#allocation5], 1
    %s4363 = scalar_lea.sflag [#allocation5], 1
    %4364 = vsyncpa %s4363, 1

</llo_original>
